<compile_context>
chip_gen: v7x
topology: tpu7x:2x2x1
jax: 0.10.0
libtpu: 0.0.40
codegen_flags: <defaults>
</compile_context>

<pallas_src>
import jax
import jax.numpy as jnp
import numpy as np
from jax.experimental import pallas as pl
from jax.experimental.pallas import tpu as pltpu

OUT_PAD = 128           # lane-dense padded width of the fc3 output
NUM_CLASSES = 3


# ---------------------------------------------------------------------------
# Host-side (numpy) construction of the structured matrices
# ---------------------------------------------------------------------------
def _conv_lane_weights(w, w_in):
    """w: (KH, KW, Cin, Cout) -> (KH, w_in*Cin, w_out*Cout) block-Toeplitz mats.

    out[r, j*Cout+co] = sum_kh  in_row[r+kh] @ mats[kh]   implements the valid
    2-D cross-correlation when in_row has lanes flattened as (column, channel).
    """
    KH, KW, Cin, Cout = w.shape
    w_out = w_in - KW + 1
    mats = np.zeros((KH, w_in * Cin, w_out * Cout), np.float32)
    for kh in range(KH):
        for j in range(w_out):
            for kw in range(KW):
                mats[kh,
                     (j + kw) * Cin:(j + kw + 1) * Cin,
                     j * Cout:(j + 1) * Cout] += w[kh, kw]
    return mats


def _pool_row_selectors(nb, period, hp, rin):
    """(2, nb*hp, rin) 0/1 matrices selecting rows 2*ph (+1) of each image."""
    sel = np.zeros((2, nb * hp, rin), np.float32)
    for n in range(nb):
        for ph in range(hp):
            sel[0, n * hp + ph, n * period + 2 * ph] = 1.0
            sel[1, n * hp + ph, n * period + 2 * ph + 1] = 1.0
    return sel


def _pool_lane_selectors(w_in, wp, c):
    """(2, w_in*c, wp*c) 0/1 matrices selecting lane groups 2*pw (+1)."""
    sel = np.zeros((2, w_in * c, wp * c), np.float32)
    for pw in range(wp):
        for ch in range(c):
            sel[0, (2 * pw) * c + ch, pw * c + ch] = 1.0
            sel[1, (2 * pw + 1) * c + ch, pw * c + ch] = 1.0
    return sel


def prepare_params(p, nb, H=16, W=16):
    """Build all kernel-side constant matrices from the PyTorch-layout params."""
    w1 = np.asarray(p["cw1"], np.float32)
    b1 = np.asarray(p["cb1"], np.float32).reshape(-1)
    w2 = np.asarray(p["cw2"], np.float32)
    b2 = np.asarray(p["cb2"], np.float32).reshape(-1)
    fw1 = np.asarray(p["fw1"], np.float32)
    fb1 = np.asarray(p["fb1"], np.float32).reshape(-1)
    fw2 = np.asarray(p["fw2"], np.float32)
    fb2 = np.asarray(p["fb2"], np.float32).reshape(-1)
    fw3 = np.asarray(p["fw3"], np.float32)
    fb3 = np.asarray(p["fb3"], np.float32).reshape(-1)

    KH, KW, C0, C1 = w1.shape
    C2 = w2.shape[3]
    HO1, WO1 = H - KH + 1, W - KW + 1          # conv1 output
    HP1, WP1 = HO1 // 2, WO1 // 2              # pool1 output (floor)
    HO2, WO2 = HP1 - KH + 1, WP1 - KW + 1      # conv2 output
    HP2, WP2 = HO2 // 2, WO2 // 2              # pool2 output
    F1, F3 = fw1.shape[1], fw3.shape[1]
    assert fw1.shape[0] == C2 * HP2 * WP2, "fc1 input size mismatch"

    # conv1 / pool1
    w1k = _conv_lane_weights(w1, W)                       # (2, W*C0, WO1*C1)
    b1r = np.tile(b1, WO1)[None, :]                       # (1, WO1*C1)
    seo1 = _pool_row_selectors(nb, H, HP1, nb * H - 1)    # (2, nb*HP1, nb*H-1)
    meo1 = _pool_lane_selectors(WO1, WP1, C1)             # (2, WO1*C1, WP1*C1)

    # conv2 / pool2
    w2k = _conv_lane_weights(w2, WP1)                     # (2, WP1*C1, WO2*C2)
    b2r = np.tile(b2, WO2)[None, :]                       # (1, WO2*C2)
    seo2 = _pool_row_selectors(nb, HP1, HP2, nb * HP1 - 1)
    meo2 = _pool_lane_selectors(WO2, WP2, C2)

    # fc1: fold the PyTorch (C, H, W) flatten order into per-pool-row weights.
    sr = np.zeros((HP2, nb, nb * HP2), np.float32)        # row selectors
    for ph in range(HP2):
        for n in range(nb):
            sr[ph, n, n * HP2 + ph] = 1.0
    g = np.zeros((HP2, WP2 * C2, F1), np.float32)         # fc1 weight pieces
    for ph in range(HP2):
        for pw in range(WP2):
            for c in range(C2):
                g[ph, pw * C2 + c, :] = fw1[c * (HP2 * WP2) + ph * WP2 + pw, :]

    # fc3 padded to a lane-dense width
    fw3p = np.zeros((fw3.shape[0], OUT_PAD), np.float32)
    fw3p[:, :F3] = fw3
    fb3p = np.zeros((1, OUT_PAD), np.float32)
    fb3p[0, :F3] = fb3

    consts = (w1k, b1r, seo1, meo1, w2k, b2r, seo2, meo2, sr, g,
              fb1[None, :], fw2, fb2[None, :], fw3p, fb3p)
    return tuple(jnp.asarray(a) for a in consts)


# ---------------------------------------------------------------------------
# The fused kernel (one grid step = one block of `nb` images)
# ---------------------------------------------------------------------------
def _fused_kernel(x_ref, w1k_ref, b1_ref, seo1_ref, meo1_ref,
                  w2k_ref, b2_ref, seo2_ref, meo2_ref,
                  sr_ref, g_ref, fb1_ref, fw2_ref, fb2_ref, fw3_ref, fb3_ref,
                  o_ref):
    f32 = jnp.float32
    x = x_ref[...]                                   # (nb*H, W*C0)
    r1 = x.shape[0] - 1

    # conv1 + bias + relu:  (nb*H-1, WO1*C1)
    a1 = jnp.dot(x[:r1, :], w1k_ref[0], preferred_element_type=f32)
    a1 = a1 + jnp.dot(x[1:r1 + 1, :], w1k_ref[1], preferred_element_type=f32)
    a1 = jnp.maximum(a1 + b1_ref[...], 0.0)

    # maxpool 2x2 (rows via selection matmuls, columns via lane selectors)
    pr1 = jnp.maximum(jnp.dot(seo1_ref[0], a1, preferred_element_type=f32),
                      jnp.dot(seo1_ref[1], a1, preferred_element_type=f32))
    p1 = jnp.maximum(jnp.dot(pr1, meo1_ref[0], preferred_element_type=f32),
                     jnp.dot(pr1, meo1_ref[1], preferred_element_type=f32))

    # conv2 + bias + relu:  (nb*HP1-1, WO2*C2)
    r2 = p1.shape[0] - 1
    a2 = jnp.dot(p1[:r2, :], w2k_ref[0], preferred_element_type=f32)
    a2 = a2 + jnp.dot(p1[1:r2 + 1, :], w2k_ref[1], preferred_element_type=f32)
    a2 = jnp.maximum(a2 + b2_ref[...], 0.0)

    # maxpool 2x2
    pr2 = jnp.maximum(jnp.dot(seo2_ref[0], a2, preferred_element_type=f32),
                      jnp.dot(seo2_ref[1], a2, preferred_element_type=f32))
    p2 = jnp.maximum(jnp.dot(pr2, meo2_ref[0], preferred_element_type=f32),
                     jnp.dot(pr2, meo2_ref[1], preferred_element_type=f32))

    # fc1 (flatten folded into g): sum over the pooled rows of each image.
    # HP2 is small & static, so this unrolls into a handful of MXU ops.
    acc = jnp.dot(jnp.dot(sr_ref[0], p2, preferred_element_type=f32),
                  g_ref[0], preferred_element_type=f32)
    for ph in range(1, sr_ref.shape[0]):
        acc = acc + jnp.dot(jnp.dot(sr_ref[ph], p2, preferred_element_type=f32),
                            g_ref[ph], preferred_element_type=f32)
    h1 = jnp.maximum(acc + fb1_ref[...], 0.0)

    # fc2 + relu, fc3 (dropout = identity in eval mode); single block store.
    h2 = jnp.maximum(jnp.dot(h1, fw2_ref[...], preferred_element_type=f32)
                     + fb2_ref[...], 0.0)
    o_ref[...] = (jnp.dot(h2, fw3_ref[...], preferred_element_type=f32)
                  + fb3_ref[...])


# ---------------------------------------------------------------------------
# Wrapper: layout prep + single fused pallas_call
# ---------------------------------------------------------------------------
def rubber_toys_forward(x_nchw, consts, nb):
    N, C0, H, W = x_nchw.shape
    assert N % nb == 0
    # NCHW -> NHWC -> rows=(n,h), lanes=(w,c)   (one tiny host-side XLA reshape)
    x2 = jnp.transpose(x_nchw, (0, 2, 3, 1)).reshape(N * H, W * C0)

    def const_spec(a):
        nd = a.ndim
        return pl.BlockSpec(a.shape, lambda b, _nd=nd: (0,) * _nd)

    out = pl.pallas_call(
        _fused_kernel,
        out_shape=jax.ShapeDtypeStruct((N, OUT_PAD), jnp.float32),
        grid=(N // nb,),
        in_specs=[pl.BlockSpec((nb * H, W * C0), lambda b: (b, 0))]
                 + [const_spec(a) for a in consts],
        out_specs=pl.BlockSpec((nb, OUT_PAD), lambda b: (b, 0)),
        compiler_params=pltpu.CompilerParams(
            dimension_semantics=("parallel",)),
    )(x2, *consts)
    return out[:, :NUM_CLASSES]


# ---------------------------------------------------------------------------
# Pure-JAX reference (correctness check) and synthetic params
# ---------------------------------------------------------------------------
def reference_forward(x_nchw, p):
    def conv_block(x, w, b):
        w_oihw = jnp.transpose(w, (3, 2, 0, 1))
        y = jax.lax.conv_general_dilated(
            x, w_oihw, (1, 1), "VALID",
            dimension_numbers=("NCHW", "OIHW", "NCHW"))
        y = jnp.maximum(y + b.reshape(1, -1, 1, 1), 0.0)
        return jax.lax.reduce_window(y, -jnp.inf, jax.lax.max,
                                     (1, 1, 2, 2), (1, 1, 2, 2), "VALID")
    h = conv_block(x_nchw, p["cw1"], p["cb1"])
    h = conv_block(h, p["cw2"], p["cb2"])
    h = h.reshape(h.shape[0], -1)                     # PyTorch (C,H,W) flatten
    h = jnp.maximum(h @ p["fw1"] + p["fb1"], 0.0)
    h = jnp.maximum(h @ p["fw2"] + p["fb2"], 0.0)
    return h @ p["fw3"] + p["fb3"]


def init_params(to_linear):
    keys = jax.random.split(jax.random.PRNGKey(0), 10)
    s = 0.1
    return {
        "cw1": jax.random.normal(keys[0], (2, 2, 3, 12), jnp.float32) * s,
        "cb1": jax.random.normal(keys[1], (12,), jnp.float32) * s,
        "cw2": jax.random.normal(keys[2], (2, 2, 12, 24), jnp.float32) * s,
        "cb2": jax.random.normal(keys[3], (24,), jnp.float32) * s,
        "fw1": jax.random.normal(keys[4], (to_linear, 200), jnp.float32) * s,
        "fb1": jax.random.normal(keys[5], (200,), jnp.float32) * s,
        "fw2": jax.random.normal(keys[6], (200, 100), jnp.float32) * s,
        "fb2": jax.random.normal(keys[7], (100,), jnp.float32) * s,
        "fw3": jax.random.normal(keys[8], (100, 3), jnp.float32) * s,
        "fb3": jax.random.normal(keys[9], (3,), jnp.float32) * s,
    }


if __name__ == "__main__":
    # Small input: C=3, 16x16 -> conv1 15x15 -> pool 7x7
    #                            conv2 6x6   -> pool 3x3 -> _to_linear = 24*3*3
    # N=16 images, nb=8 per grid step -> 2 grid steps, 8-sublane-aligned
    # output blocks, and the "parallel" grid axis is actually exercised.
    N, C, H, W = 16, 3, 16, 16
    to_linear = 24 * 3 * 3
    NB = 8

    x = jax.random.normal(jax.random.PRNGKey(0), (N, C, H, W), jnp.float32)
    params = init_params(to_linear)
    consts = prepare_params(params, NB, H=H, W=W)

    fwd = jax.jit(lambda xx, cc: rubber_toys_forward(xx, cc, NB))
    out = jax.block_until_ready(fwd(x, consts))
    assert out.shape == (N, NUM_CLASSES), out.shape

    ref = jax.block_until_ready(reference_forward(x, params))
    np.testing.assert_allclose(np.asarray(out), np.asarray(ref),
                               rtol=5e-2, atol=5e-2)

    print("KERNEL_OK")
</pallas_src>

<mosaic_0001>
module attributes {stable_mosaic.version = 11 : i64} {
  func.func @_fused_kernel(%arg0: i32, %arg1: memref<128x48xf32, #tpu.memory_space<vmem>>, %arg2: memref<2x48x180xf32, #tpu.memory_space<vmem>>, %arg3: memref<1x180xf32, #tpu.memory_space<vmem>>, %arg4: memref<2x56x127xf32, #tpu.memory_space<vmem>>, %arg5: memref<2x180x84xf32, #tpu.memory_space<vmem>>, %arg6: memref<2x84x144xf32, #tpu.memory_space<vmem>>, %arg7: memref<1x144xf32, #tpu.memory_space<vmem>>, %arg8: memref<2x24x55xf32, #tpu.memory_space<vmem>>, %arg9: memref<2x144x72xf32, #tpu.memory_space<vmem>>, %arg10: memref<3x8x24xf32, #tpu.memory_space<vmem>>, %arg11: memref<3x72x200xf32, #tpu.memory_space<vmem>>, %arg12: memref<1x200xf32, #tpu.memory_space<vmem>>, %arg13: memref<200x100xf32, #tpu.memory_space<vmem>>, %arg14: memref<1x100xf32, #tpu.memory_space<vmem>>, %arg15: memref<100x128xf32, #tpu.memory_space<vmem>>, %arg16: memref<1x128xf32, #tpu.memory_space<vmem>>, %arg17: memref<8x128xf32, #tpu.memory_space<vmem>>) attributes {dimension_semantics = [#tpu.dimension_semantics<parallel>], iteration_bounds = array<i64: 2>, scalar_prefetch = 0 : i64, scratch_operands = 0 : i64, tpu.core_type = #tpu.core_type<tc>, window_params = [{transform_indices = @transform_0, window_bounds = array<i64: 128, 48>}, {pipeline_mode = #tpu.pipeline_mode<synchronous>, transform_indices = @transform_1, window_bounds = array<i64: 2, 48, 180>}, {pipeline_mode = #tpu.pipeline_mode<synchronous>, transform_indices = @transform_2, window_bounds = array<i64: 1, 180>}, {pipeline_mode = #tpu.pipeline_mode<synchronous>, transform_indices = @transform_3, window_bounds = array<i64: 2, 56, 127>}, {pipeline_mode = #tpu.pipeline_mode<synchronous>, transform_indices = @transform_4, window_bounds = array<i64: 2, 180, 84>}, {pipeline_mode = #tpu.pipeline_mode<synchronous>, transform_indices = @transform_5, window_bounds = array<i64: 2, 84, 144>}, {pipeline_mode = #tpu.pipeline_mode<synchronous>, transform_indices = @transform_6, window_bounds = array<i64: 1, 144>}, {pipeline_mode = #tpu.pipeline_mode<synchronous>, transform_indices = @transform_7, window_bounds = array<i64: 2, 24, 55>}, {pipeline_mode = #tpu.pipeline_mode<synchronous>, transform_indices = @transform_8, window_bounds = array<i64: 2, 144, 72>}, {pipeline_mode = #tpu.pipeline_mode<synchronous>, transform_indices = @transform_9, window_bounds = array<i64: 3, 8, 24>}, {pipeline_mode = #tpu.pipeline_mode<synchronous>, transform_indices = @transform_10, window_bounds = array<i64: 3, 72, 200>}, {pipeline_mode = #tpu.pipeline_mode<synchronous>, transform_indices = @transform_11, window_bounds = array<i64: 1, 200>}, {pipeline_mode = #tpu.pipeline_mode<synchronous>, transform_indices = @transform_12, window_bounds = array<i64: 200, 100>}, {pipeline_mode = #tpu.pipeline_mode<synchronous>, transform_indices = @transform_13, window_bounds = array<i64: 1, 100>}, {pipeline_mode = #tpu.pipeline_mode<synchronous>, transform_indices = @transform_14, window_bounds = array<i64: 100, 128>}, {pipeline_mode = #tpu.pipeline_mode<synchronous>, transform_indices = @transform_15, window_bounds = array<i64: 1, 128>}, {transform_indices = @transform_16, window_bounds = array<i64: 8, 128>}]} {
    %c0 = arith.constant 0 : index
    %c0_0 = arith.constant 0 : index
    %0 = vector.load %arg1[%c0, %c0_0] : memref<128x48xf32, #tpu.memory_space<vmem>>, vector<128x48xf32>
    %1 = vector.extract_strided_slice %0 {offsets = [0, 0], sizes = [127, 48], strides = [1, 1]} : vector<128x48xf32> to vector<127x48xf32>
    %c0_1 = arith.constant 0 : index
    %c0_2 = arith.constant 0 : index
    %c0_3 = arith.constant 0 : index
    %2 = vector.load %arg2[%c0_1, %c0_2, %c0_3] : memref<2x48x180xf32, #tpu.memory_space<vmem>>, vector<1x48x180xf32>
    %3 = vector.shape_cast %2 : vector<1x48x180xf32> to vector<48x180xf32>
    %cst = arith.constant dense<0.000000e+00> : vector<127x180xf32>
    %4 = tpu.matmul %1, %3, %cst {dimension_numbers = #tpu.dot_dimension_numbers<[1], [0], [0], [1], [0, 0, 1, 1], [], []>} : vector<127x48xf32>, vector<48x180xf32>, vector<127x180xf32> -> vector<127x180xf32>
    %5 = vector.extract_strided_slice %0 {offsets = [1, 0], sizes = [127, 48], strides = [1, 1]} : vector<128x48xf32> to vector<127x48xf32>
    %c1 = arith.constant 1 : index
    %c0_4 = arith.constant 0 : index
    %c0_5 = arith.constant 0 : index
    %6 = vector.load %arg2[%c1, %c0_4, %c0_5] : memref<2x48x180xf32, #tpu.memory_space<vmem>>, vector<1x48x180xf32>
    %7 = vector.shape_cast %6 : vector<1x48x180xf32> to vector<48x180xf32>
    %cst_6 = arith.constant dense<0.000000e+00> : vector<127x180xf32>
    %8 = tpu.matmul %5, %7, %cst_6 {dimension_numbers = #tpu.dot_dimension_numbers<[1], [0], [0], [1], [0, 0, 1, 1], [], []>} : vector<127x48xf32>, vector<48x180xf32>, vector<127x180xf32> -> vector<127x180xf32>
    %9 = arith.addf %4, %8 : vector<127x180xf32>
    %c0_7 = arith.constant 0 : index
    %c0_8 = arith.constant 0 : index
    %10 = vector.load %arg3[%c0_7, %c0_8] : memref<1x180xf32, #tpu.memory_space<vmem>>, vector<1x180xf32>
    %11 = vector.broadcast %10 : vector<1x180xf32> to vector<127x180xf32>
    %12 = arith.addf %9, %11 : vector<127x180xf32>
    %cst_9 = arith.constant 0.000000e+00 : f32
    %13 = vector.broadcast %cst_9 : f32 to vector<127x180xf32>
    %14 = arith.maximumf %12, %13 : vector<127x180xf32>
    %c0_10 = arith.constant 0 : index
    %c0_11 = arith.constant 0 : index
    %c0_12 = arith.constant 0 : index
    %15 = vector.load %arg4[%c0_10, %c0_11, %c0_12] : memref<2x56x127xf32, #tpu.memory_space<vmem>>, vector<1x56x127xf32>
    %16 = vector.shape_cast %15 : vector<1x56x127xf32> to vector<56x127xf32>
    %cst_13 = arith.constant dense<0.000000e+00> : vector<56x180xf32>
    %17 = tpu.matmul %16, %14, %cst_13 {dimension_numbers = #tpu.dot_dimension_numbers<[1], [0], [0], [1], [0, 0, 1, 1], [], []>} : vector<56x127xf32>, vector<127x180xf32>, vector<56x180xf32> -> vector<56x180xf32>
    %c1_14 = arith.constant 1 : index
    %c0_15 = arith.constant 0 : index
    %c0_16 = arith.constant 0 : index
    %18 = vector.load %arg4[%c1_14, %c0_15, %c0_16] : memref<2x56x127xf32, #tpu.memory_space<vmem>>, vector<1x56x127xf32>
    %19 = vector.shape_cast %18 : vector<1x56x127xf32> to vector<56x127xf32>
    %cst_17 = arith.constant dense<0.000000e+00> : vector<56x180xf32>
    %20 = tpu.matmul %19, %14, %cst_17 {dimension_numbers = #tpu.dot_dimension_numbers<[1], [0], [0], [1], [0, 0, 1, 1], [], []>} : vector<56x127xf32>, vector<127x180xf32>, vector<56x180xf32> -> vector<56x180xf32>
    %21 = arith.maximumf %17, %20 : vector<56x180xf32>
    %c0_18 = arith.constant 0 : index
    %c0_19 = arith.constant 0 : index
    %c0_20 = arith.constant 0 : index
    %22 = vector.load %arg5[%c0_18, %c0_19, %c0_20] : memref<2x180x84xf32, #tpu.memory_space<vmem>>, vector<1x180x84xf32>
    %23 = vector.shape_cast %22 : vector<1x180x84xf32> to vector<180x84xf32>
    %cst_21 = arith.constant dense<0.000000e+00> : vector<56x84xf32>
    %24 = tpu.matmul %21, %23, %cst_21 {dimension_numbers = #tpu.dot_dimension_numbers<[1], [0], [0], [1], [0, 0, 1, 1], [], []>} : vector<56x180xf32>, vector<180x84xf32>, vector<56x84xf32> -> vector<56x84xf32>
    %c1_22 = arith.constant 1 : index
    %c0_23 = arith.constant 0 : index
    %c0_24 = arith.constant 0 : index
    %25 = vector.load %arg5[%c1_22, %c0_23, %c0_24] : memref<2x180x84xf32, #tpu.memory_space<vmem>>, vector<1x180x84xf32>
    %26 = vector.shape_cast %25 : vector<1x180x84xf32> to vector<180x84xf32>
    %cst_25 = arith.constant dense<0.000000e+00> : vector<56x84xf32>
    %27 = tpu.matmul %21, %26, %cst_25 {dimension_numbers = #tpu.dot_dimension_numbers<[1], [0], [0], [1], [0, 0, 1, 1], [], []>} : vector<56x180xf32>, vector<180x84xf32>, vector<56x84xf32> -> vector<56x84xf32>
    %28 = arith.maximumf %24, %27 : vector<56x84xf32>
    %29 = vector.extract_strided_slice %28 {offsets = [0, 0], sizes = [55, 84], strides = [1, 1]} : vector<56x84xf32> to vector<55x84xf32>
    %c0_26 = arith.constant 0 : index
    %c0_27 = arith.constant 0 : index
    %c0_28 = arith.constant 0 : index
    %30 = vector.load %arg6[%c0_26, %c0_27, %c0_28] : memref<2x84x144xf32, #tpu.memory_space<vmem>>, vector<1x84x144xf32>
    %31 = vector.shape_cast %30 : vector<1x84x144xf32> to vector<84x144xf32>
    %cst_29 = arith.constant dense<0.000000e+00> : vector<55x144xf32>
    %32 = tpu.matmul %29, %31, %cst_29 {dimension_numbers = #tpu.dot_dimension_numbers<[1], [0], [0], [1], [0, 0, 1, 1], [], []>} : vector<55x84xf32>, vector<84x144xf32>, vector<55x144xf32> -> vector<55x144xf32>
    %33 = vector.extract_strided_slice %28 {offsets = [1, 0], sizes = [55, 84], strides = [1, 1]} : vector<56x84xf32> to vector<55x84xf32>
    %c1_30 = arith.constant 1 : index
    %c0_31 = arith.constant 0 : index
    %c0_32 = arith.constant 0 : index
    %34 = vector.load %arg6[%c1_30, %c0_31, %c0_32] : memref<2x84x144xf32, #tpu.memory_space<vmem>>, vector<1x84x144xf32>
    %35 = vector.shape_cast %34 : vector<1x84x144xf32> to vector<84x144xf32>
    %cst_33 = arith.constant dense<0.000000e+00> : vector<55x144xf32>
    %36 = tpu.matmul %33, %35, %cst_33 {dimension_numbers = #tpu.dot_dimension_numbers<[1], [0], [0], [1], [0, 0, 1, 1], [], []>} : vector<55x84xf32>, vector<84x144xf32>, vector<55x144xf32> -> vector<55x144xf32>
    %37 = arith.addf %32, %36 : vector<55x144xf32>
    %c0_34 = arith.constant 0 : index
    %c0_35 = arith.constant 0 : index
    %38 = vector.load %arg7[%c0_34, %c0_35] : memref<1x144xf32, #tpu.memory_space<vmem>>, vector<1x144xf32>
    %39 = vector.broadcast %38 : vector<1x144xf32> to vector<55x144xf32>
    %40 = arith.addf %37, %39 : vector<55x144xf32>
    %cst_36 = arith.constant 0.000000e+00 : f32
    %41 = vector.broadcast %cst_36 : f32 to vector<55x144xf32>
    %42 = arith.maximumf %40, %41 : vector<55x144xf32>
    %c0_37 = arith.constant 0 : index
    %c0_38 = arith.constant 0 : index
    %c0_39 = arith.constant 0 : index
    %43 = vector.load %arg8[%c0_37, %c0_38, %c0_39] : memref<2x24x55xf32, #tpu.memory_space<vmem>>, vector<1x24x55xf32>
    %44 = vector.shape_cast %43 : vector<1x24x55xf32> to vector<24x55xf32>
    %cst_40 = arith.constant dense<0.000000e+00> : vector<24x144xf32>
    %45 = tpu.matmul %44, %42, %cst_40 {dimension_numbers = #tpu.dot_dimension_numbers<[1], [0], [0], [1], [0, 0, 1, 1], [], []>} : vector<24x55xf32>, vector<55x144xf32>, vector<24x144xf32> -> vector<24x144xf32>
    %c1_41 = arith.constant 1 : index
    %c0_42 = arith.constant 0 : index
    %c0_43 = arith.constant 0 : index
    %46 = vector.load %arg8[%c1_41, %c0_42, %c0_43] : memref<2x24x55xf32, #tpu.memory_space<vmem>>, vector<1x24x55xf32>
    %47 = vector.shape_cast %46 : vector<1x24x55xf32> to vector<24x55xf32>
    %cst_44 = arith.constant dense<0.000000e+00> : vector<24x144xf32>
    %48 = tpu.matmul %47, %42, %cst_44 {dimension_numbers = #tpu.dot_dimension_numbers<[1], [0], [0], [1], [0, 0, 1, 1], [], []>} : vector<24x55xf32>, vector<55x144xf32>, vector<24x144xf32> -> vector<24x144xf32>
    %49 = arith.maximumf %45, %48 : vector<24x144xf32>
    %c0_45 = arith.constant 0 : index
    %c0_46 = arith.constant 0 : index
    %c0_47 = arith.constant 0 : index
    %50 = vector.load %arg9[%c0_45, %c0_46, %c0_47] : memref<2x144x72xf32, #tpu.memory_space<vmem>>, vector<1x144x72xf32>
    %51 = vector.shape_cast %50 : vector<1x144x72xf32> to vector<144x72xf32>
    %cst_48 = arith.constant dense<0.000000e+00> : vector<24x72xf32>
    %52 = tpu.matmul %49, %51, %cst_48 {dimension_numbers = #tpu.dot_dimension_numbers<[1], [0], [0], [1], [0, 0, 1, 1], [], []>} : vector<24x144xf32>, vector<144x72xf32>, vector<24x72xf32> -> vector<24x72xf32>
    %c1_49 = arith.constant 1 : index
    %c0_50 = arith.constant 0 : index
    %c0_51 = arith.constant 0 : index
    %53 = vector.load %arg9[%c1_49, %c0_50, %c0_51] : memref<2x144x72xf32, #tpu.memory_space<vmem>>, vector<1x144x72xf32>
    %54 = vector.shape_cast %53 : vector<1x144x72xf32> to vector<144x72xf32>
    %cst_52 = arith.constant dense<0.000000e+00> : vector<24x72xf32>
    %55 = tpu.matmul %49, %54, %cst_52 {dimension_numbers = #tpu.dot_dimension_numbers<[1], [0], [0], [1], [0, 0, 1, 1], [], []>} : vector<24x144xf32>, vector<144x72xf32>, vector<24x72xf32> -> vector<24x72xf32>
    %56 = arith.maximumf %52, %55 : vector<24x72xf32>
    %c0_53 = arith.constant 0 : index
    %c0_54 = arith.constant 0 : index
    %c0_55 = arith.constant 0 : index
    %57 = vector.load %arg10[%c0_53, %c0_54, %c0_55] : memref<3x8x24xf32, #tpu.memory_space<vmem>>, vector<1x8x24xf32>
    %58 = vector.shape_cast %57 : vector<1x8x24xf32> to vector<8x24xf32>
    %cst_56 = arith.constant dense<0.000000e+00> : vector<8x72xf32>
    %59 = tpu.matmul %58, %56, %cst_56 {dimension_numbers = #tpu.dot_dimension_numbers<[1], [0], [0], [1], [0, 0, 1, 1], [], []>} : vector<8x24xf32>, vector<24x72xf32>, vector<8x72xf32> -> vector<8x72xf32>
    %c0_57 = arith.constant 0 : index
    %c0_58 = arith.constant 0 : index
    %c0_59 = arith.constant 0 : index
    %60 = vector.load %arg11[%c0_57, %c0_58, %c0_59] : memref<3x72x200xf32, #tpu.memory_space<vmem>>, vector<1x72x200xf32>
    %61 = vector.shape_cast %60 : vector<1x72x200xf32> to vector<72x200xf32>
    %cst_60 = arith.constant dense<0.000000e+00> : vector<8x200xf32>
    %62 = tpu.matmul %59, %61, %cst_60 {dimension_numbers = #tpu.dot_dimension_numbers<[1], [0], [0], [1], [0, 0, 1, 1], [], []>} : vector<8x72xf32>, vector<72x200xf32>, vector<8x200xf32> -> vector<8x200xf32>
    %c1_61 = arith.constant 1 : index
    %c0_62 = arith.constant 0 : index
    %c0_63 = arith.constant 0 : index
    %63 = vector.load %arg10[%c1_61, %c0_62, %c0_63] : memref<3x8x24xf32, #tpu.memory_space<vmem>>, vector<1x8x24xf32>
    %64 = vector.shape_cast %63 : vector<1x8x24xf32> to vector<8x24xf32>
    %cst_64 = arith.constant dense<0.000000e+00> : vector<8x72xf32>
    %65 = tpu.matmul %64, %56, %cst_64 {dimension_numbers = #tpu.dot_dimension_numbers<[1], [0], [0], [1], [0, 0, 1, 1], [], []>} : vector<8x24xf32>, vector<24x72xf32>, vector<8x72xf32> -> vector<8x72xf32>
    %c1_65 = arith.constant 1 : index
    %c0_66 = arith.constant 0 : index
    %c0_67 = arith.constant 0 : index
    %66 = vector.load %arg11[%c1_65, %c0_66, %c0_67] : memref<3x72x200xf32, #tpu.memory_space<vmem>>, vector<1x72x200xf32>
    %67 = vector.shape_cast %66 : vector<1x72x200xf32> to vector<72x200xf32>
    %cst_68 = arith.constant dense<0.000000e+00> : vector<8x200xf32>
    %68 = tpu.matmul %65, %67, %cst_68 {dimension_numbers = #tpu.dot_dimension_numbers<[1], [0], [0], [1], [0, 0, 1, 1], [], []>} : vector<8x72xf32>, vector<72x200xf32>, vector<8x200xf32> -> vector<8x200xf32>
    %69 = arith.addf %62, %68 : vector<8x200xf32>
    %c2 = arith.constant 2 : index
    %c0_69 = arith.constant 0 : index
    %c0_70 = arith.constant 0 : index
    %70 = vector.load %arg10[%c2, %c0_69, %c0_70] : memref<3x8x24xf32, #tpu.memory_space<vmem>>, vector<1x8x24xf32>
    %71 = vector.shape_cast %70 : vector<1x8x24xf32> to vector<8x24xf32>
    %cst_71 = arith.constant dense<0.000000e+00> : vector<8x72xf32>
    %72 = tpu.matmul %71, %56, %cst_71 {dimension_numbers = #tpu.dot_dimension_numbers<[1], [0], [0], [1], [0, 0, 1, 1], [], []>} : vector<8x24xf32>, vector<24x72xf32>, vector<8x72xf32> -> vector<8x72xf32>
    %c2_72 = arith.constant 2 : index
    %c0_73 = arith.constant 0 : index
    %c0_74 = arith.constant 0 : index
    %73 = vector.load %arg11[%c2_72, %c0_73, %c0_74] : memref<3x72x200xf32, #tpu.memory_space<vmem>>, vector<1x72x200xf32>
    %74 = vector.shape_cast %73 : vector<1x72x200xf32> to vector<72x200xf32>
    %cst_75 = arith.constant dense<0.000000e+00> : vector<8x200xf32>
    %75 = tpu.matmul %72, %74, %cst_75 {dimension_numbers = #tpu.dot_dimension_numbers<[1], [0], [0], [1], [0, 0, 1, 1], [], []>} : vector<8x72xf32>, vector<72x200xf32>, vector<8x200xf32> -> vector<8x200xf32>
    %76 = arith.addf %69, %75 : vector<8x200xf32>
    %c0_76 = arith.constant 0 : index
    %c0_77 = arith.constant 0 : index
    %77 = vector.load %arg12[%c0_76, %c0_77] : memref<1x200xf32, #tpu.memory_space<vmem>>, vector<1x200xf32>
    %78 = vector.broadcast %77 : vector<1x200xf32> to vector<8x200xf32>
    %79 = arith.addf %76, %78 : vector<8x200xf32>
    %cst_78 = arith.constant 0.000000e+00 : f32
    %80 = vector.broadcast %cst_78 : f32 to vector<8x200xf32>
    %81 = arith.maximumf %79, %80 : vector<8x200xf32>
    %c0_79 = arith.constant 0 : index
    %c0_80 = arith.constant 0 : index
    %82 = vector.load %arg13[%c0_79, %c0_80] : memref<200x100xf32, #tpu.memory_space<vmem>>, vector<200x100xf32>
    %cst_81 = arith.constant dense<0.000000e+00> : vector<8x100xf32>
    %83 = tpu.matmul %81, %82, %cst_81 {dimension_numbers = #tpu.dot_dimension_numbers<[1], [0], [0], [1], [0, 0, 1, 1], [], []>} : vector<8x200xf32>, vector<200x100xf32>, vector<8x100xf32> -> vector<8x100xf32>
    %c0_82 = arith.constant 0 : index
    %c0_83 = arith.constant 0 : index
    %84 = vector.load %arg14[%c0_82, %c0_83] : memref<1x100xf32, #tpu.memory_space<vmem>>, vector<1x100xf32>
    %85 = vector.broadcast %84 : vector<1x100xf32> to vector<8x100xf32>
    %86 = arith.addf %83, %85 : vector<8x100xf32>
    %cst_84 = arith.constant 0.000000e+00 : f32
    %87 = vector.broadcast %cst_84 : f32 to vector<8x100xf32>
    %88 = arith.maximumf %86, %87 : vector<8x100xf32>
    %c0_85 = arith.constant 0 : index
    %c0_86 = arith.constant 0 : index
    %89 = vector.load %arg15[%c0_85, %c0_86] : memref<100x128xf32, #tpu.memory_space<vmem>>, vector<100x128xf32>
    %cst_87 = arith.constant dense<0.000000e+00> : vector<8x128xf32>
    %90 = tpu.matmul %88, %89, %cst_87 {dimension_numbers = #tpu.dot_dimension_numbers<[1], [0], [0], [1], [0, 0, 1, 1], [], []>} : vector<8x100xf32>, vector<100x128xf32>, vector<8x128xf32> -> vector<8x128xf32>
    %c0_88 = arith.constant 0 : index
    %c0_89 = arith.constant 0 : index
    %91 = vector.load %arg16[%c0_88, %c0_89] : memref<1x128xf32, #tpu.memory_space<vmem>>, vector<1x128xf32>
    %92 = vector.broadcast %91 : vector<1x128xf32> to vector<8x128xf32>
    %93 = arith.addf %90, %92 : vector<8x128xf32>
    %c0_90 = arith.constant 0 : index
    %c0_91 = arith.constant 0 : index
    %94 = vector.load %arg17[%c0_90, %c0_91] : memref<8x128xf32, #tpu.memory_space<vmem>>, vector<8x128xf32>
    tpu.vector_store %arg17[%c0_90, %c0_91], %93 {strides = array<i32>} : memref<8x128xf32, #tpu.memory_space<vmem>>, vector<8x128xf32>,
    return
  }
  func.func @transform_0(%arg0: i32) -> (i32, i32) {
    %c0_i32 = arith.constant 0 : i32
    %c0_i32_0 = arith.constant 0 : i32
    return %arg0, %c0_i32 : i32, i32
  }
  func.func @transform_1(%arg0: i32) -> (i32, i32, i32) {
    %c0_i32 = arith.constant 0 : i32
    %c0_i32_0 = arith.constant 0 : i32
    %c0_i32_1 = arith.constant 0 : i32
    %c0_i32_2 = arith.constant 0 : i32
    return %c0_i32, %c0_i32_0, %c0_i32_1 : i32, i32, i32
  }
  func.func @transform_2(%arg0: i32) -> (i32, i32) {
    %c0_i32 = arith.constant 0 : i32
    %c0_i32_0 = arith.constant 0 : i32
    %c0_i32_1 = arith.constant 0 : i32
    return %c0_i32, %c0_i32_0 : i32, i32
  }
  func.func @transform_3(%arg0: i32) -> (i32, i32, i32) {
    %c0_i32 = arith.constant 0 : i32
    %c0_i32_0 = arith.constant 0 : i32
    %c0_i32_1 = arith.constant 0 : i32
    %c0_i32_2 = arith.constant 0 : i32
    return %c0_i32, %c0_i32_0, %c0_i32_1 : i32, i32, i32
  }
  func.func @transform_4(%arg0: i32) -> (i32, i32, i32) {
    %c0_i32 = arith.constant 0 : i32
    %c0_i32_0 = arith.constant 0 : i32
    %c0_i32_1 = arith.constant 0 : i32
    %c0_i32_2 = arith.constant 0 : i32
    return %c0_i32, %c0_i32_0, %c0_i32_1 : i32, i32, i32
  }
  func.func @transform_5(%arg0: i32) -> (i32, i32, i32) {
    %c0_i32 = arith.constant 0 : i32
    %c0_i32_0 = arith.constant 0 : i32
    %c0_i32_1 = arith.constant 0 : i32
    %c0_i32_2 = arith.constant 0 : i32
    return %c0_i32, %c0_i32_0, %c0_i32_1 : i32, i32, i32
  }
  func.func @transform_6(%arg0: i32) -> (i32, i32) {
    %c0_i32 = arith.constant 0 : i32
    %c0_i32_0 = arith.constant 0 : i32
    %c0_i32_1 = arith.constant 0 : i32
    return %c0_i32, %c0_i32_0 : i32, i32
  }
  func.func @transform_7(%arg0: i32) -> (i32, i32, i32) {
    %c0_i32 = arith.constant 0 : i32
    %c0_i32_0 = arith.constant 0 : i32
    %c0_i32_1 = arith.constant 0 : i32
    %c0_i32_2 = arith.constant 0 : i32
    return %c0_i32, %c0_i32_0, %c0_i32_1 : i32, i32, i32
  }
  func.func @transform_8(%arg0: i32) -> (i32, i32, i32) {
    %c0_i32 = arith.constant 0 : i32
    %c0_i32_0 = arith.constant 0 : i32
    %c0_i32_1 = arith.constant 0 : i32
    %c0_i32_2 = arith.constant 0 : i32
    return %c0_i32, %c0_i32_0, %c0_i32_1 : i32, i32, i32
  }
  func.func @transform_9(%arg0: i32) -> (i32, i32, i32) {
    %c0_i32 = arith.constant 0 : i32
    %c0_i32_0 = arith.constant 0 : i32
    %c0_i32_1 = arith.constant 0 : i32
    %c0_i32_2 = arith.constant 0 : i32
    return %c0_i32, %c0_i32_0, %c0_i32_1 : i32, i32, i32
  }
  func.func @transform_10(%arg0: i32) -> (i32, i32, i32) {
    %c0_i32 = arith.constant 0 : i32
    %c0_i32_0 = arith.constant 0 : i32
    %c0_i32_1 = arith.constant 0 : i32
    %c0_i32_2 = arith.constant 0 : i32
    return %c0_i32, %c0_i32_0, %c0_i32_1 : i32, i32, i32
  }
  func.func @transform_11(%arg0: i32) -> (i32, i32) {
    %c0_i32 = arith.constant 0 : i32
    %c0_i32_0 = arith.constant 0 : i32
    %c0_i32_1 = arith.constant 0 : i32
    return %c0_i32, %c0_i32_0 : i32, i32
  }
  func.func @transform_12(%arg0: i32) -> (i32, i32) {
    %c0_i32 = arith.constant 0 : i32
    %c0_i32_0 = arith.constant 0 : i32
    %c0_i32_1 = arith.constant 0 : i32
    return %c0_i32, %c0_i32_0 : i32, i32
  }
  func.func @transform_13(%arg0: i32) -> (i32, i32) {
    %c0_i32 = arith.constant 0 : i32
    %c0_i32_0 = arith.constant 0 : i32
    %c0_i32_1 = arith.constant 0 : i32
    return %c0_i32, %c0_i32_0 : i32, i32
  }
  func.func @transform_14(%arg0: i32) -> (i32, i32) {
    %c0_i32 = arith.constant 0 : i32
    %c0_i32_0 = arith.constant 0 : i32
    %c0_i32_1 = arith.constant 0 : i32
    return %c0_i32, %c0_i32_0 : i32, i32
  }
  func.func @transform_15(%arg0: i32) -> (i32, i32) {
    %c0_i32 = arith.constant 0 : i32
    %c0_i32_0 = arith.constant 0 : i32
    %c0_i32_1 = arith.constant 0 : i32
    return %c0_i32, %c0_i32_0 : i32, i32
  }
  func.func @transform_16(%arg0: i32) -> (i32, i32) {
    %c0_i32 = arith.constant 0 : i32
    %c0_i32_0 = arith.constant 0 : i32
    return %arg0, %c0_i32 : i32, i32
  }
}

</mosaic_0001>

<llo_original>
// kernel: _lambda_.1
$region0: #{_lambda_.1}
  #allocation0 [shape = 'u32[]', space=smem, size = 0x4, offset = 0x4, fixed_abs, tag = 'smem constant byte address 0x4 - core index']
  #allocation1 [shape = 'u32[144,128]{1,0:T(1,128)}', space=vmem, size = 0x12000, scoped, tag = 'internal scratch']
  %s0 = inlined_call_operand.vmem [shape: f32[256,48], index: 0, kind: input, shape index: {}]
  %s1 = inlined_call_operand.vmem [shape: f32[2,48,180], index: 1, kind: input, shape index: {}]
  %s2 = inlined_call_operand.vmem [shape: f32[1,180], index: 2, kind: input, shape index: {}]
  %s3 = inlined_call_operand.vmem [shape: f32[2,56,127], index: 3, kind: input, shape index: {}]
  %s4 = inlined_call_operand.vmem [shape: f32[2,180,84], index: 4, kind: input, shape index: {}]
  %s5 = inlined_call_operand.vmem [shape: f32[2,84,144], index: 5, kind: input, shape index: {}]
  %s6 = inlined_call_operand.vmem [shape: f32[1,144], index: 6, kind: input, shape index: {}]
  %s7 = inlined_call_operand.vmem [shape: f32[2,24,55], index: 7, kind: input, shape index: {}]
  %s8 = inlined_call_operand.vmem [shape: f32[2,144,72], index: 8, kind: input, shape index: {}]
  %s9 = inlined_call_operand.vmem [shape: f32[3,8,24], index: 9, kind: input, shape index: {}]
  %s10 = inlined_call_operand.vmem [shape: f32[3,72,200], index: 10, kind: input, shape index: {}]
  %s11 = inlined_call_operand.vmem [shape: f32[1,200], index: 11, kind: input, shape index: {}]
  %s12 = inlined_call_operand.vmem [shape: f32[200,100], index: 12, kind: input, shape index: {}]
  %s13 = inlined_call_operand.vmem [shape: f32[1,100], index: 13, kind: input, shape index: {}]
  %s14 = inlined_call_operand.vmem [shape: f32[100,128], index: 14, kind: input, shape index: {}]
  %s15 = inlined_call_operand.vmem [shape: f32[1,128], index: 15, kind: input, shape index: {}]
  %s16 = inlined_call_operand.vmem [shape: f32[16,128], index: 16, kind: output, shape index: {}]
  %s17 = sld [smem:[#allocation0]]
  $region97: #{_lambda_.1} parent=0
    _
  %s19 = ssub.s32 1, %s17
  %s20 = scalar_select 0, %s19, %s17
  loop: start=0, step=1, limit=4
  $region2: #{_lambda_.1} parent=0 // loop_pre_header
    _
  $region3: #{_lambda_.1} parent=0 // loop_header
    %s22 = sphi 0, %s26
    %p23 = scmp.ge.s32.totalorder %s22, 4
    %s32 = sphi 0, %s34
    %s35 = sphi 0, %s32
    %s36 = sphi 0, %s35
    %s52 = sphi 0, %s36
    %s56 = sphi 0, %s56
    %s58 = sphi 0, %s56
    %s59 = sphi 0, %s58
    %s73 = sphi 0, %s59
    %s77 = sphi 0, %s77
    %s79 = sphi 0, %s77
    %s80 = sphi 0, %s79
    %s94 = sphi 0, %s80
    %s98 = sphi 0, %s98
    %s100 = sphi 0, %s98
    %s101 = sphi 0, %s100
    %s115 = sphi 0, %s101
    %s119 = sphi 0, %s119
    %s121 = sphi 0, %s119
    %s122 = sphi 0, %s121
    %s136 = sphi 0, %s122
    %s140 = sphi 0, %s140
    %s142 = sphi 0, %s140
    %s143 = sphi 0, %s142
    %s157 = sphi 0, %s143
    %s161 = sphi 0, %s161
    %s163 = sphi 0, %s161
    %s164 = sphi 0, %s163
    %s178 = sphi 0, %s164
    %s182 = sphi 0, %s182
    %s184 = sphi 0, %s182
    %s185 = sphi 0, %s184
    %s199 = sphi 0, %s185
    %s203 = sphi 0, %s203
    %s205 = sphi 0, %s203
    %s206 = sphi 0, %s205
    %s220 = sphi 0, %s206
    %s224 = sphi 0, %s224
    %s226 = sphi 0, %s224
    %s227 = sphi 0, %s226
    %s241 = sphi 0, %s227
    %s245 = sphi 0, %s245
    %s247 = sphi 0, %s245
    %s248 = sphi 0, %s247
    %s262 = sphi 0, %s248
    %s266 = sphi 0, %s266
    %s268 = sphi 0, %s266
    %s269 = sphi 0, %s268
    %s283 = sphi 0, %s269
    %s287 = sphi 0, %s287
    %s289 = sphi 0, %s287
    %s290 = sphi 0, %s289
    %s304 = sphi 0, %s290
    %s308 = sphi 0, %s308
    %s310 = sphi 0, %s308
    %s311 = sphi 0, %s310
    %s325 = sphi 0, %s311
    %s329 = sphi 0, %s329
    %s331 = sphi 0, %s329
    %s332 = sphi 0, %s331
    %s346 = sphi 0, %s332
    %s350 = sphi 0, %s350
    %s352 = sphi 0, %s350
    %s353 = sphi 0, %s352
    %s367 = sphi 0, %s353
    %s373 = sphi 0, %s375
    %s376 = sphi 0, %s373
    %s377 = sphi 0, %s376
    %s393 = sphi 0, %s377
  $region4: #{_lambda_.1} parent=0 // loop_header_branch
    %25 = sbr.rel (%p23) target = $region8
  $region5: #{_lambda_.1} parent=0 // loop_body
    %s27 = ssub.s32 %s22, 1
    %s28 = ssub.s32 %s22, 2
    %s29 = sadd.s32 %s22, 1
    %s30 = ssub.s32 %s22, %s29
    %p31 = scmp.eq.s32.totalorder %s30, 0
    %s33 = sadd.s32 %s32, 1
    %s34 = scalar_select %p31, %s32, %s33
    %p37 = pneg %p31
    %p38 = scmp.eq.s32.totalorder %s22, 1
    %p39 = por %p37, %p38
    %p40 = scmp.ne.s32.totalorder %s32, %s35
    %p41 = scmp.eq.s32.totalorder %s22, 0
    %p42 = por %p40, %p41
    %p43 = scmp.ne.s32.totalorder %s32, %s35
    %p44 = scmp.eq.s32.totalorder %s27, 1
    %p45 = por %p43, %p44
    %p46 = scmp.ne.s32.totalorder %s35, %s36
    %p47 = scmp.eq.s32.totalorder %s27, 0
    %p48 = por %p46, %p47
    %p49 = scmp.ne.s32.totalorder %s35, %s36
    %p50 = scmp.eq.s32.totalorder %s28, 1
    %p51 = por %p49, %p50
    %p53 = scmp.ne.s32.totalorder %s36, %s52
    %p54 = scmp.eq.s32.totalorder %s28, 0
    %p55 = por %p53, %p54
    %s57 = sadd.s32 %s56, 1
    %p60 = scmp.eq.s32.totalorder %s22, 1
    %p61 = scmp.ne.s32.totalorder %s56, %s58
    %p62 = scmp.eq.s32.totalorder %s22, 0
    %p63 = por %p61, %p62
    %p64 = scmp.ne.s32.totalorder %s56, %s58
    %p65 = scmp.eq.s32.totalorder %s27, 1
    %p66 = por %p64, %p65
    %p67 = scmp.ne.s32.totalorder %s58, %s59
    %p68 = scmp.eq.s32.totalorder %s27, 0
    %p69 = por %p67, %p68
    %p70 = scmp.ne.s32.totalorder %s58, %s59
    %p71 = scmp.eq.s32.totalorder %s28, 1
    %p72 = por %p70, %p71
    %p74 = scmp.ne.s32.totalorder %s59, %s73
    %p75 = scmp.eq.s32.totalorder %s28, 0
    %p76 = por %p74, %p75
    %s78 = sadd.s32 %s77, 1
    %p81 = scmp.eq.s32.totalorder %s22, 1
    %p82 = scmp.ne.s32.totalorder %s77, %s79
    %p83 = scmp.eq.s32.totalorder %s22, 0
    %p84 = por %p82, %p83
    %p85 = scmp.ne.s32.totalorder %s77, %s79
    %p86 = scmp.eq.s32.totalorder %s27, 1
    %p87 = por %p85, %p86
    %p88 = scmp.ne.s32.totalorder %s79, %s80
    %p89 = scmp.eq.s32.totalorder %s27, 0
    %p90 = por %p88, %p89
    %p91 = scmp.ne.s32.totalorder %s79, %s80
    %p92 = scmp.eq.s32.totalorder %s28, 1
    %p93 = por %p91, %p92
    %p95 = scmp.ne.s32.totalorder %s80, %s94
    %p96 = scmp.eq.s32.totalorder %s28, 0
    %p97 = por %p95, %p96
    %s99 = sadd.s32 %s98, 1
    %p102 = scmp.eq.s32.totalorder %s22, 1
    %p103 = scmp.ne.s32.totalorder %s98, %s100
    %p104 = scmp.eq.s32.totalorder %s22, 0
    %p105 = por %p103, %p104
    %p106 = scmp.ne.s32.totalorder %s98, %s100
    %p107 = scmp.eq.s32.totalorder %s27, 1
    %p108 = por %p106, %p107
    %p109 = scmp.ne.s32.totalorder %s100, %s101
    %p110 = scmp.eq.s32.totalorder %s27, 0
    %p111 = por %p109, %p110
    %p112 = scmp.ne.s32.totalorder %s100, %s101
    %p113 = scmp.eq.s32.totalorder %s28, 1
    %p114 = por %p112, %p113
    %p116 = scmp.ne.s32.totalorder %s101, %s115
    %p117 = scmp.eq.s32.totalorder %s28, 0
    %p118 = por %p116, %p117
    %s120 = sadd.s32 %s119, 1
    %p123 = scmp.eq.s32.totalorder %s22, 1
    %p124 = scmp.ne.s32.totalorder %s119, %s121
    %p125 = scmp.eq.s32.totalorder %s22, 0
    %p126 = por %p124, %p125
    %p127 = scmp.ne.s32.totalorder %s119, %s121
    %p128 = scmp.eq.s32.totalorder %s27, 1
    %p129 = por %p127, %p128
    %p130 = scmp.ne.s32.totalorder %s121, %s122
    %p131 = scmp.eq.s32.totalorder %s27, 0
    %p132 = por %p130, %p131
    %p133 = scmp.ne.s32.totalorder %s121, %s122
    %p134 = scmp.eq.s32.totalorder %s28, 1
    %p135 = por %p133, %p134
    %p137 = scmp.ne.s32.totalorder %s122, %s136
    %p138 = scmp.eq.s32.totalorder %s28, 0
    %p139 = por %p137, %p138
    %s141 = sadd.s32 %s140, 1
    %p144 = scmp.eq.s32.totalorder %s22, 1
    %p145 = scmp.ne.s32.totalorder %s140, %s142
    %p146 = scmp.eq.s32.totalorder %s22, 0
    %p147 = por %p145, %p146
    %p148 = scmp.ne.s32.totalorder %s140, %s142
    %p149 = scmp.eq.s32.totalorder %s27, 1
    %p150 = por %p148, %p149
    %p151 = scmp.ne.s32.totalorder %s142, %s143
    %p152 = scmp.eq.s32.totalorder %s27, 0
    %p153 = por %p151, %p152
    %p154 = scmp.ne.s32.totalorder %s142, %s143
    %p155 = scmp.eq.s32.totalorder %s28, 1
    %p156 = por %p154, %p155
    %p158 = scmp.ne.s32.totalorder %s143, %s157
    %p159 = scmp.eq.s32.totalorder %s28, 0
    %p160 = por %p158, %p159
    %s162 = sadd.s32 %s161, 1
    %p165 = scmp.eq.s32.totalorder %s22, 1
    %p166 = scmp.ne.s32.totalorder %s161, %s163
    %p167 = scmp.eq.s32.totalorder %s22, 0
    %p168 = por %p166, %p167
    %p169 = scmp.ne.s32.totalorder %s161, %s163
    %p170 = scmp.eq.s32.totalorder %s27, 1
    %p171 = por %p169, %p170
    %p172 = scmp.ne.s32.totalorder %s163, %s164
    %p173 = scmp.eq.s32.totalorder %s27, 0
    %p174 = por %p172, %p173
    %p175 = scmp.ne.s32.totalorder %s163, %s164
    %p176 = scmp.eq.s32.totalorder %s28, 1
    %p177 = por %p175, %p176
    %p179 = scmp.ne.s32.totalorder %s164, %s178
    %p180 = scmp.eq.s32.totalorder %s28, 0
    %p181 = por %p179, %p180
    %s183 = sadd.s32 %s182, 1
    %p186 = scmp.eq.s32.totalorder %s22, 1
    %p187 = scmp.ne.s32.totalorder %s182, %s184
    %p188 = scmp.eq.s32.totalorder %s22, 0
    %p189 = por %p187, %p188
    %p190 = scmp.ne.s32.totalorder %s182, %s184
    %p191 = scmp.eq.s32.totalorder %s27, 1
    %p192 = por %p190, %p191
    %p193 = scmp.ne.s32.totalorder %s184, %s185
    %p194 = scmp.eq.s32.totalorder %s27, 0
    %p195 = por %p193, %p194
    %p196 = scmp.ne.s32.totalorder %s184, %s185
    %p197 = scmp.eq.s32.totalorder %s28, 1
    %p198 = por %p196, %p197
    %p200 = scmp.ne.s32.totalorder %s185, %s199
    %p201 = scmp.eq.s32.totalorder %s28, 0
    %p202 = por %p200, %p201
    %s204 = sadd.s32 %s203, 1
    %p207 = scmp.eq.s32.totalorder %s22, 1
    %p208 = scmp.ne.s32.totalorder %s203, %s205
    %p209 = scmp.eq.s32.totalorder %s22, 0
    %p210 = por %p208, %p209
    %p211 = scmp.ne.s32.totalorder %s203, %s205
    %p212 = scmp.eq.s32.totalorder %s27, 1
    %p213 = por %p211, %p212
    %p214 = scmp.ne.s32.totalorder %s205, %s206
    %p215 = scmp.eq.s32.totalorder %s27, 0
    %p216 = por %p214, %p215
    %p217 = scmp.ne.s32.totalorder %s205, %s206
    %p218 = scmp.eq.s32.totalorder %s28, 1
    %p219 = por %p217, %p218
    %p221 = scmp.ne.s32.totalorder %s206, %s220
    %p222 = scmp.eq.s32.totalorder %s28, 0
    %p223 = por %p221, %p222
    %s225 = sadd.s32 %s224, 1
    %p228 = scmp.eq.s32.totalorder %s22, 1
    %p229 = scmp.ne.s32.totalorder %s224, %s226
    %p230 = scmp.eq.s32.totalorder %s22, 0
    %p231 = por %p229, %p230
    %p232 = scmp.ne.s32.totalorder %s224, %s226
    %p233 = scmp.eq.s32.totalorder %s27, 1
    %p234 = por %p232, %p233
    %p235 = scmp.ne.s32.totalorder %s226, %s227
    %p236 = scmp.eq.s32.totalorder %s27, 0
    %p237 = por %p235, %p236
    %p238 = scmp.ne.s32.totalorder %s226, %s227
    %p239 = scmp.eq.s32.totalorder %s28, 1
    %p240 = por %p238, %p239
    %p242 = scmp.ne.s32.totalorder %s227, %s241
    %p243 = scmp.eq.s32.totalorder %s28, 0
    %p244 = por %p242, %p243
    %s246 = sadd.s32 %s245, 1
    %p249 = scmp.eq.s32.totalorder %s22, 1
    %p250 = scmp.ne.s32.totalorder %s245, %s247
    %p251 = scmp.eq.s32.totalorder %s22, 0
    %p252 = por %p250, %p251
    %p253 = scmp.ne.s32.totalorder %s245, %s247
    %p254 = scmp.eq.s32.totalorder %s27, 1
    %p255 = por %p253, %p254
    %p256 = scmp.ne.s32.totalorder %s247, %s248
    %p257 = scmp.eq.s32.totalorder %s27, 0
    %p258 = por %p256, %p257
    %p259 = scmp.ne.s32.totalorder %s247, %s248
    %p260 = scmp.eq.s32.totalorder %s28, 1
    %p261 = por %p259, %p260
    %p263 = scmp.ne.s32.totalorder %s248, %s262
    %p264 = scmp.eq.s32.totalorder %s28, 0
    %p265 = por %p263, %p264
    %s267 = sadd.s32 %s266, 1
    %p270 = scmp.eq.s32.totalorder %s22, 1
    %p271 = scmp.ne.s32.totalorder %s266, %s268
    %p272 = scmp.eq.s32.totalorder %s22, 0
    %p273 = por %p271, %p272
    %p274 = scmp.ne.s32.totalorder %s266, %s268
    %p275 = scmp.eq.s32.totalorder %s27, 1
    %p276 = por %p274, %p275
    %p277 = scmp.ne.s32.totalorder %s268, %s269
    %p278 = scmp.eq.s32.totalorder %s27, 0
    %p279 = por %p277, %p278
    %p280 = scmp.ne.s32.totalorder %s268, %s269
    %p281 = scmp.eq.s32.totalorder %s28, 1
    %p282 = por %p280, %p281
    %p284 = scmp.ne.s32.totalorder %s269, %s283
    %p285 = scmp.eq.s32.totalorder %s28, 0
    %p286 = por %p284, %p285
    %s288 = sadd.s32 %s287, 1
    %p291 = scmp.eq.s32.totalorder %s22, 1
    %p292 = scmp.ne.s32.totalorder %s287, %s289
    %p293 = scmp.eq.s32.totalorder %s22, 0
    %p294 = por %p292, %p293
    %p295 = scmp.ne.s32.totalorder %s287, %s289
    %p296 = scmp.eq.s32.totalorder %s27, 1
    %p297 = por %p295, %p296
    %p298 = scmp.ne.s32.totalorder %s289, %s290
    %p299 = scmp.eq.s32.totalorder %s27, 0
    %p300 = por %p298, %p299
    %p301 = scmp.ne.s32.totalorder %s289, %s290
    %p302 = scmp.eq.s32.totalorder %s28, 1
    %p303 = por %p301, %p302
    %p305 = scmp.ne.s32.totalorder %s290, %s304
    %p306 = scmp.eq.s32.totalorder %s28, 0
    %p307 = por %p305, %p306
    %s309 = sadd.s32 %s308, 1
    %p312 = scmp.eq.s32.totalorder %s22, 1
    %p313 = scmp.ne.s32.totalorder %s308, %s310
    %p314 = scmp.eq.s32.totalorder %s22, 0
    %p315 = por %p313, %p314
    %p316 = scmp.ne.s32.totalorder %s308, %s310
    %p317 = scmp.eq.s32.totalorder %s27, 1
    %p318 = por %p316, %p317
    %p319 = scmp.ne.s32.totalorder %s310, %s311
    %p320 = scmp.eq.s32.totalorder %s27, 0
    %p321 = por %p319, %p320
    %p322 = scmp.ne.s32.totalorder %s310, %s311
    %p323 = scmp.eq.s32.totalorder %s28, 1
    %p324 = por %p322, %p323
    %p326 = scmp.ne.s32.totalorder %s311, %s325
    %p327 = scmp.eq.s32.totalorder %s28, 0
    %p328 = por %p326, %p327
    %s330 = sadd.s32 %s329, 1
    %p333 = scmp.eq.s32.totalorder %s22, 1
    %p334 = scmp.ne.s32.totalorder %s329, %s331
    %p335 = scmp.eq.s32.totalorder %s22, 0
    %p336 = por %p334, %p335
    %p337 = scmp.ne.s32.totalorder %s329, %s331
    %p338 = scmp.eq.s32.totalorder %s27, 1
    %p339 = por %p337, %p338
    %p340 = scmp.ne.s32.totalorder %s331, %s332
    %p341 = scmp.eq.s32.totalorder %s27, 0
    %p342 = por %p340, %p341
    %p343 = scmp.ne.s32.totalorder %s331, %s332
    %p344 = scmp.eq.s32.totalorder %s28, 1
    %p345 = por %p343, %p344
    %p347 = scmp.ne.s32.totalorder %s332, %s346
    %p348 = scmp.eq.s32.totalorder %s28, 0
    %p349 = por %p347, %p348
    %s351 = sadd.s32 %s350, 1
    %p354 = scmp.eq.s32.totalorder %s22, 1
    %p355 = scmp.ne.s32.totalorder %s350, %s352
    %p356 = scmp.eq.s32.totalorder %s22, 0
    %p357 = por %p355, %p356
    %p358 = scmp.ne.s32.totalorder %s350, %s352
    %p359 = scmp.eq.s32.totalorder %s27, 1
    %p360 = por %p358, %p359
    %p361 = scmp.ne.s32.totalorder %s352, %s353
    %p362 = scmp.eq.s32.totalorder %s27, 0
    %p363 = por %p361, %p362
    %p364 = scmp.ne.s32.totalorder %s352, %s353
    %p365 = scmp.eq.s32.totalorder %s28, 1
    %p366 = por %p364, %p365
    %p368 = scmp.ne.s32.totalorder %s353, %s367
    %p369 = scmp.eq.s32.totalorder %s28, 0
    %p370 = por %p368, %p369
    %s371 = ssub.s32 %s22, %s29
    %p372 = scmp.eq.s32.totalorder %s371, 0
    %s374 = sadd.s32 %s373, 1
    %s375 = scalar_select %p372, %s373, %s374
    %p378 = pneg %p372
    %p379 = scmp.eq.s32.totalorder %s22, 1
    %p380 = por %p378, %p379
    %p381 = scmp.ne.s32.totalorder %s373, %s376
    %p382 = scmp.eq.s32.totalorder %s22, 0
    %p383 = por %p381, %p382
    %p384 = scmp.ne.s32.totalorder %s373, %s376
    %p385 = scmp.eq.s32.totalorder %s27, 1
    %p386 = por %p384, %p385
    %p387 = scmp.ne.s32.totalorder %s376, %s377
    %p388 = scmp.eq.s32.totalorder %s27, 0
    %p389 = por %p387, %p388
    %p390 = scmp.ne.s32.totalorder %s376, %s377
    %p391 = scmp.eq.s32.totalorder %s28, 1
    %p392 = por %p390, %p391
    %p394 = scmp.ne.s32.totalorder %s377, %s393
    %p395 = scmp.eq.s32.totalorder %s28, 0
    %p396 = por %p394, %p395
    %p397 = scmp.le.s32.totalorder 1, %s22
    %p398 = scmp.lt.s32.totalorder %s22, 3
    %p399 = pnand %p397, %p398
    %p400 = pneg %p399
    // Predicated region
    $region9: #{_lambda_.1} parent=5 // pred_check
      _
    $region10: #{_lambda_.1} parent=5 // pred_check_branch
      %402 = sbr.rel (%p399) target = $region12
    $region11: #{_lambda_.1} parent=5 // pred_region
      %s403 = ssub.s32 %s22, 1
      // Predicated region
      $region13: #{_lambda_.1} parent=11 // pred_check
        %p404 = pneg %p69
      $region14: #{_lambda_.1} parent=11 // pred_check_branch
        %406 = sbr.rel (%p404) target = $region16
      $region15: #{_lambda_.1} parent=11 // pred_region
        _
      $region16: #{_lambda_.1} parent=11 // pred_fallthru
        _
      // Predicated region
      $region17: #{_lambda_.1} parent=11 // pred_check
        %p407 = pneg %p90
      $region18: #{_lambda_.1} parent=11 // pred_check_branch
        %409 = sbr.rel (%p407) target = $region20
      $region19: #{_lambda_.1} parent=11 // pred_region
        _
      $region20: #{_lambda_.1} parent=11 // pred_fallthru
        _
      // Predicated region
      $region21: #{_lambda_.1} parent=11 // pred_check
        %p410 = pneg %p111
      $region22: #{_lambda_.1} parent=11 // pred_check_branch
        %412 = sbr.rel (%p410) target = $region24
      $region23: #{_lambda_.1} parent=11 // pred_region
        _
      $region24: #{_lambda_.1} parent=11 // pred_fallthru
        _
      // Predicated region
      $region25: #{_lambda_.1} parent=11 // pred_check
        %p413 = pneg %p132
      $region26: #{_lambda_.1} parent=11 // pred_check_branch
        %415 = sbr.rel (%p413) target = $region28
      $region27: #{_lambda_.1} parent=11 // pred_region
        _
      $region28: #{_lambda_.1} parent=11 // pred_fallthru
        _
      // Predicated region
      $region29: #{_lambda_.1} parent=11 // pred_check
        %p416 = pneg %p153
      $region30: #{_lambda_.1} parent=11 // pred_check_branch
        %418 = sbr.rel (%p416) target = $region32
      $region31: #{_lambda_.1} parent=11 // pred_region
        _
      $region32: #{_lambda_.1} parent=11 // pred_fallthru
        _
      // Predicated region
      $region33: #{_lambda_.1} parent=11 // pred_check
        %p419 = pneg %p174
      $region34: #{_lambda_.1} parent=11 // pred_check_branch
        %421 = sbr.rel (%p419) target = $region36
      $region35: #{_lambda_.1} parent=11 // pred_region
        _
      $region36: #{_lambda_.1} parent=11 // pred_fallthru
        _
      // Predicated region
      $region37: #{_lambda_.1} parent=11 // pred_check
        %p422 = pneg %p195
      $region38: #{_lambda_.1} parent=11 // pred_check_branch
        %424 = sbr.rel (%p422) target = $region40
      $region39: #{_lambda_.1} parent=11 // pred_region
        _
      $region40: #{_lambda_.1} parent=11 // pred_fallthru
        _
      // Predicated region
      $region41: #{_lambda_.1} parent=11 // pred_check
        %p425 = pneg %p216
      $region42: #{_lambda_.1} parent=11 // pred_check_branch
        %427 = sbr.rel (%p425) target = $region44
      $region43: #{_lambda_.1} parent=11 // pred_region
        _
      $region44: #{_lambda_.1} parent=11 // pred_fallthru
        _
      // Predicated region
      $region45: #{_lambda_.1} parent=11 // pred_check
        %p428 = pneg %p237
      $region46: #{_lambda_.1} parent=11 // pred_check_branch
        %430 = sbr.rel (%p428) target = $region48
      $region47: #{_lambda_.1} parent=11 // pred_region
        _
      $region48: #{_lambda_.1} parent=11 // pred_fallthru
        _
      // Predicated region
      $region49: #{_lambda_.1} parent=11 // pred_check
        %p431 = pneg %p258
      $region50: #{_lambda_.1} parent=11 // pred_check_branch
        %433 = sbr.rel (%p431) target = $region52
      $region51: #{_lambda_.1} parent=11 // pred_region
        _
      $region52: #{_lambda_.1} parent=11 // pred_fallthru
        _
      // Predicated region
      $region53: #{_lambda_.1} parent=11 // pred_check
        %p434 = pneg %p279
      $region54: #{_lambda_.1} parent=11 // pred_check_branch
        %436 = sbr.rel (%p434) target = $region56
      $region55: #{_lambda_.1} parent=11 // pred_region
        _
      $region56: #{_lambda_.1} parent=11 // pred_fallthru
        _
      // Predicated region
      $region57: #{_lambda_.1} parent=11 // pred_check
        %p437 = pneg %p300
      $region58: #{_lambda_.1} parent=11 // pred_check_branch
        %439 = sbr.rel (%p437) target = $region60
      $region59: #{_lambda_.1} parent=11 // pred_region
        _
      $region60: #{_lambda_.1} parent=11 // pred_fallthru
        _
      // Predicated region
      $region61: #{_lambda_.1} parent=11 // pred_check
        %p440 = pneg %p321
      $region62: #{_lambda_.1} parent=11 // pred_check_branch
        %442 = sbr.rel (%p440) target = $region64
      $region63: #{_lambda_.1} parent=11 // pred_region
        _
      $region64: #{_lambda_.1} parent=11 // pred_fallthru
        _
      // Predicated region
      $region65: #{_lambda_.1} parent=11 // pred_check
        %p443 = pneg %p342
      $region66: #{_lambda_.1} parent=11 // pred_check_branch
        %445 = sbr.rel (%p443) target = $region68
      $region67: #{_lambda_.1} parent=11 // pred_region
        _
      $region68: #{_lambda_.1} parent=11 // pred_fallthru
        _
      // Predicated region
      $region69: #{_lambda_.1} parent=11 // pred_check
        %p446 = pneg %p363
      $region70: #{_lambda_.1} parent=11 // pred_check_branch
        %448 = sbr.rel (%p446) target = $region72
      $region71: #{_lambda_.1} parent=11 // pred_region
        _
      $region72: #{_lambda_.1} parent=11 // pred_fallthru
        _
    $region12: #{_lambda_.1} parent=5 // pred_fallthru
      _
    %p449 = scmp.lt.s32.totalorder %s22, 2
    // Predicated region
    $region73: #{_lambda_.1} parent=5 // pred_check
      %p450 = pneg %p449
    $region74: #{_lambda_.1} parent=5 // pred_check_branch
      %452 = sbr.rel (%p450) target = $region76
    $region75: #{_lambda_.1} parent=5 // pred_region
      // Predicated region
      $region77: #{_lambda_.1} parent=75 // pred_check
        %p453 = pneg %p42
      $region78: #{_lambda_.1} parent=75 // pred_check_branch
        %455 = sbr.rel (%p453) target = $region80
      $region79: #{_lambda_.1} parent=75 // pred_region
        %s456 = smul.u32 16, %s22
        %p457 = scmp.lt.s32.totalorder %s456, 31
        %s458 = scalar_select %p457, %s456, 31
        %s459 = smul.addr %s458, 8
        %s460 = scalar_lea.vmem %s0, %s459
        %s461 = smul.u32 16, %s22
      $region80: #{_lambda_.1} parent=75 // pred_fallthru
        _
    $region76: #{_lambda_.1} parent=5 // pred_fallthru
      _
    %p462 = scmp.le.s32.totalorder 1, %s22
    %p463 = scmp.lt.s32.totalorder %s22, 3
    %p464 = pnand %p462, %p463
    %p465 = pneg %p464
    // Predicated region
    $region81: #{_lambda_.1} parent=5 // pred_check
      _
    $region82: #{_lambda_.1} parent=5 // pred_check_branch
      %467 = sbr.rel (%p464) target = $region84
    $region83: #{_lambda_.1} parent=5 // pred_region
      %s468 = ssub.s32 %s22, 1
      %s469 = smul.u32 16, %s27
      %p470 = scmp.lt.s32.totalorder %s469, 31
      %s471 = scalar_select %p470, %s469, 31
      %s472 = smul.addr %s471, 8
      %s473 = scalar_lea.vmem %s0, %s472
      %p474 = pneg %p48
      %p475 = pneg %p45
      %p476 = pneg %p69
      %p477 = pneg %p66
      %p478 = pneg %p90
      %p479 = pneg %p87
      %p480 = pneg %p111
      %p481 = pneg %p108
      %p482 = pneg %p132
      %p483 = pneg %p129
      %p484 = pneg %p153
      %p485 = pneg %p150
      %p486 = pneg %p174
      %p487 = pneg %p171
      %p488 = pneg %p195
      %p489 = pneg %p192
      %p490 = pneg %p216
      %p491 = pneg %p213
      %p492 = pneg %p237
      %p493 = pneg %p234
      %p494 = pneg %p258
      %p495 = pneg %p255
      %p496 = pneg %p279
      %p497 = pneg %p276
      %p498 = pneg %p300
      %p499 = pneg %p297
      %p500 = pneg %p321
      %p501 = pneg %p318
      %p502 = pneg %p342
      %p503 = pneg %p339
      %p504 = pneg %p363
      %p505 = pneg %p360
      %p506 = pneg %p389
      %p507 = pneg %p386
      %p508 = scmp.lt.s32.totalorder %s27, 1
      %s509 = scalar_select %p508, %s27, 1
      %s510 = smul.addr %s509, 8
      %s511 = scalar_lea.vmem %s16, %s510
      %s512 = smul.u32 16, %s27
      %p513 = scmp.lt.s32.totalorder %s512, 31
      %s514 = scalar_select %p513, %s512, 31
      %s515 = smul.addr %s514, 8
      %s516 = scalar_lea.vmem %s0, %s515
      %s517 = smul.u32 16, %s27
      %p518 = scmp.lt.s32.totalorder %s27, 1
      %s519 = scalar_select %p518, %s27, 1
      %s520 = smul.addr %s519, 8
      %s521 = scalar_lea.vmem %s16, %s520
      %v522 = vld [vmem:[%s516] sm:$0xff]
      %v523 = vld [vmem:[%s516 + $0x8] sm:$0xff]
      %v524 = vld [vmem:[%s516 + $0x10] sm:$0xff]
      %v525 = vld [vmem:[%s516 + $0x18] sm:$0xff]
      %v526 = vld [vmem:[%s516 + $0x20] sm:$0xff]
      %v527 = vld [vmem:[%s516 + $0x28] sm:$0xff]
      %v528 = vld [vmem:[%s516 + $0x30] sm:$0xff]
      %v529 = vld [vmem:[%s516 + $0x38] sm:$0xff]
      %v530 = vld [vmem:[%s516 + $0x40] sm:$0xff]
      %v531 = vld [vmem:[%s516 + $0x48] sm:$0xff]
      %v532 = vld [vmem:[%s516 + $0x50] sm:$0xff]
      %v533 = vld [vmem:[%s516 + $0x58] sm:$0xff]
      %v534 = vld [vmem:[%s516 + $0x60] sm:$0xff]
      %v535 = vld [vmem:[%s516 + $0x68] sm:$0xff]
      %v536 = vld [vmem:[%s516 + $0x70] sm:$0xff]
      %v537 = vld [vmem:[%s516 + $0x78] sm:$0xff]
      %v538 = vld [vmem:[%s1] sm:$0xff]
      %v539 = vld [vmem:[%s1 + $0x8] sm:$0xff]
      %v540 = vld [vmem:[%s1 + $0x10] sm:$0xff]
      %v541 = vld [vmem:[%s1 + $0x18] sm:$0xff]
      %v542 = vld [vmem:[%s1 + $0x20] sm:$0xff]
      %v543 = vld [vmem:[%s1 + $0x28] sm:$0xff]
      %v544 = vld [vmem:[%s1 + $0x30] sm:$0xff]
      %v545 = vld [vmem:[%s1 + $0x38] sm:$0xff]
      %v546 = vld [vmem:[%s1 + $0x40] sm:$0xff]
      %v547 = vld [vmem:[%s1 + $0x48] sm:$0xff]
      %v548 = vld [vmem:[%s1 + $0x50] sm:$0xff]
      %v549 = vld [vmem:[%s1 + $0x58] sm:$0xff]
      %s550 = scalar_lea.vmem %s1, 96
      %v551 = vld [vmem:[%s550] sm:$0xff]
      %v552 = vld [vmem:[%s550 + $0x8] sm:$0xff]
      %v553 = vld [vmem:[%s550 + $0x10] sm:$0xff]
      %v554 = vld [vmem:[%s550 + $0x18] sm:$0xff]
      %v555 = vld [vmem:[%s550 + $0x20] sm:$0xff]
      %v556 = vld [vmem:[%s550 + $0x28] sm:$0xff]
      %v557 = vld [vmem:[%s550 + $0x30] sm:$0xff]
      %v558 = vld [vmem:[%s550 + $0x38] sm:$0xff]
      %v559 = vld [vmem:[%s550 + $0x40] sm:$0xff]
      %v560 = vld [vmem:[%s550 + $0x48] sm:$0xff]
      %v561 = vld [vmem:[%s550 + $0x50] sm:$0xff]
      %v562 = vld [vmem:[%s550 + $0x58] sm:$0xff]
      %vm579 = vcmask 1046528
      %v580 = vrot.slane %v522, 1
      %v581 = vrot.slane %v523, 1
      %v582 = vsel %vm579, %v580, %v581
      %v583 = vrot.slane %v524, 1
      %v584 = vsel %vm579, %v581, %v583
      %v585 = vrot.slane %v525, 1
      %v586 = vsel %vm579, %v583, %v585
      %v587 = vrot.slane %v526, 1
      %v588 = vsel %vm579, %v585, %v587
      %v589 = vrot.slane %v527, 1
      %v590 = vsel %vm579, %v587, %v589
      %v591 = vrot.slane %v528, 1
      %v592 = vsel %vm579, %v589, %v591
      %v593 = vrot.slane %v529, 1
      %v594 = vsel %vm579, %v591, %v593
      %v595 = vrot.slane %v530, 1
      %v596 = vsel %vm579, %v593, %v595
      %v597 = vrot.slane %v531, 1
      %v598 = vsel %vm579, %v595, %v597
      %v599 = vrot.slane %v532, 1
      %v600 = vsel %vm579, %v597, %v599
      %v601 = vrot.slane %v533, 1
      %v602 = vsel %vm579, %v599, %v601
      %v603 = vrot.slane %v534, 1
      %v604 = vsel %vm579, %v601, %v603
      %v605 = vrot.slane %v535, 1
      %v606 = vsel %vm579, %v603, %v605
      %v607 = vrot.slane %v536, 1
      %v608 = vsel %vm579, %v605, %v607
      %v609 = vrot.slane %v537, 1
      %v610 = vsel %vm579, %v607, %v609
      %vm611 = vcmask 392192
      %v612 = vsel %vm611, %v582, 0
      %v614 = vsel %vm611, %v584, 0
      %v616 = vsel %vm611, %v586, 0
      %v618 = vsel %vm611, %v588, 0
      %v620 = vsel %vm611, %v590, 0
      %v622 = vsel %vm611, %v592, 0
      %v624 = vsel %vm611, %v594, 0
      %v626 = vsel %vm611, %v596, 0
      %v628 = vsel %vm611, %v598, 0
      %v630 = vsel %vm611, %v600, 0
      %v632 = vsel %vm611, %v602, 0
      %v634 = vsel %vm611, %v604, 0
      %v636 = vsel %vm611, %v606, 0
      %v638 = vsel %vm611, %v608, 0
      %v640 = vsel %vm611, %v610, 0
      %v642 = vsel %vm611, %v609, 0
      %644 = vmatprep.subr.mxu0 %v552
      %645 = vmatpush1.msra.mxu0 %v551
      %646 = vmatprep.subr.mxu0 %v554
      %647 = vmatpush1.msra.mxu0 %v553
      %648 = vmatprep.subr.mxu0 %v556
      %649 = vmatpush1.msra.mxu0 %v555
      %650 = vmatprep.subr.mxu0 %v558
      %651 = vmatpush1.msra.mxu0 %v557
      %652 = vmatprep.subr.mxu0 %v560
      %653 = vmatpush1.msra.mxu0 %v559
      %654 = vmatprep.subr.mxu0 %v562
      %655 = vmatpush1.msra.mxu0 %v561
      %656 = vmatprep.subr.mxu0 0.0
      %657 = vmatpush1.msra.mxu0 0.0
      %658 = vmatprep.subr.mxu0 0.0
      %659 = vmatpush1.msra.mxu0 0.0
      %660 = vmatprep.subr.mxu0 0.0
      %661 = vmatpush1.msra.mxu0 0.0
      %662 = vmatprep.subr.mxu0 0.0
      %663 = vmatpush1.msra.mxu0 0.0
      %664 = vmatprep.subr.mxu0 0.0
      %665 = vmatpush1.msra.mxu0 0.0
      %666 = vmatprep.subr.mxu0 0.0
      %667 = vmatpush1.msra.mxu0 0.0
      %668 = vmatprep.subr.mxu0 0.0
      %669 = vmatpush1.msra.mxu0 0.0
      %670 = vmatprep.subr.mxu0 0.0
      %671 = vmatpush1.msra.mxu0 0.0
      %672 = vmatprep.subr.mxu0 0.0
      %673 = vmatpush1.msra.mxu0 0.0
      %674 = vmatprep.subr.mxu0 0.0
      %675 = vmatpush1.msra.mxu0 0.0
      %676 = vmatprep.subr.mxu0 0.0
      %677 = vmatpush1.msra.mxu0 0.0
      %678 = vmatprep.subr.mxu0 0.0
      %679 = vmatpush1.msra.mxu0 0.0
      %680 = vmatprep.subr.mxu0 0.0
      %681 = vmatpush1.msra.mxu0 0.0
      %682 = vmatprep.subr.mxu0 0.0
      %683 = vmatpush1.msra.mxu0 0.0
      %684 = vmatprep.subr.mxu0 0.0
      %685 = vmatpush1.msra.mxu0 0.0
      %686 = vmatprep.subr.mxu0 0.0
      %687 = vmatpush1.msra.mxu0 0.0
      %688 = vmatprep.subr.mxu0 0.0
      %689 = vmatpush1.msra.mxu0 0.0
      %690 = vmatprep.subr.mxu0 0.0
      %691 = vmatpush1.msra.mxu0 0.0
      %692 = vmatprep.subr.mxu0 0.0
      %693 = vmatpush1.msra.mxu0 0.0
      %694 = vmatprep.subr.mxu0 0.0
      %695 = vmatpush1.msra.mxu0 0.0
      %696 = vmatprep.subr.mxu0 0.0
      %697 = vmatpush1.msra.mxu0 0.0
      %698 = vmatprep.subr.mxu0 0.0
      %699 = vmatpush1.msra.mxu0 0.0
      %700 = vmatprep.subr.mxu0 0.0
      %701 = vmatpush1.msra.mxu0 0.0
      %702 = vmatprep.subr.mxu0 0.0
      %703 = vmatpush1.msra.mxu0 0.0
      %704 = vmatprep.subr.mxu0 0.0
      %705 = vmatpush1.msra.mxu0 0.0
      %706 = vmatprep.subr.mxu0 0.0
      %707 = vmatpush1.msra.mxu0 0.0
      %708 = vmatprep.mubr.f32.mxu0 0.0
      %709 = vmatmul.mubr.f32.gmra.mrb[0].mxu0 %v612
      %v710 = vpop.f32.mrb[0].mxu0
      %v711 = vadd.f32 0.0, %v710
      %v712 = vpop.f32.mrb[0].mxu0
      %v713 = vadd.f32 0.0, %v712
      %714 = vmatprep.mubr.f32.mxu0 0.0
      %715 = vmatmul.mubr.f32.gmra.mrb[0].mxu0 %v614
      %v716 = vpop.f32.mrb[0].mxu0
      %v717 = vadd.f32 0.0, %v716
      %v718 = vpop.f32.mrb[0].mxu0
      %v719 = vadd.f32 0.0, %v718
      %720 = vmatprep.mubr.f32.mxu0 0.0
      %721 = vmatmul.mubr.f32.gmra.mrb[0].mxu0 %v616
      %v722 = vpop.f32.mrb[0].mxu0
      %v723 = vadd.f32 0.0, %v722
      %v724 = vpop.f32.mrb[0].mxu0
      %v725 = vadd.f32 0.0, %v724
      %726 = vmatprep.mubr.f32.mxu0 0.0
      %727 = vmatmul.mubr.f32.gmra.mrb[0].mxu0 %v618
      %v728 = vpop.f32.mrb[0].mxu0
      %v729 = vadd.f32 0.0, %v728
      %v730 = vpop.f32.mrb[0].mxu0
      %v731 = vadd.f32 0.0, %v730
      %732 = vmatprep.mubr.f32.mxu0 0.0
      %733 = vmatmul.mubr.f32.gmra.mrb[0].mxu0 %v620
      %v734 = vpop.f32.mrb[0].mxu0
      %v735 = vadd.f32 0.0, %v734
      %v736 = vpop.f32.mrb[0].mxu0
      %v737 = vadd.f32 0.0, %v736
      %738 = vmatprep.mubr.f32.mxu0 0.0
      %739 = vmatmul.mubr.f32.gmra.mrb[0].mxu0 %v622
      %v740 = vpop.f32.mrb[0].mxu0
      %v741 = vadd.f32 0.0, %v740
      %v742 = vpop.f32.mrb[0].mxu0
      %v743 = vadd.f32 0.0, %v742
      %744 = vmatprep.mubr.f32.mxu0 0.0
      %745 = vmatmul.mubr.f32.gmra.mrb[0].mxu0 %v624
      %v746 = vpop.f32.mrb[0].mxu0
      %v747 = vadd.f32 0.0, %v746
      %v748 = vpop.f32.mrb[0].mxu0
      %v749 = vadd.f32 0.0, %v748
      %750 = vmatprep.mubr.f32.mxu0 0.0
      %751 = vmatmul.mubr.f32.gmra.mrb[0].mxu0 %v626
      %v752 = vpop.f32.mrb[0].mxu0
      %v753 = vadd.f32 0.0, %v752
      %v754 = vpop.f32.mrb[0].mxu0
      %v755 = vadd.f32 0.0, %v754
      %756 = vmatprep.mubr.f32.mxu0 0.0
      %757 = vmatmul.mubr.f32.gmra.mrb[0].mxu0 %v628
      %v758 = vpop.f32.mrb[0].mxu0
      %v759 = vadd.f32 0.0, %v758
      %v760 = vpop.f32.mrb[0].mxu0
      %v761 = vadd.f32 0.0, %v760
      %762 = vmatprep.mubr.f32.mxu0 0.0
      %763 = vmatmul.mubr.f32.gmra.mrb[0].mxu0 %v630
      %v764 = vpop.f32.mrb[0].mxu0
      %v765 = vadd.f32 0.0, %v764
      %v766 = vpop.f32.mrb[0].mxu0
      %v767 = vadd.f32 0.0, %v766
      %768 = vmatprep.mubr.f32.mxu0 0.0
      %769 = vmatmul.mubr.f32.gmra.mrb[0].mxu0 %v632
      %v770 = vpop.f32.mrb[0].mxu0
      %v771 = vadd.f32 0.0, %v770
      %v772 = vpop.f32.mrb[0].mxu0
      %v773 = vadd.f32 0.0, %v772
      %774 = vmatprep.mubr.f32.mxu0 0.0
      %775 = vmatmul.mubr.f32.gmra.mrb[0].mxu0 %v634
      %v776 = vpop.f32.mrb[0].mxu0
      %v777 = vadd.f32 0.0, %v776
      %v778 = vpop.f32.mrb[0].mxu0
      %v779 = vadd.f32 0.0, %v778
      %780 = vmatprep.mubr.f32.mxu0 0.0
      %781 = vmatmul.mubr.f32.gmra.mrb[0].mxu0 %v636
      %v782 = vpop.f32.mrb[0].mxu0
      %v783 = vadd.f32 0.0, %v782
      %v784 = vpop.f32.mrb[0].mxu0
      %v785 = vadd.f32 0.0, %v784
      %786 = vmatprep.mubr.f32.mxu0 0.0
      %787 = vmatmul.mubr.f32.gmra.mrb[0].mxu0 %v638
      %v788 = vpop.f32.mrb[0].mxu0
      %v789 = vadd.f32 0.0, %v788
      %v790 = vpop.f32.mrb[0].mxu0
      %v791 = vadd.f32 0.0, %v790
      %792 = vmatprep.mubr.f32.mxu0 0.0
      %793 = vmatmul.mubr.f32.gmra.mrb[0].mxu0 %v640
      %v794 = vpop.f32.mrb[0].mxu0
      %v795 = vadd.f32 0.0, %v794
      %v796 = vpop.f32.mrb[0].mxu0
      %v797 = vadd.f32 0.0, %v796
      %798 = vmatprep.mubr.f32.mxu0 0.0
      %799 = vmatmul.mubr.f32.gmra.mrb[0].mxu0 %v642
      %v800 = vpop.f32.mrb[0].mxu0
      %v801 = vadd.f32 0.0, %v800
      %v802 = vpop.f32.mrb[0].mxu0
      %v803 = vadd.f32 0.0, %v802
      %804 = vdwg.mxu0
      %v805 = vsel %vm611, %v522, 0
      %v807 = vsel %vm611, %v523, 0
      %v809 = vsel %vm611, %v524, 0
      %v811 = vsel %vm611, %v525, 0
      %v813 = vsel %vm611, %v526, 0
      %v815 = vsel %vm611, %v527, 0
      %v817 = vsel %vm611, %v528, 0
      %v819 = vsel %vm611, %v529, 0
      %v821 = vsel %vm611, %v530, 0
      %v823 = vsel %vm611, %v531, 0
      %v825 = vsel %vm611, %v532, 0
      %v827 = vsel %vm611, %v533, 0
      %v829 = vsel %vm611, %v534, 0
      %v831 = vsel %vm611, %v535, 0
      %v833 = vsel %vm611, %v536, 0
      %v835 = vsel %vm611, %v537, 0
      %837 = vmatprep.subr.mxu0 %v539
      %838 = vmatpush1.msra.mxu0 %v538
      %839 = vmatprep.subr.mxu0 %v541
      %840 = vmatpush1.msra.mxu0 %v540
      %841 = vmatprep.subr.mxu0 %v543
      %842 = vmatpush1.msra.mxu0 %v542
      %843 = vmatprep.subr.mxu0 %v545
      %844 = vmatpush1.msra.mxu0 %v544
      %845 = vmatprep.subr.mxu0 %v547
      %846 = vmatpush1.msra.mxu0 %v546
      %847 = vmatprep.subr.mxu0 %v549
      %848 = vmatpush1.msra.mxu0 %v548
      %849 = vmatprep.subr.mxu0 0.0
      %850 = vmatpush1.msra.mxu0 0.0
      %851 = vmatprep.subr.mxu0 0.0
      %852 = vmatpush1.msra.mxu0 0.0
      %853 = vmatprep.subr.mxu0 0.0
      %854 = vmatpush1.msra.mxu0 0.0
      %855 = vmatprep.subr.mxu0 0.0
      %856 = vmatpush1.msra.mxu0 0.0
      %857 = vmatprep.subr.mxu0 0.0
      %858 = vmatpush1.msra.mxu0 0.0
      %859 = vmatprep.subr.mxu0 0.0
      %860 = vmatpush1.msra.mxu0 0.0
      %861 = vmatprep.subr.mxu0 0.0
      %862 = vmatpush1.msra.mxu0 0.0
      %863 = vmatprep.subr.mxu0 0.0
      %864 = vmatpush1.msra.mxu0 0.0
      %865 = vmatprep.subr.mxu0 0.0
      %866 = vmatpush1.msra.mxu0 0.0
      %867 = vmatprep.subr.mxu0 0.0
      %868 = vmatpush1.msra.mxu0 0.0
      %869 = vmatprep.subr.mxu0 0.0
      %870 = vmatpush1.msra.mxu0 0.0
      %871 = vmatprep.subr.mxu0 0.0
      %872 = vmatpush1.msra.mxu0 0.0
      %873 = vmatprep.subr.mxu0 0.0
      %874 = vmatpush1.msra.mxu0 0.0
      %875 = vmatprep.subr.mxu0 0.0
      %876 = vmatpush1.msra.mxu0 0.0
      %877 = vmatprep.subr.mxu0 0.0
      %878 = vmatpush1.msra.mxu0 0.0
      %879 = vmatprep.subr.mxu0 0.0
      %880 = vmatpush1.msra.mxu0 0.0
      %881 = vmatprep.subr.mxu0 0.0
      %882 = vmatpush1.msra.mxu0 0.0
      %883 = vmatprep.subr.mxu0 0.0
      %884 = vmatpush1.msra.mxu0 0.0
      %885 = vmatprep.subr.mxu0 0.0
      %886 = vmatpush1.msra.mxu0 0.0
      %887 = vmatprep.subr.mxu0 0.0
      %888 = vmatpush1.msra.mxu0 0.0
      %889 = vmatprep.subr.mxu0 0.0
      %890 = vmatpush1.msra.mxu0 0.0
      %891 = vmatprep.subr.mxu0 0.0
      %892 = vmatpush1.msra.mxu0 0.0
      %893 = vmatprep.subr.mxu0 0.0
      %894 = vmatpush1.msra.mxu0 0.0
      %895 = vmatprep.subr.mxu0 0.0
      %896 = vmatpush1.msra.mxu0 0.0
      %897 = vmatprep.subr.mxu0 0.0
      %898 = vmatpush1.msra.mxu0 0.0
      %899 = vmatprep.subr.mxu0 0.0
      %900 = vmatpush1.msra.mxu0 0.0
      %901 = vmatprep.mubr.f32.mxu0 0.0
      %902 = vmatmul.mubr.f32.gmra.mrb[0].mxu0 %v805
      %v903 = vpop.f32.mrb[0].mxu0
      %v904 = vadd.f32 %v711, %v903
      %v905 = vpop.f32.mrb[0].mxu0
      %v906 = vadd.f32 %v713, %v905
      %907 = vmatprep.mubr.f32.mxu0 0.0
      %908 = vmatmul.mubr.f32.gmra.mrb[0].mxu0 %v807
      %v909 = vpop.f32.mrb[0].mxu0
      %v910 = vadd.f32 %v717, %v909
      %v911 = vpop.f32.mrb[0].mxu0
      %v912 = vadd.f32 %v719, %v911
      %913 = vmatprep.mubr.f32.mxu0 0.0
      %914 = vmatmul.mubr.f32.gmra.mrb[0].mxu0 %v809
      %v915 = vpop.f32.mrb[0].mxu0
      %v916 = vadd.f32 %v723, %v915
      %v917 = vpop.f32.mrb[0].mxu0
      %v918 = vadd.f32 %v725, %v917
      %919 = vmatprep.mubr.f32.mxu0 0.0
      %920 = vmatmul.mubr.f32.gmra.mrb[0].mxu0 %v811
      %v921 = vpop.f32.mrb[0].mxu0
      %v922 = vadd.f32 %v729, %v921
      %v923 = vpop.f32.mrb[0].mxu0
      %v924 = vadd.f32 %v731, %v923
      %925 = vmatprep.mubr.f32.mxu0 0.0
      %926 = vmatmul.mubr.f32.gmra.mrb[0].mxu0 %v813
      %v927 = vpop.f32.mrb[0].mxu0
      %v928 = vadd.f32 %v735, %v927
      %v929 = vpop.f32.mrb[0].mxu0
      %v930 = vadd.f32 %v737, %v929
      %931 = vmatprep.mubr.f32.mxu0 0.0
      %932 = vmatmul.mubr.f32.gmra.mrb[0].mxu0 %v815
      %v933 = vpop.f32.mrb[0].mxu0
      %v934 = vadd.f32 %v741, %v933
      %v935 = vpop.f32.mrb[0].mxu0
      %v936 = vadd.f32 %v743, %v935
      %937 = vmatprep.mubr.f32.mxu0 0.0
      %938 = vmatmul.mubr.f32.gmra.mrb[0].mxu0 %v817
      %v939 = vpop.f32.mrb[0].mxu0
      %v940 = vadd.f32 %v747, %v939
      %v941 = vpop.f32.mrb[0].mxu0
      %v942 = vadd.f32 %v749, %v941
      %943 = vmatprep.mubr.f32.mxu0 0.0
      %944 = vmatmul.mubr.f32.gmra.mrb[0].mxu0 %v819
      %v945 = vpop.f32.mrb[0].mxu0
      %v946 = vadd.f32 %v753, %v945
      %v947 = vpop.f32.mrb[0].mxu0
      %v948 = vadd.f32 %v755, %v947
      %949 = vmatprep.mubr.f32.mxu0 0.0
      %950 = vmatmul.mubr.f32.gmra.mrb[0].mxu0 %v821
      %v951 = vpop.f32.mrb[0].mxu0
      %v952 = vadd.f32 %v759, %v951
      %v953 = vpop.f32.mrb[0].mxu0
      %v954 = vadd.f32 %v761, %v953
      %955 = vmatprep.mubr.f32.mxu0 0.0
      %956 = vmatmul.mubr.f32.gmra.mrb[0].mxu0 %v823
      %v957 = vpop.f32.mrb[0].mxu0
      %v958 = vadd.f32 %v765, %v957
      %v959 = vpop.f32.mrb[0].mxu0
      %v960 = vadd.f32 %v767, %v959
      %961 = vmatprep.mubr.f32.mxu0 0.0
      %962 = vmatmul.mubr.f32.gmra.mrb[0].mxu0 %v825
      %v963 = vpop.f32.mrb[0].mxu0
      %v964 = vadd.f32 %v771, %v963
      %v965 = vpop.f32.mrb[0].mxu0
      %v966 = vadd.f32 %v773, %v965
      %967 = vmatprep.mubr.f32.mxu0 0.0
      %968 = vmatmul.mubr.f32.gmra.mrb[0].mxu0 %v827
      %v969 = vpop.f32.mrb[0].mxu0
      %v970 = vadd.f32 %v777, %v969
      %v971 = vpop.f32.mrb[0].mxu0
      %v972 = vadd.f32 %v779, %v971
      %973 = vmatprep.mubr.f32.mxu0 0.0
      %974 = vmatmul.mubr.f32.gmra.mrb[0].mxu0 %v829
      %v975 = vpop.f32.mrb[0].mxu0
      %v976 = vadd.f32 %v783, %v975
      %v977 = vpop.f32.mrb[0].mxu0
      %v978 = vadd.f32 %v785, %v977
      %979 = vmatprep.mubr.f32.mxu0 0.0
      %980 = vmatmul.mubr.f32.gmra.mrb[0].mxu0 %v831
      %v981 = vpop.f32.mrb[0].mxu0
      %v982 = vadd.f32 %v789, %v981
      %v983 = vpop.f32.mrb[0].mxu0
      %v984 = vadd.f32 %v791, %v983
      %985 = vmatprep.mubr.f32.mxu0 0.0
      %986 = vmatmul.mubr.f32.gmra.mrb[0].mxu0 %v833
      %v987 = vpop.f32.mrb[0].mxu0
      %v988 = vadd.f32 %v795, %v987
      %v989 = vpop.f32.mrb[0].mxu0
      %v990 = vadd.f32 %v797, %v989
      %991 = vmatprep.mubr.f32.mxu0 0.0
      %992 = vmatmul.mubr.f32.gmra.mrb[0].mxu0 %v835
      %v993 = vpop.f32.mrb[0].mxu0
      %v994 = vadd.f32 %v801, %v993
      %v995 = vpop.f32.mrb[0].mxu0
      %v996 = vadd.f32 %v803, %v995
      %997 = vdwg.mxu0
      %v998 = vld [vmem:[%s2] sm:$0x3]
      %v1000 = vlaneseq
      %v1001 = vshrl.u32 %v1000, 7
      %v1002 = vsub.s32 0, %v1001
      %v1003 = vrot.slane %v998, %v1002
      %v1004 = vlaneseq
      %v1005 = vshrl.u32 %v1004, 7
      %v1006 = vsub.s32 1, %v1005
      %v1007 = vrot.slane %v998, %v1006
      %v1010 = vadd.f32 %v904, %v1003
      %v1011 = vadd.f32 %v906, %v1007
      %v1012 = vadd.f32 %v910, %v1003
      %v1013 = vadd.f32 %v912, %v1007
      %v1014 = vadd.f32 %v916, %v1003
      %v1015 = vadd.f32 %v918, %v1007
      %v1016 = vadd.f32 %v922, %v1003
      %v1017 = vadd.f32 %v924, %v1007
      %v1018 = vadd.f32 %v928, %v1003
      %v1019 = vadd.f32 %v930, %v1007
      %v1020 = vadd.f32 %v934, %v1003
      %v1021 = vadd.f32 %v936, %v1007
      %v1022 = vadd.f32 %v940, %v1003
      %v1023 = vadd.f32 %v942, %v1007
      %v1024 = vadd.f32 %v946, %v1003
      %v1025 = vadd.f32 %v948, %v1007
      %v1026 = vadd.f32 %v952, %v1003
      %v1027 = vadd.f32 %v954, %v1007
      %v1028 = vadd.f32 %v958, %v1003
      %v1029 = vadd.f32 %v960, %v1007
      %v1030 = vadd.f32 %v964, %v1003
      %v1031 = vadd.f32 %v966, %v1007
      %v1032 = vadd.f32 %v970, %v1003
      %v1033 = vadd.f32 %v972, %v1007
      %v1034 = vadd.f32 %v976, %v1003
      %v1035 = vadd.f32 %v978, %v1007
      %v1036 = vadd.f32 %v982, %v1003
      %v1037 = vadd.f32 %v984, %v1007
      %v1038 = vadd.f32 %v988, %v1003
      %v1039 = vadd.f32 %v990, %v1007
      %v1040 = vadd.f32 %v994, %v1003
      %v1041 = vadd.f32 %v996, %v1007
      %v1042 = vmax.f32 %v1010, 0.0
      %v1043 = vmax.f32 %v1011, 0.0
      %v1044 = vmax.f32 %v1012, 0.0
      %v1045 = vmax.f32 %v1013, 0.0
      %v1046 = vmax.f32 %v1014, 0.0
      %v1047 = vmax.f32 %v1015, 0.0
      %v1048 = vmax.f32 %v1016, 0.0
      %v1049 = vmax.f32 %v1017, 0.0
      %v1050 = vmax.f32 %v1018, 0.0
      %v1051 = vmax.f32 %v1019, 0.0
      %v1052 = vmax.f32 %v1020, 0.0
      %v1053 = vmax.f32 %v1021, 0.0
      %v1054 = vmax.f32 %v1022, 0.0
      %v1055 = vmax.f32 %v1023, 0.0
      %v1056 = vmax.f32 %v1024, 0.0
      %v1057 = vmax.f32 %v1025, 0.0
      %v1058 = vmax.f32 %v1026, 0.0
      %v1059 = vmax.f32 %v1027, 0.0
      %v1060 = vmax.f32 %v1028, 0.0
      %v1061 = vmax.f32 %v1029, 0.0
      %v1062 = vmax.f32 %v1030, 0.0
      %v1063 = vmax.f32 %v1031, 0.0
      %v1064 = vmax.f32 %v1032, 0.0
      %v1065 = vmax.f32 %v1033, 0.0
      %v1066 = vmax.f32 %v1034, 0.0
      %v1067 = vmax.f32 %v1035, 0.0
      %v1068 = vmax.f32 %v1036, 0.0
      %v1069 = vmax.f32 %v1037, 0.0
      %v1070 = vmax.f32 %v1038, 0.0
      %v1071 = vmax.f32 %v1039, 0.0
      %v1072 = vmax.f32 %v1040, 0.0
      %v1073 = vmax.f32 %v1041, 0.0
      %v1074 = vld [vmem:[%s3] sm:$0xff]
      %v1075 = vld [vmem:[%s3 + $0x8] sm:$0xff]
      %v1076 = vld [vmem:[%s3 + $0x10] sm:$0xff]
      %v1077 = vld [vmem:[%s3 + $0x18] sm:$0xff]
      %v1078 = vld [vmem:[%s3 + $0x20] sm:$0xff]
      %v1079 = vld [vmem:[%s3 + $0x28] sm:$0xff]
      %v1080 = vld [vmem:[%s3 + $0x30] sm:$0xff]
      %vm1081 = vcmask 1039360
      %v1083 = vsel %vm1081, %v1074, 0
      %v1086 = vsel %vm1081, %v1075, 0
      %v1089 = vsel %vm1081, %v1076, 0
      %v1092 = vsel %vm1081, %v1077, 0
      %v1095 = vsel %vm1081, %v1078, 0
      %v1098 = vsel %vm1081, %v1079, 0
      %v1101 = vsel %vm1081, %v1080, 0
      %v1104 = vsel %vm579, %v1072, 0
      %v1107 = vsel %vm579, %v1073, 0
      %1109 = vmatprep.subr.mxu0 %v1043
      %1110 = vmatpush1.msra.mxu0 %v1042
      %1111 = vmatprep.subr.mxu0 %v1045
      %1112 = vmatpush1.msra.mxu0 %v1044
      %1113 = vmatprep.subr.mxu0 %v1047
      %1114 = vmatpush1.msra.mxu0 %v1046
      %1115 = vmatprep.subr.mxu0 %v1049
      %1116 = vmatpush1.msra.mxu0 %v1048
      %1117 = vmatprep.subr.mxu0 %v1051
      %1118 = vmatpush1.msra.mxu0 %v1050
      %1119 = vmatprep.subr.mxu0 %v1053
      %1120 = vmatpush1.msra.mxu0 %v1052
      %1121 = vmatprep.subr.mxu0 %v1055
      %1122 = vmatpush1.msra.mxu0 %v1054
      %1123 = vmatprep.subr.mxu0 %v1057
      %1124 = vmatpush1.msra.mxu0 %v1056
      %1125 = vmatprep.subr.mxu0 %v1059
      %1126 = vmatpush1.msra.mxu0 %v1058
      %1127 = vmatprep.subr.mxu0 %v1061
      %1128 = vmatpush1.msra.mxu0 %v1060
      %1129 = vmatprep.subr.mxu0 %v1063
      %1130 = vmatpush1.msra.mxu0 %v1062
      %1131 = vmatprep.subr.mxu0 %v1065
      %1132 = vmatpush1.msra.mxu0 %v1064
      %1133 = vmatprep.subr.mxu0 %v1067
      %1134 = vmatpush1.msra.mxu0 %v1066
      %1135 = vmatprep.subr.mxu0 %v1069
      %1136 = vmatpush1.msra.mxu0 %v1068
      %1137 = vmatprep.subr.mxu0 %v1071
      %1138 = vmatpush1.msra.mxu0 %v1070
      %1139 = vmatprep.subr.mxu0 %v1107
      %1140 = vmatpush1.msra.mxu0 %v1104
      %1141 = vmatprep.subr.mxu0 0.0
      %1142 = vmatpush1.msra.mxu0 0.0
      %1143 = vmatprep.subr.mxu0 0.0
      %1144 = vmatpush1.msra.mxu0 0.0
      %1145 = vmatprep.subr.mxu0 0.0
      %1146 = vmatpush1.msra.mxu0 0.0
      %1147 = vmatprep.subr.mxu0 0.0
      %1148 = vmatpush1.msra.mxu0 0.0
      %1149 = vmatprep.subr.mxu0 0.0
      %1150 = vmatpush1.msra.mxu0 0.0
      %1151 = vmatprep.subr.mxu0 0.0
      %1152 = vmatpush1.msra.mxu0 0.0
      %1153 = vmatprep.subr.mxu0 0.0
      %1154 = vmatpush1.msra.mxu0 0.0
      %1155 = vmatprep.subr.mxu0 0.0
      %1156 = vmatpush1.msra.mxu0 0.0
      %1157 = vmatprep.subr.mxu0 0.0
      %1158 = vmatpush1.msra.mxu0 0.0
      %1159 = vmatprep.subr.mxu0 0.0
      %1160 = vmatpush1.msra.mxu0 0.0
      %1161 = vmatprep.subr.mxu0 0.0
      %1162 = vmatpush1.msra.mxu0 0.0
      %1163 = vmatprep.subr.mxu0 0.0
      %1164 = vmatpush1.msra.mxu0 0.0
      %1165 = vmatprep.subr.mxu0 0.0
      %1166 = vmatpush1.msra.mxu0 0.0
      %1167 = vmatprep.subr.mxu0 0.0
      %1168 = vmatpush1.msra.mxu0 0.0
      %1169 = vmatprep.subr.mxu0 0.0
      %1170 = vmatpush1.msra.mxu0 0.0
      %1171 = vmatprep.subr.mxu0 0.0
      %1172 = vmatpush1.msra.mxu0 0.0
      %1173 = vmatprep.mubr.f32.mxu0 0.0
      %1174 = vmatmul.mubr.f32.gmra.mrb[0].mxu0 %v1083
      %v1175 = vpop.f32.mrb[0].mxu0
      %v1176 = vadd.f32 0.0, %v1175
      %v1177 = vpop.f32.mrb[0].mxu0
      %v1178 = vadd.f32 0.0, %v1177
      %1179 = vmatprep.mubr.f32.mxu0 0.0
      %1180 = vmatmul.mubr.f32.gmra.mrb[0].mxu0 %v1086
      %v1181 = vpop.f32.mrb[0].mxu0
      %v1182 = vadd.f32 0.0, %v1181
      %v1183 = vpop.f32.mrb[0].mxu0
      %v1184 = vadd.f32 0.0, %v1183
      %1185 = vmatprep.mubr.f32.mxu0 0.0
      %1186 = vmatmul.mubr.f32.gmra.mrb[0].mxu0 %v1089
      %v1187 = vpop.f32.mrb[0].mxu0
      %v1188 = vadd.f32 0.0, %v1187
      %v1189 = vpop.f32.mrb[0].mxu0
      %v1190 = vadd.f32 0.0, %v1189
      %1191 = vmatprep.mubr.f32.mxu0 0.0
      %1192 = vmatmul.mubr.f32.gmra.mrb[0].mxu0 %v1092
      %v1193 = vpop.f32.mrb[0].mxu0
      %v1194 = vadd.f32 0.0, %v1193
      %v1195 = vpop.f32.mrb[0].mxu0
      %v1196 = vadd.f32 0.0, %v1195
      %1197 = vmatprep.mubr.f32.mxu0 0.0
      %1198 = vmatmul.mubr.f32.gmra.mrb[0].mxu0 %v1095
      %v1199 = vpop.f32.mrb[0].mxu0
      %v1200 = vadd.f32 0.0, %v1199
      %v1201 = vpop.f32.mrb[0].mxu0
      %v1202 = vadd.f32 0.0, %v1201
      %1203 = vmatprep.mubr.f32.mxu0 0.0
      %1204 = vmatmul.mubr.f32.gmra.mrb[0].mxu0 %v1098
      %v1205 = vpop.f32.mrb[0].mxu0
      %v1206 = vadd.f32 0.0, %v1205
      %v1207 = vpop.f32.mrb[0].mxu0
      %v1208 = vadd.f32 0.0, %v1207
      %1209 = vmatprep.mubr.f32.mxu0 0.0
      %1210 = vmatmul.mubr.f32.gmra.mrb[0].mxu0 %v1101
      %v1211 = vpop.f32.mrb[0].mxu0
      %v1212 = vadd.f32 0.0, %v1211
      %v1213 = vpop.f32.mrb[0].mxu0
      %v1214 = vadd.f32 0.0, %v1213
      %1215 = vdwg.mxu0
      %s1216 = scalar_lea.vmem %s3, 56
      %v1217 = vld [vmem:[%s1216] sm:$0xff]
      %v1218 = vld [vmem:[%s1216 + $0x8] sm:$0xff]
      %v1219 = vld [vmem:[%s1216 + $0x10] sm:$0xff]
      %v1220 = vld [vmem:[%s1216 + $0x18] sm:$0xff]
      %v1221 = vld [vmem:[%s1216 + $0x20] sm:$0xff]
      %v1222 = vld [vmem:[%s1216 + $0x28] sm:$0xff]
      %v1223 = vld [vmem:[%s1216 + $0x30] sm:$0xff]
      %v1225 = vsel %vm1081, %v1217, 0
      %v1228 = vsel %vm1081, %v1218, 0
      %v1231 = vsel %vm1081, %v1219, 0
      %v1234 = vsel %vm1081, %v1220, 0
      %v1237 = vsel %vm1081, %v1221, 0
      %v1240 = vsel %vm1081, %v1222, 0
      %v1243 = vsel %vm1081, %v1223, 0
      %1245 = vmatprep.subr.mxu0 %v1043
      %1246 = vmatpush1.msra.mxu0 %v1042
      %1247 = vmatprep.subr.mxu0 %v1045
      %1248 = vmatpush1.msra.mxu0 %v1044
      %1249 = vmatprep.subr.mxu0 %v1047
      %1250 = vmatpush1.msra.mxu0 %v1046
      %1251 = vmatprep.subr.mxu0 %v1049
      %1252 = vmatpush1.msra.mxu0 %v1048
      %1253 = vmatprep.subr.mxu0 %v1051
      %1254 = vmatpush1.msra.mxu0 %v1050
      %1255 = vmatprep.subr.mxu0 %v1053
      %1256 = vmatpush1.msra.mxu0 %v1052
      %1257 = vmatprep.subr.mxu0 %v1055
      %1258 = vmatpush1.msra.mxu0 %v1054
      %1259 = vmatprep.subr.mxu0 %v1057
      %1260 = vmatpush1.msra.mxu0 %v1056
      %1261 = vmatprep.subr.mxu0 %v1059
      %1262 = vmatpush1.msra.mxu0 %v1058
      %1263 = vmatprep.subr.mxu0 %v1061
      %1264 = vmatpush1.msra.mxu0 %v1060
      %1265 = vmatprep.subr.mxu0 %v1063
      %1266 = vmatpush1.msra.mxu0 %v1062
      %1267 = vmatprep.subr.mxu0 %v1065
      %1268 = vmatpush1.msra.mxu0 %v1064
      %1269 = vmatprep.subr.mxu0 %v1067
      %1270 = vmatpush1.msra.mxu0 %v1066
      %1271 = vmatprep.subr.mxu0 %v1069
      %1272 = vmatpush1.msra.mxu0 %v1068
      %1273 = vmatprep.subr.mxu0 %v1071
      %1274 = vmatpush1.msra.mxu0 %v1070
      %1275 = vmatprep.subr.mxu0 %v1107
      %1276 = vmatpush1.msra.mxu0 %v1104
      %1277 = vmatprep.subr.mxu0 0.0
      %1278 = vmatpush1.msra.mxu0 0.0
      %1279 = vmatprep.subr.mxu0 0.0
      %1280 = vmatpush1.msra.mxu0 0.0
      %1281 = vmatprep.subr.mxu0 0.0
      %1282 = vmatpush1.msra.mxu0 0.0
      %1283 = vmatprep.subr.mxu0 0.0
      %1284 = vmatpush1.msra.mxu0 0.0
      %1285 = vmatprep.subr.mxu0 0.0
      %1286 = vmatpush1.msra.mxu0 0.0
      %1287 = vmatprep.subr.mxu0 0.0
      %1288 = vmatpush1.msra.mxu0 0.0
      %1289 = vmatprep.subr.mxu0 0.0
      %1290 = vmatpush1.msra.mxu0 0.0
      %1291 = vmatprep.subr.mxu0 0.0
      %1292 = vmatpush1.msra.mxu0 0.0
      %1293 = vmatprep.subr.mxu0 0.0
      %1294 = vmatpush1.msra.mxu0 0.0
      %1295 = vmatprep.subr.mxu0 0.0
      %1296 = vmatpush1.msra.mxu0 0.0
      %1297 = vmatprep.subr.mxu0 0.0
      %1298 = vmatpush1.msra.mxu0 0.0
      %1299 = vmatprep.subr.mxu0 0.0
      %1300 = vmatpush1.msra.mxu0 0.0
      %1301 = vmatprep.subr.mxu0 0.0
      %1302 = vmatpush1.msra.mxu0 0.0
      %1303 = vmatprep.subr.mxu0 0.0
      %1304 = vmatpush1.msra.mxu0 0.0
      %1305 = vmatprep.subr.mxu0 0.0
      %1306 = vmatpush1.msra.mxu0 0.0
      %1307 = vmatprep.subr.mxu0 0.0
      %1308 = vmatpush1.msra.mxu0 0.0
      %1309 = vmatprep.mubr.f32.mxu0 0.0
      %1310 = vmatmul.mubr.f32.gmra.mrb[0].mxu0 %v1225
      %v1311 = vpop.f32.mrb[0].mxu0
      %v1312 = vadd.f32 0.0, %v1311
      %v1313 = vpop.f32.mrb[0].mxu0
      %v1314 = vadd.f32 0.0, %v1313
      %1315 = vmatprep.mubr.f32.mxu0 0.0
      %1316 = vmatmul.mubr.f32.gmra.mrb[0].mxu0 %v1228
      %v1317 = vpop.f32.mrb[0].mxu0
      %v1318 = vadd.f32 0.0, %v1317
      %v1319 = vpop.f32.mrb[0].mxu0
      %v1320 = vadd.f32 0.0, %v1319
      %1321 = vmatprep.mubr.f32.mxu0 0.0
      %1322 = vmatmul.mubr.f32.gmra.mrb[0].mxu0 %v1231
      %v1323 = vpop.f32.mrb[0].mxu0
      %v1324 = vadd.f32 0.0, %v1323
      %v1325 = vpop.f32.mrb[0].mxu0
      %v1326 = vadd.f32 0.0, %v1325
      %1327 = vmatprep.mubr.f32.mxu0 0.0
      %1328 = vmatmul.mubr.f32.gmra.mrb[0].mxu0 %v1234
      %v1329 = vpop.f32.mrb[0].mxu0
      %v1330 = vadd.f32 0.0, %v1329
      %v1331 = vpop.f32.mrb[0].mxu0
      %v1332 = vadd.f32 0.0, %v1331
      %1333 = vmatprep.mubr.f32.mxu0 0.0
      %1334 = vmatmul.mubr.f32.gmra.mrb[0].mxu0 %v1237
      %v1335 = vpop.f32.mrb[0].mxu0
      %v1336 = vadd.f32 0.0, %v1335
      %v1337 = vpop.f32.mrb[0].mxu0
      %v1338 = vadd.f32 0.0, %v1337
      %1339 = vmatprep.mubr.f32.mxu0 0.0
      %1340 = vmatmul.mubr.f32.gmra.mrb[0].mxu0 %v1240
      %v1341 = vpop.f32.mrb[0].mxu0
      %v1342 = vadd.f32 0.0, %v1341
      %v1343 = vpop.f32.mrb[0].mxu0
      %v1344 = vadd.f32 0.0, %v1343
      %1345 = vmatprep.mubr.f32.mxu0 0.0
      %1346 = vmatmul.mubr.f32.gmra.mrb[0].mxu0 %v1243
      %v1347 = vpop.f32.mrb[0].mxu0
      %v1348 = vadd.f32 0.0, %v1347
      %v1349 = vpop.f32.mrb[0].mxu0
      %v1350 = vadd.f32 0.0, %v1349
      %1351 = vdwg.mxu0
      %v1352 = vmax.f32 %v1176, %v1312
      %v1353 = vmax.f32 %v1178, %v1314
      %v1354 = vmax.f32 %v1182, %v1318
      %v1355 = vmax.f32 %v1184, %v1320
      %v1356 = vmax.f32 %v1188, %v1324
      %v1357 = vmax.f32 %v1190, %v1326
      %v1358 = vmax.f32 %v1194, %v1330
      %v1359 = vmax.f32 %v1196, %v1332
      %v1360 = vmax.f32 %v1200, %v1336
      %v1361 = vmax.f32 %v1202, %v1338
      %v1362 = vmax.f32 %v1206, %v1342
      %v1363 = vmax.f32 %v1208, %v1344
      %v1364 = vmax.f32 %v1212, %v1348
      %v1365 = vmax.f32 %v1214, %v1350
      %v1366 = vld [vmem:[%s4] sm:$0xff]
      %v1367 = vld [vmem:[%s4 + $0x8] sm:$0xff]
      %v1368 = vld [vmem:[%s4 + $0x10] sm:$0xff]
      %v1369 = vld [vmem:[%s4 + $0x18] sm:$0xff]
      %v1370 = vld [vmem:[%s4 + $0x20] sm:$0xff]
      %v1371 = vld [vmem:[%s4 + $0x28] sm:$0xff]
      %v1372 = vld [vmem:[%s4 + $0x30] sm:$0xff]
      %v1373 = vld [vmem:[%s4 + $0x38] sm:$0xff]
      %v1374 = vld [vmem:[%s4 + $0x40] sm:$0xff]
      %v1375 = vld [vmem:[%s4 + $0x48] sm:$0xff]
      %v1376 = vld [vmem:[%s4 + $0x50] sm:$0xff]
      %v1377 = vld [vmem:[%s4 + $0x58] sm:$0xff]
      %v1378 = vld [vmem:[%s4 + $0x60] sm:$0xff]
      %v1379 = vld [vmem:[%s4 + $0x68] sm:$0xff]
      %v1380 = vld [vmem:[%s4 + $0x70] sm:$0xff]
      %v1381 = vld [vmem:[%s4 + $0x78] sm:$0xff]
      %v1382 = vld [vmem:[%s4 + $0x80] sm:$0xff]
      %v1383 = vld [vmem:[%s4 + $0x88] sm:$0xff]
      %v1384 = vld [vmem:[%s4 + $0x90] sm:$0xff]
      %v1385 = vld [vmem:[%s4 + $0x98] sm:$0xff]
      %v1386 = vld [vmem:[%s4 + $0xa0] sm:$0xff]
      %v1387 = vld [vmem:[%s4 + $0xa8] sm:$0xff]
      %v1388 = vld [vmem:[%s4 + $0xb0] sm:$0xf]
      %vm1389 = vcmask 424960
      %v1391 = vsel %vm1389, %v1353, 0
      %v1394 = vsel %vm1389, %v1355, 0
      %v1397 = vsel %vm1389, %v1357, 0
      %v1400 = vsel %vm1389, %v1359, 0
      %v1403 = vsel %vm1389, %v1361, 0
      %v1406 = vsel %vm1389, %v1363, 0
      %v1409 = vsel %vm1389, %v1365, 0
      %vm1411 = vcmask 1043456
      %v1413 = vsel %vm1411, %v1388, 0
      %1415 = vmatprep.subr.mxu0 0.0
      %1416 = vmatpush1.msra.mxu0 %v1366
      %1417 = vmatprep.subr.mxu0 0.0
      %1418 = vmatpush1.msra.mxu0 %v1367
      %1419 = vmatprep.subr.mxu0 0.0
      %1420 = vmatpush1.msra.mxu0 %v1368
      %1421 = vmatprep.subr.mxu0 0.0
      %1422 = vmatpush1.msra.mxu0 %v1369
      %1423 = vmatprep.subr.mxu0 0.0
      %1424 = vmatpush1.msra.mxu0 %v1370
      %1425 = vmatprep.subr.mxu0 0.0
      %1426 = vmatpush1.msra.mxu0 %v1371
      %1427 = vmatprep.subr.mxu0 0.0
      %1428 = vmatpush1.msra.mxu0 %v1372
      %1429 = vmatprep.subr.mxu0 0.0
      %1430 = vmatpush1.msra.mxu0 %v1373
      %1431 = vmatprep.subr.mxu0 0.0
      %1432 = vmatpush1.msra.mxu0 %v1374
      %1433 = vmatprep.subr.mxu0 0.0
      %1434 = vmatpush1.msra.mxu0 %v1375
      %1435 = vmatprep.subr.mxu0 0.0
      %1436 = vmatpush1.msra.mxu0 %v1376
      %1437 = vmatprep.subr.mxu0 0.0
      %1438 = vmatpush1.msra.mxu0 %v1377
      %1439 = vmatprep.subr.mxu0 0.0
      %1440 = vmatpush1.msra.mxu0 %v1378
      %1441 = vmatprep.subr.mxu0 0.0
      %1442 = vmatpush1.msra.mxu0 %v1379
      %1443 = vmatprep.subr.mxu0 0.0
      %1444 = vmatpush1.msra.mxu0 %v1380
      %1445 = vmatprep.subr.mxu0 0.0
      %1446 = vmatpush1.msra.mxu0 %v1381
      %1447 = vmatprep.subr.mxu0 0.0
      %1448 = vmatpush1.msra.mxu0 %v1382
      %1449 = vmatprep.subr.mxu0 0.0
      %1450 = vmatpush1.msra.mxu0 %v1383
      %1451 = vmatprep.subr.mxu0 0.0
      %1452 = vmatpush1.msra.mxu0 %v1384
      %1453 = vmatprep.subr.mxu0 0.0
      %1454 = vmatpush1.msra.mxu0 %v1385
      %1455 = vmatprep.subr.mxu0 0.0
      %1456 = vmatpush1.msra.mxu0 %v1386
      %1457 = vmatprep.subr.mxu0 0.0
      %1458 = vmatpush1.msra.mxu0 %v1387
      %1459 = vmatprep.subr.mxu0 0.0
      %1460 = vmatpush1.msra.mxu0 %v1413
      %1461 = vmatprep.subr.mxu0 0.0
      %1462 = vmatpush1.msra.mxu0 0.0
      %1463 = vmatprep.subr.mxu0 0.0
      %1464 = vmatpush1.msra.mxu0 0.0
      %1465 = vmatprep.subr.mxu0 0.0
      %1466 = vmatpush1.msra.mxu0 0.0
      %1467 = vmatprep.subr.mxu0 0.0
      %1468 = vmatpush1.msra.mxu0 0.0
      %1469 = vmatprep.subr.mxu0 0.0
      %1470 = vmatpush1.msra.mxu0 0.0
      %1471 = vmatprep.subr.mxu0 0.0
      %1472 = vmatpush1.msra.mxu0 0.0
      %1473 = vmatprep.subr.mxu0 0.0
      %1474 = vmatpush1.msra.mxu0 0.0
      %1475 = vmatprep.subr.mxu0 0.0
      %1476 = vmatpush1.msra.mxu0 0.0
      %1477 = vmatprep.subr.mxu0 0.0
      %1478 = vmatpush1.msra.mxu0 0.0
      %1479 = vmatprep.mubr.f32.mxu0 %v1391
      %1480 = vmatmul.mubr.f32.gmra.mrb[0].mxu0 %v1352
      %v1481 = vpop.f32.mrb[0].mxu0
      %v1482 = vadd.f32 0.0, %v1481
      %v1483 = vpop.f32.mrb[0].mxu0
      %1484 = vmatprep.mubr.f32.mxu0 %v1394
      %1485 = vmatmul.mubr.f32.gmra.mrb[0].mxu0 %v1354
      %v1486 = vpop.f32.mrb[0].mxu0
      %v1487 = vadd.f32 0.0, %v1486
      %v1488 = vpop.f32.mrb[0].mxu0
      %1489 = vmatprep.mubr.f32.mxu0 %v1397
      %1490 = vmatmul.mubr.f32.gmra.mrb[0].mxu0 %v1356
      %v1491 = vpop.f32.mrb[0].mxu0
      %v1492 = vadd.f32 0.0, %v1491
      %v1493 = vpop.f32.mrb[0].mxu0
      %1494 = vmatprep.mubr.f32.mxu0 %v1400
      %1495 = vmatmul.mubr.f32.gmra.mrb[0].mxu0 %v1358
      %v1496 = vpop.f32.mrb[0].mxu0
      %v1497 = vadd.f32 0.0, %v1496
      %v1498 = vpop.f32.mrb[0].mxu0
      %1499 = vmatprep.mubr.f32.mxu0 %v1403
      %1500 = vmatmul.mubr.f32.gmra.mrb[0].mxu0 %v1360
      %v1501 = vpop.f32.mrb[0].mxu0
      %v1502 = vadd.f32 0.0, %v1501
      %v1503 = vpop.f32.mrb[0].mxu0
      %1504 = vmatprep.mubr.f32.mxu0 %v1406
      %1505 = vmatmul.mubr.f32.gmra.mrb[0].mxu0 %v1362
      %v1506 = vpop.f32.mrb[0].mxu0
      %v1507 = vadd.f32 0.0, %v1506
      %v1508 = vpop.f32.mrb[0].mxu0
      %1509 = vmatprep.mubr.f32.mxu0 %v1409
      %1510 = vmatmul.mubr.f32.gmra.mrb[0].mxu0 %v1364
      %v1511 = vpop.f32.mrb[0].mxu0
      %v1512 = vadd.f32 0.0, %v1511
      %v1513 = vpop.f32.mrb[0].mxu0
      %1514 = vdwg.mxu0
      %s1515 = scalar_lea.vmem %s4, 184
      %v1516 = vld [vmem:[%s1515] sm:$0xff]
      %v1517 = vld [vmem:[%s1515 + $0x8] sm:$0xff]
      %v1518 = vld [vmem:[%s1515 + $0x10] sm:$0xff]
      %v1519 = vld [vmem:[%s1515 + $0x18] sm:$0xff]
      %v1520 = vld [vmem:[%s1515 + $0x20] sm:$0xff]
      %v1521 = vld [vmem:[%s1515 + $0x28] sm:$0xff]
      %v1522 = vld [vmem:[%s1515 + $0x30] sm:$0xff]
      %v1523 = vld [vmem:[%s1515 + $0x38] sm:$0xff]
      %v1524 = vld [vmem:[%s1515 + $0x40] sm:$0xff]
      %v1525 = vld [vmem:[%s1515 + $0x48] sm:$0xff]
      %v1526 = vld [vmem:[%s1515 + $0x50] sm:$0xff]
      %v1527 = vld [vmem:[%s1515 + $0x58] sm:$0xff]
      %v1528 = vld [vmem:[%s1515 + $0x60] sm:$0xff]
      %v1529 = vld [vmem:[%s1515 + $0x68] sm:$0xff]
      %v1530 = vld [vmem:[%s1515 + $0x70] sm:$0xff]
      %v1531 = vld [vmem:[%s1515 + $0x78] sm:$0xff]
      %v1532 = vld [vmem:[%s1515 + $0x80] sm:$0xff]
      %v1533 = vld [vmem:[%s1515 + $0x88] sm:$0xff]
      %v1534 = vld [vmem:[%s1515 + $0x90] sm:$0xff]
      %v1535 = vld [vmem:[%s1515 + $0x98] sm:$0xff]
      %v1536 = vld [vmem:[%s1515 + $0xa0] sm:$0xff]
      %v1537 = vld [vmem:[%s1515 + $0xa8] sm:$0xff]
      %v1538 = vld [vmem:[%s1515 + $0xb0] sm:$0xf]
      %v1540 = vsel %vm1411, %v1538, 0
      %1542 = vmatprep.subr.mxu0 0.0
      %1543 = vmatpush1.msra.mxu0 %v1516
      %1544 = vmatprep.subr.mxu0 0.0
      %1545 = vmatpush1.msra.mxu0 %v1517
      %1546 = vmatprep.subr.mxu0 0.0
      %1547 = vmatpush1.msra.mxu0 %v1518
      %1548 = vmatprep.subr.mxu0 0.0
      %1549 = vmatpush1.msra.mxu0 %v1519
      %1550 = vmatprep.subr.mxu0 0.0
      %1551 = vmatpush1.msra.mxu0 %v1520
      %1552 = vmatprep.subr.mxu0 0.0
      %1553 = vmatpush1.msra.mxu0 %v1521
      %1554 = vmatprep.subr.mxu0 0.0
      %1555 = vmatpush1.msra.mxu0 %v1522
      %1556 = vmatprep.subr.mxu0 0.0
      %1557 = vmatpush1.msra.mxu0 %v1523
      %1558 = vmatprep.subr.mxu0 0.0
      %1559 = vmatpush1.msra.mxu0 %v1524
      %1560 = vmatprep.subr.mxu0 0.0
      %1561 = vmatpush1.msra.mxu0 %v1525
      %1562 = vmatprep.subr.mxu0 0.0
      %1563 = vmatpush1.msra.mxu0 %v1526
      %1564 = vmatprep.subr.mxu0 0.0
      %1565 = vmatpush1.msra.mxu0 %v1527
      %1566 = vmatprep.subr.mxu0 0.0
      %1567 = vmatpush1.msra.mxu0 %v1528
      %1568 = vmatprep.subr.mxu0 0.0
      %1569 = vmatpush1.msra.mxu0 %v1529
      %1570 = vmatprep.subr.mxu0 0.0
      %1571 = vmatpush1.msra.mxu0 %v1530
      %1572 = vmatprep.subr.mxu0 0.0
      %1573 = vmatpush1.msra.mxu0 %v1531
      %1574 = vmatprep.subr.mxu0 0.0
      %1575 = vmatpush1.msra.mxu0 %v1532
      %1576 = vmatprep.subr.mxu0 0.0
      %1577 = vmatpush1.msra.mxu0 %v1533
      %1578 = vmatprep.subr.mxu0 0.0
      %1579 = vmatpush1.msra.mxu0 %v1534
      %1580 = vmatprep.subr.mxu0 0.0
      %1581 = vmatpush1.msra.mxu0 %v1535
      %1582 = vmatprep.subr.mxu0 0.0
      %1583 = vmatpush1.msra.mxu0 %v1536
      %1584 = vmatprep.subr.mxu0 0.0
      %1585 = vmatpush1.msra.mxu0 %v1537
      %1586 = vmatprep.subr.mxu0 0.0
      %1587 = vmatpush1.msra.mxu0 %v1540
      %1588 = vmatprep.subr.mxu0 0.0
      %1589 = vmatpush1.msra.mxu0 0.0
      %1590 = vmatprep.subr.mxu0 0.0
      %1591 = vmatpush1.msra.mxu0 0.0
      %1592 = vmatprep.subr.mxu0 0.0
      %1593 = vmatpush1.msra.mxu0 0.0
      %1594 = vmatprep.subr.mxu0 0.0
      %1595 = vmatpush1.msra.mxu0 0.0
      %1596 = vmatprep.subr.mxu0 0.0
      %1597 = vmatpush1.msra.mxu0 0.0
      %1598 = vmatprep.subr.mxu0 0.0
      %1599 = vmatpush1.msra.mxu0 0.0
      %1600 = vmatprep.subr.mxu0 0.0
      %1601 = vmatpush1.msra.mxu0 0.0
      %1602 = vmatprep.subr.mxu0 0.0
      %1603 = vmatpush1.msra.mxu0 0.0
      %1604 = vmatprep.subr.mxu0 0.0
      %1605 = vmatpush1.msra.mxu0 0.0
      %1606 = vmatprep.mubr.f32.mxu0 %v1391
      %1607 = vmatmul.mubr.f32.gmra.mrb[0].mxu0 %v1352
      %v1608 = vpop.f32.mrb[0].mxu0
      %v1609 = vadd.f32 0.0, %v1608
      %v1610 = vpop.f32.mrb[0].mxu0
      %1611 = vmatprep.mubr.f32.mxu0 %v1394
      %1612 = vmatmul.mubr.f32.gmra.mrb[0].mxu0 %v1354
      %v1613 = vpop.f32.mrb[0].mxu0
      %v1614 = vadd.f32 0.0, %v1613
      %v1615 = vpop.f32.mrb[0].mxu0
      %1616 = vmatprep.mubr.f32.mxu0 %v1397
      %1617 = vmatmul.mubr.f32.gmra.mrb[0].mxu0 %v1356
      %v1618 = vpop.f32.mrb[0].mxu0
      %v1619 = vadd.f32 0.0, %v1618
      %v1620 = vpop.f32.mrb[0].mxu0
      %1621 = vmatprep.mubr.f32.mxu0 %v1400
      %1622 = vmatmul.mubr.f32.gmra.mrb[0].mxu0 %v1358
      %v1623 = vpop.f32.mrb[0].mxu0
      %v1624 = vadd.f32 0.0, %v1623
      %v1625 = vpop.f32.mrb[0].mxu0
      %1626 = vmatprep.mubr.f32.mxu0 %v1403
      %1627 = vmatmul.mubr.f32.gmra.mrb[0].mxu0 %v1360
      %v1628 = vpop.f32.mrb[0].mxu0
      %v1629 = vadd.f32 0.0, %v1628
      %v1630 = vpop.f32.mrb[0].mxu0
      %1631 = vmatprep.mubr.f32.mxu0 %v1406
      %1632 = vmatmul.mubr.f32.gmra.mrb[0].mxu0 %v1362
      %v1633 = vpop.f32.mrb[0].mxu0
      %v1634 = vadd.f32 0.0, %v1633
      %v1635 = vpop.f32.mrb[0].mxu0
      %1636 = vmatprep.mubr.f32.mxu0 %v1409
      %1637 = vmatmul.mubr.f32.gmra.mrb[0].mxu0 %v1364
      %v1638 = vpop.f32.mrb[0].mxu0
      %v1639 = vadd.f32 0.0, %v1638
      %v1640 = vpop.f32.mrb[0].mxu0
      %1641 = vdwg.mxu0
      %v1642 = vmax.f32 %v1482, %v1609
      %v1643 = vmax.f32 %v1487, %v1614
      %v1644 = vmax.f32 %v1492, %v1619
      %v1645 = vmax.f32 %v1497, %v1624
      %v1646 = vmax.f32 %v1502, %v1629
      %v1647 = vmax.f32 %v1507, %v1634
      %v1648 = vmax.f32 %v1512, %v1639
      %v1649 = vld [vmem:[%s5] sm:$0xff]
      %v1650 = vld [vmem:[%s5 + $0x8] sm:$0xff]
      %v1651 = vld [vmem:[%s5 + $0x10] sm:$0xff]
      %v1652 = vld [vmem:[%s5 + $0x18] sm:$0xff]
      %v1653 = vld [vmem:[%s5 + $0x20] sm:$0xff]
      %v1654 = vld [vmem:[%s5 + $0x28] sm:$0xff]
      %v1655 = vld [vmem:[%s5 + $0x30] sm:$0xff]
      %v1656 = vld [vmem:[%s5 + $0x38] sm:$0xff]
      %v1657 = vld [vmem:[%s5 + $0x40] sm:$0xff]
      %v1658 = vld [vmem:[%s5 + $0x48] sm:$0xff]
      %v1659 = vld [vmem:[%s5 + $0x50] sm:$0xff]
      %v1660 = vld [vmem:[%s5 + $0x58] sm:$0xff]
      %v1661 = vld [vmem:[%s5 + $0x60] sm:$0xff]
      %v1662 = vld [vmem:[%s5 + $0x68] sm:$0xff]
      %v1663 = vld [vmem:[%s5 + $0x70] sm:$0xff]
      %v1664 = vld [vmem:[%s5 + $0x78] sm:$0xff]
      %v1665 = vld [vmem:[%s5 + $0x80] sm:$0xff]
      %v1666 = vld [vmem:[%s5 + $0x88] sm:$0xff]
      %v1667 = vld [vmem:[%s5 + $0x90] sm:$0xff]
      %v1668 = vld [vmem:[%s5 + $0x98] sm:$0xff]
      %v1669 = vld [vmem:[%s5 + $0xa0] sm:$0xf]
      %v1670 = vld [vmem:[%s5 + $0xa8] sm:$0xf]
      %s1671 = scalar_lea.vmem %s5, 176
      %v1672 = vld [vmem:[%s1671] sm:$0xff]
      %v1673 = vld [vmem:[%s1671 + $0x8] sm:$0xff]
      %v1674 = vld [vmem:[%s1671 + $0x10] sm:$0xff]
      %v1675 = vld [vmem:[%s1671 + $0x18] sm:$0xff]
      %v1676 = vld [vmem:[%s1671 + $0x20] sm:$0xff]
      %v1677 = vld [vmem:[%s1671 + $0x28] sm:$0xff]
      %v1678 = vld [vmem:[%s1671 + $0x30] sm:$0xff]
      %v1679 = vld [vmem:[%s1671 + $0x38] sm:$0xff]
      %v1680 = vld [vmem:[%s1671 + $0x40] sm:$0xff]
      %v1681 = vld [vmem:[%s1671 + $0x48] sm:$0xff]
      %v1682 = vld [vmem:[%s1671 + $0x50] sm:$0xff]
      %v1683 = vld [vmem:[%s1671 + $0x58] sm:$0xff]
      %v1684 = vld [vmem:[%s1671 + $0x60] sm:$0xff]
      %v1685 = vld [vmem:[%s1671 + $0x68] sm:$0xff]
      %v1686 = vld [vmem:[%s1671 + $0x70] sm:$0xff]
      %v1687 = vld [vmem:[%s1671 + $0x78] sm:$0xff]
      %v1688 = vld [vmem:[%s1671 + $0x80] sm:$0xff]
      %v1689 = vld [vmem:[%s1671 + $0x88] sm:$0xff]
      %v1690 = vld [vmem:[%s1671 + $0x90] sm:$0xff]
      %v1691 = vld [vmem:[%s1671 + $0x98] sm:$0xff]
      %v1692 = vld [vmem:[%s1671 + $0xa0] sm:$0xf]
      %v1693 = vld [vmem:[%s1671 + $0xa8] sm:$0xf]
      %v1701 = vrot.slane %v1642, 1
      %v1702 = vrot.slane %v1643, 1
      %v1703 = vsel %vm579, %v1701, %v1702
      %v1704 = vrot.slane %v1644, 1
      %v1705 = vsel %vm579, %v1702, %v1704
      %v1706 = vrot.slane %v1645, 1
      %v1707 = vsel %vm579, %v1704, %v1706
      %v1708 = vrot.slane %v1646, 1
      %v1709 = vsel %vm579, %v1706, %v1708
      %v1710 = vrot.slane %v1647, 1
      %v1711 = vsel %vm579, %v1708, %v1710
      %v1712 = vrot.slane %v1648, 1
      %v1713 = vsel %vm579, %v1710, %v1712
      %vm1714 = vcmask 687104
      %v1715 = vsel %vm1714, %v1703, 0
      %v1717 = vsel %vm1714, %v1705, 0
      %v1719 = vsel %vm1714, %v1707, 0
      %v1721 = vsel %vm1714, %v1709, 0
      %v1723 = vsel %vm1714, %v1711, 0
      %v1725 = vsel %vm1714, %v1713, 0
      %v1727 = vsel %vm1714, %v1712, 0
      %v1730 = vsel %vm1411, %v1692, 0
      %v1733 = vsel %vm1411, %v1693, 0
      %1735 = vmatprep.subr.mxu0 %v1673
      %1736 = vmatpush1.msra.mxu0 %v1672
      %1737 = vmatprep.subr.mxu0 %v1675
      %1738 = vmatpush1.msra.mxu0 %v1674
      %1739 = vmatprep.subr.mxu0 %v1677
      %1740 = vmatpush1.msra.mxu0 %v1676
      %1741 = vmatprep.subr.mxu0 %v1679
      %1742 = vmatpush1.msra.mxu0 %v1678
      %1743 = vmatprep.subr.mxu0 %v1681
      %1744 = vmatpush1.msra.mxu0 %v1680
      %1745 = vmatprep.subr.mxu0 %v1683
      %1746 = vmatpush1.msra.mxu0 %v1682
      %1747 = vmatprep.subr.mxu0 %v1685
      %1748 = vmatpush1.msra.mxu0 %v1684
      %1749 = vmatprep.subr.mxu0 %v1687
      %1750 = vmatpush1.msra.mxu0 %v1686
      %1751 = vmatprep.subr.mxu0 %v1689
      %1752 = vmatpush1.msra.mxu0 %v1688
      %1753 = vmatprep.subr.mxu0 %v1691
      %1754 = vmatpush1.msra.mxu0 %v1690
      %1755 = vmatprep.subr.mxu0 %v1733
      %1756 = vmatpush1.msra.mxu0 %v1730
      %1757 = vmatprep.subr.mxu0 0.0
      %1758 = vmatpush1.msra.mxu0 0.0
      %1759 = vmatprep.subr.mxu0 0.0
      %1760 = vmatpush1.msra.mxu0 0.0
      %1761 = vmatprep.subr.mxu0 0.0
      %1762 = vmatpush1.msra.mxu0 0.0
      %1763 = vmatprep.subr.mxu0 0.0
      %1764 = vmatpush1.msra.mxu0 0.0
      %1765 = vmatprep.subr.mxu0 0.0
      %1766 = vmatpush1.msra.mxu0 0.0
      %1767 = vmatprep.subr.mxu0 0.0
      %1768 = vmatpush1.msra.mxu0 0.0
      %1769 = vmatprep.subr.mxu0 0.0
      %1770 = vmatpush1.msra.mxu0 0.0
      %1771 = vmatprep.subr.mxu0 0.0
      %1772 = vmatpush1.msra.mxu0 0.0
      %1773 = vmatprep.subr.mxu0 0.0
      %1774 = vmatpush1.msra.mxu0 0.0
      %1775 = vmatprep.subr.mxu0 0.0
      %1776 = vmatpush1.msra.mxu0 0.0
      %1777 = vmatprep.subr.mxu0 0.0
      %1778 = vmatpush1.msra.mxu0 0.0
      %1779 = vmatprep.subr.mxu0 0.0
      %1780 = vmatpush1.msra.mxu0 0.0
      %1781 = vmatprep.subr.mxu0 0.0
      %1782 = vmatpush1.msra.mxu0 0.0
      %1783 = vmatprep.subr.mxu0 0.0
      %1784 = vmatpush1.msra.mxu0 0.0
      %1785 = vmatprep.subr.mxu0 0.0
      %1786 = vmatpush1.msra.mxu0 0.0
      %1787 = vmatprep.subr.mxu0 0.0
      %1788 = vmatpush1.msra.mxu0 0.0
      %1789 = vmatprep.subr.mxu0 0.0
      %1790 = vmatpush1.msra.mxu0 0.0
      %1791 = vmatprep.subr.mxu0 0.0
      %1792 = vmatpush1.msra.mxu0 0.0
      %1793 = vmatprep.subr.mxu0 0.0
      %1794 = vmatpush1.msra.mxu0 0.0
      %1795 = vmatprep.subr.mxu0 0.0
      %1796 = vmatpush1.msra.mxu0 0.0
      %1797 = vmatprep.subr.mxu0 0.0
      %1798 = vmatpush1.msra.mxu0 0.0
      %1799 = vmatprep.mubr.f32.mxu0 0.0
      %1800 = vmatmul.mubr.f32.gmra.mrb[0].mxu0 %v1715
      %v1801 = vpop.f32.mrb[0].mxu0
      %v1802 = vadd.f32 0.0, %v1801
      %v1803 = vpop.f32.mrb[0].mxu0
      %v1804 = vadd.f32 0.0, %v1803
      %1805 = vmatprep.mubr.f32.mxu0 0.0
      %1806 = vmatmul.mubr.f32.gmra.mrb[0].mxu0 %v1717
      %v1807 = vpop.f32.mrb[0].mxu0
      %v1808 = vadd.f32 0.0, %v1807
      %v1809 = vpop.f32.mrb[0].mxu0
      %v1810 = vadd.f32 0.0, %v1809
      %1811 = vmatprep.mubr.f32.mxu0 0.0
      %1812 = vmatmul.mubr.f32.gmra.mrb[0].mxu0 %v1719
      %v1813 = vpop.f32.mrb[0].mxu0
      %v1814 = vadd.f32 0.0, %v1813
      %v1815 = vpop.f32.mrb[0].mxu0
      %v1816 = vadd.f32 0.0, %v1815
      %1817 = vmatprep.mubr.f32.mxu0 0.0
      %1818 = vmatmul.mubr.f32.gmra.mrb[0].mxu0 %v1721
      %v1819 = vpop.f32.mrb[0].mxu0
      %v1820 = vadd.f32 0.0, %v1819
      %v1821 = vpop.f32.mrb[0].mxu0
      %v1822 = vadd.f32 0.0, %v1821
      %1823 = vmatprep.mubr.f32.mxu0 0.0
      %1824 = vmatmul.mubr.f32.gmra.mrb[0].mxu0 %v1723
      %v1825 = vpop.f32.mrb[0].mxu0
      %v1826 = vadd.f32 0.0, %v1825
      %v1827 = vpop.f32.mrb[0].mxu0
      %v1828 = vadd.f32 0.0, %v1827
      %1829 = vmatprep.mubr.f32.mxu0 0.0
      %1830 = vmatmul.mubr.f32.gmra.mrb[0].mxu0 %v1725
      %v1831 = vpop.f32.mrb[0].mxu0
      %v1832 = vadd.f32 0.0, %v1831
      %v1833 = vpop.f32.mrb[0].mxu0
      %v1834 = vadd.f32 0.0, %v1833
      %1835 = vmatprep.mubr.f32.mxu0 0.0
      %1836 = vmatmul.mubr.f32.gmra.mrb[0].mxu0 %v1727
      %v1837 = vpop.f32.mrb[0].mxu0
      %v1838 = vadd.f32 0.0, %v1837
      %v1839 = vpop.f32.mrb[0].mxu0
      %v1840 = vadd.f32 0.0, %v1839
      %1841 = vdwg.mxu0
      %v1842 = vsel %vm1714, %v1642, 0
      %v1844 = vsel %vm1714, %v1643, 0
      %v1846 = vsel %vm1714, %v1644, 0
      %v1848 = vsel %vm1714, %v1645, 0
      %v1850 = vsel %vm1714, %v1646, 0
      %v1852 = vsel %vm1714, %v1647, 0
      %v1854 = vsel %vm1714, %v1648, 0
      %v1857 = vsel %vm1411, %v1669, 0
      %v1860 = vsel %vm1411, %v1670, 0
      %1862 = vmatprep.subr.mxu0 %v1650
      %1863 = vmatpush1.msra.mxu0 %v1649
      %1864 = vmatprep.subr.mxu0 %v1652
      %1865 = vmatpush1.msra.mxu0 %v1651
      %1866 = vmatprep.subr.mxu0 %v1654
      %1867 = vmatpush1.msra.mxu0 %v1653
      %1868 = vmatprep.subr.mxu0 %v1656
      %1869 = vmatpush1.msra.mxu0 %v1655
      %1870 = vmatprep.subr.mxu0 %v1658
      %1871 = vmatpush1.msra.mxu0 %v1657
      %1872 = vmatprep.subr.mxu0 %v1660
      %1873 = vmatpush1.msra.mxu0 %v1659
      %1874 = vmatprep.subr.mxu0 %v1662
      %1875 = vmatpush1.msra.mxu0 %v1661
      %1876 = vmatprep.subr.mxu0 %v1664
      %1877 = vmatpush1.msra.mxu0 %v1663
      %1878 = vmatprep.subr.mxu0 %v1666
      %1879 = vmatpush1.msra.mxu0 %v1665
      %1880 = vmatprep.subr.mxu0 %v1668
      %1881 = vmatpush1.msra.mxu0 %v1667
      %1882 = vmatprep.subr.mxu0 %v1860
      %1883 = vmatpush1.msra.mxu0 %v1857
      %1884 = vmatprep.subr.mxu0 0.0
      %1885 = vmatpush1.msra.mxu0 0.0
      %1886 = vmatprep.subr.mxu0 0.0
      %1887 = vmatpush1.msra.mxu0 0.0
      %1888 = vmatprep.subr.mxu0 0.0
      %1889 = vmatpush1.msra.mxu0 0.0
      %1890 = vmatprep.subr.mxu0 0.0
      %1891 = vmatpush1.msra.mxu0 0.0
      %1892 = vmatprep.subr.mxu0 0.0
      %1893 = vmatpush1.msra.mxu0 0.0
      %1894 = vmatprep.subr.mxu0 0.0
      %1895 = vmatpush1.msra.mxu0 0.0
      %1896 = vmatprep.subr.mxu0 0.0
      %1897 = vmatpush1.msra.mxu0 0.0
      %1898 = vmatprep.subr.mxu0 0.0
      %1899 = vmatpush1.msra.mxu0 0.0
      %1900 = vmatprep.subr.mxu0 0.0
      %1901 = vmatpush1.msra.mxu0 0.0
      %1902 = vmatprep.subr.mxu0 0.0
      %1903 = vmatpush1.msra.mxu0 0.0
      %1904 = vmatprep.subr.mxu0 0.0
      %1905 = vmatpush1.msra.mxu0 0.0
      %1906 = vmatprep.subr.mxu0 0.0
      %1907 = vmatpush1.msra.mxu0 0.0
      %1908 = vmatprep.subr.mxu0 0.0
      %1909 = vmatpush1.msra.mxu0 0.0
      %1910 = vmatprep.subr.mxu0 0.0
      %1911 = vmatpush1.msra.mxu0 0.0
      %1912 = vmatprep.subr.mxu0 0.0
      %1913 = vmatpush1.msra.mxu0 0.0
      %1914 = vmatprep.subr.mxu0 0.0
      %1915 = vmatpush1.msra.mxu0 0.0
      %1916 = vmatprep.subr.mxu0 0.0
      %1917 = vmatpush1.msra.mxu0 0.0
      %1918 = vmatprep.subr.mxu0 0.0
      %1919 = vmatpush1.msra.mxu0 0.0
      %1920 = vmatprep.subr.mxu0 0.0
      %1921 = vmatpush1.msra.mxu0 0.0
      %1922 = vmatprep.subr.mxu0 0.0
      %1923 = vmatpush1.msra.mxu0 0.0
      %1924 = vmatprep.subr.mxu0 0.0
      %1925 = vmatpush1.msra.mxu0 0.0
      %1926 = vmatprep.mubr.f32.mxu0 0.0
      %1927 = vmatmul.mubr.f32.gmra.mrb[0].mxu0 %v1842
      %v1928 = vpop.f32.mrb[0].mxu0
      %v1929 = vadd.f32 %v1802, %v1928
      %v1930 = vpop.f32.mrb[0].mxu0
      %v1931 = vadd.f32 %v1804, %v1930
      %1932 = vmatprep.mubr.f32.mxu0 0.0
      %1933 = vmatmul.mubr.f32.gmra.mrb[0].mxu0 %v1844
      %v1934 = vpop.f32.mrb[0].mxu0
      %v1935 = vadd.f32 %v1808, %v1934
      %v1936 = vpop.f32.mrb[0].mxu0
      %v1937 = vadd.f32 %v1810, %v1936
      %1938 = vmatprep.mubr.f32.mxu0 0.0
      %1939 = vmatmul.mubr.f32.gmra.mrb[0].mxu0 %v1846
      %v1940 = vpop.f32.mrb[0].mxu0
      %v1941 = vadd.f32 %v1814, %v1940
      %v1942 = vpop.f32.mrb[0].mxu0
      %v1943 = vadd.f32 %v1816, %v1942
      %1944 = vmatprep.mubr.f32.mxu0 0.0
      %1945 = vmatmul.mubr.f32.gmra.mrb[0].mxu0 %v1848
      %v1946 = vpop.f32.mrb[0].mxu0
      %v1947 = vadd.f32 %v1820, %v1946
      %v1948 = vpop.f32.mrb[0].mxu0
      %v1949 = vadd.f32 %v1822, %v1948
      %1950 = vmatprep.mubr.f32.mxu0 0.0
      %1951 = vmatmul.mubr.f32.gmra.mrb[0].mxu0 %v1850
      %v1952 = vpop.f32.mrb[0].mxu0
      %v1953 = vadd.f32 %v1826, %v1952
      %v1954 = vpop.f32.mrb[0].mxu0
      %v1955 = vadd.f32 %v1828, %v1954
      %1956 = vmatprep.mubr.f32.mxu0 0.0
      %1957 = vmatmul.mubr.f32.gmra.mrb[0].mxu0 %v1852
      %v1958 = vpop.f32.mrb[0].mxu0
      %v1959 = vadd.f32 %v1832, %v1958
      %v1960 = vpop.f32.mrb[0].mxu0
      %v1961 = vadd.f32 %v1834, %v1960
      %1962 = vmatprep.mubr.f32.mxu0 0.0
      %1963 = vmatmul.mubr.f32.gmra.mrb[0].mxu0 %v1854
      %v1964 = vpop.f32.mrb[0].mxu0
      %v1965 = vadd.f32 %v1838, %v1964
      %v1966 = vpop.f32.mrb[0].mxu0
      %v1967 = vadd.f32 %v1840, %v1966
      %1968 = vdwg.mxu0
      %v1969 = vld [vmem:[%s6] sm:$0x3]
      %v1971 = vlaneseq
      %v1972 = vshrl.u32 %v1971, 7
      %v1973 = vsub.s32 0, %v1972
      %v1974 = vrot.slane %v1969, %v1973
      %v1975 = vlaneseq
      %v1976 = vshrl.u32 %v1975, 7
      %v1977 = vsub.s32 1, %v1976
      %v1978 = vrot.slane %v1969, %v1977
      %v1981 = vadd.f32 %v1929, %v1974
      %v1982 = vadd.f32 %v1931, %v1978
      %v1983 = vadd.f32 %v1935, %v1974
      %v1984 = vadd.f32 %v1937, %v1978
      %v1985 = vadd.f32 %v1941, %v1974
      %v1986 = vadd.f32 %v1943, %v1978
      %v1987 = vadd.f32 %v1947, %v1974
      %v1988 = vadd.f32 %v1949, %v1978
      %v1989 = vadd.f32 %v1953, %v1974
      %v1990 = vadd.f32 %v1955, %v1978
      %v1991 = vadd.f32 %v1959, %v1974
      %v1992 = vadd.f32 %v1961, %v1978
      %v1993 = vadd.f32 %v1965, %v1974
      %v1994 = vadd.f32 %v1967, %v1978
      %v1995 = vmax.f32 %v1981, 0.0
      %v1996 = vmax.f32 %v1982, 0.0
      %v1997 = vmax.f32 %v1983, 0.0
      %v1998 = vmax.f32 %v1984, 0.0
      %v1999 = vmax.f32 %v1985, 0.0
      %v2000 = vmax.f32 %v1986, 0.0
      %v2001 = vmax.f32 %v1987, 0.0
      %v2002 = vmax.f32 %v1988, 0.0
      %v2003 = vmax.f32 %v1989, 0.0
      %v2004 = vmax.f32 %v1990, 0.0
      %v2005 = vmax.f32 %v1991, 0.0
      %v2006 = vmax.f32 %v1992, 0.0
      %v2007 = vmax.f32 %v1993, 0.0
      %v2008 = vmax.f32 %v1994, 0.0
      %v2009 = vld [vmem:[%s7] sm:$0xff]
      %v2010 = vld [vmem:[%s7 + $0x8] sm:$0xff]
      %v2011 = vld [vmem:[%s7 + $0x10] sm:$0xff]
      %vm2012 = vcmask 449536
      %v2014 = vsel %vm2012, %v2009, 0
      %v2017 = vsel %vm2012, %v2010, 0
      %v2020 = vsel %vm2012, %v2011, 0
      %v2023 = vsel %vm579, %v2007, 0
      %v2026 = vsel %vm579, %v2008, 0
      %2028 = vmatprep.subr.mxu0 %v1996
      %2029 = vmatpush1.msra.mxu0 %v1995
      %2030 = vmatprep.subr.mxu0 %v1998
      %2031 = vmatpush1.msra.mxu0 %v1997
      %2032 = vmatprep.subr.mxu0 %v2000
      %2033 = vmatpush1.msra.mxu0 %v1999
      %2034 = vmatprep.subr.mxu0 %v2002
      %2035 = vmatpush1.msra.mxu0 %v2001
      %2036 = vmatprep.subr.mxu0 %v2004
      %2037 = vmatpush1.msra.mxu0 %v2003
      %2038 = vmatprep.subr.mxu0 %v2006
      %2039 = vmatpush1.msra.mxu0 %v2005
      %2040 = vmatprep.subr.mxu0 %v2026
      %2041 = vmatpush1.msra.mxu0 %v2023
      %2042 = vmatprep.subr.mxu0 0.0
      %2043 = vmatpush1.msra.mxu0 0.0
      %2044 = vmatprep.subr.mxu0 0.0
      %2045 = vmatpush1.msra.mxu0 0.0
      %2046 = vmatprep.subr.mxu0 0.0
      %2047 = vmatpush1.msra.mxu0 0.0
      %2048 = vmatprep.subr.mxu0 0.0
      %2049 = vmatpush1.msra.mxu0 0.0
      %2050 = vmatprep.subr.mxu0 0.0
      %2051 = vmatpush1.msra.mxu0 0.0
      %2052 = vmatprep.subr.mxu0 0.0
      %2053 = vmatpush1.msra.mxu0 0.0
      %2054 = vmatprep.subr.mxu0 0.0
      %2055 = vmatpush1.msra.mxu0 0.0
      %2056 = vmatprep.subr.mxu0 0.0
      %2057 = vmatpush1.msra.mxu0 0.0
      %2058 = vmatprep.subr.mxu0 0.0
      %2059 = vmatpush1.msra.mxu0 0.0
      %2060 = vmatprep.subr.mxu0 0.0
      %2061 = vmatpush1.msra.mxu0 0.0
      %2062 = vmatprep.subr.mxu0 0.0
      %2063 = vmatpush1.msra.mxu0 0.0
      %2064 = vmatprep.subr.mxu0 0.0
      %2065 = vmatpush1.msra.mxu0 0.0
      %2066 = vmatprep.subr.mxu0 0.0
      %2067 = vmatpush1.msra.mxu0 0.0
      %2068 = vmatprep.subr.mxu0 0.0
      %2069 = vmatpush1.msra.mxu0 0.0
      %2070 = vmatprep.subr.mxu0 0.0
      %2071 = vmatpush1.msra.mxu0 0.0
      %2072 = vmatprep.subr.mxu0 0.0
      %2073 = vmatpush1.msra.mxu0 0.0
      %2074 = vmatprep.subr.mxu0 0.0
      %2075 = vmatpush1.msra.mxu0 0.0
      %2076 = vmatprep.subr.mxu0 0.0
      %2077 = vmatpush1.msra.mxu0 0.0
      %2078 = vmatprep.subr.mxu0 0.0
      %2079 = vmatpush1.msra.mxu0 0.0
      %2080 = vmatprep.subr.mxu0 0.0
      %2081 = vmatpush1.msra.mxu0 0.0
      %2082 = vmatprep.subr.mxu0 0.0
      %2083 = vmatpush1.msra.mxu0 0.0
      %2084 = vmatprep.subr.mxu0 0.0
      %2085 = vmatpush1.msra.mxu0 0.0
      %2086 = vmatprep.subr.mxu0 0.0
      %2087 = vmatpush1.msra.mxu0 0.0
      %2088 = vmatprep.subr.mxu0 0.0
      %2089 = vmatpush1.msra.mxu0 0.0
      %2090 = vmatprep.subr.mxu0 0.0
      %2091 = vmatpush1.msra.mxu0 0.0
      %2092 = vmatprep.mubr.f32.mxu0 0.0
      %2093 = vmatmul.mubr.f32.gmra.mrb[0].mxu0 %v2014
      %v2094 = vpop.f32.mrb[0].mxu0
      %v2095 = vadd.f32 0.0, %v2094
      %v2096 = vpop.f32.mrb[0].mxu0
      %v2097 = vadd.f32 0.0, %v2096
      %2098 = vmatprep.mubr.f32.mxu0 0.0
      %2099 = vmatmul.mubr.f32.gmra.mrb[0].mxu0 %v2017
      %v2100 = vpop.f32.mrb[0].mxu0
      %v2101 = vadd.f32 0.0, %v2100
      %v2102 = vpop.f32.mrb[0].mxu0
      %v2103 = vadd.f32 0.0, %v2102
      %2104 = vmatprep.mubr.f32.mxu0 0.0
      %2105 = vmatmul.mubr.f32.gmra.mrb[0].mxu0 %v2020
      %v2106 = vpop.f32.mrb[0].mxu0
      %v2107 = vadd.f32 0.0, %v2106
      %v2108 = vpop.f32.mrb[0].mxu0
      %v2109 = vadd.f32 0.0, %v2108
      %2110 = vdwg.mxu0
      %s2111 = scalar_lea.vmem %s7, 24
      %v2112 = vld [vmem:[%s2111] sm:$0xff]
      %v2113 = vld [vmem:[%s2111 + $0x8] sm:$0xff]
      %v2114 = vld [vmem:[%s2111 + $0x10] sm:$0xff]
      %v2116 = vsel %vm2012, %v2112, 0
      %v2119 = vsel %vm2012, %v2113, 0
      %v2122 = vsel %vm2012, %v2114, 0
      %2124 = vmatprep.subr.mxu0 %v1996
      %2125 = vmatpush1.msra.mxu0 %v1995
      %2126 = vmatprep.subr.mxu0 %v1998
      %2127 = vmatpush1.msra.mxu0 %v1997
      %2128 = vmatprep.subr.mxu0 %v2000
      %2129 = vmatpush1.msra.mxu0 %v1999
      %2130 = vmatprep.subr.mxu0 %v2002
      %2131 = vmatpush1.msra.mxu0 %v2001
      %2132 = vmatprep.subr.mxu0 %v2004
      %2133 = vmatpush1.msra.mxu0 %v2003
      %2134 = vmatprep.subr.mxu0 %v2006
      %2135 = vmatpush1.msra.mxu0 %v2005
      %2136 = vmatprep.subr.mxu0 %v2026
      %2137 = vmatpush1.msra.mxu0 %v2023
      %2138 = vmatprep.subr.mxu0 0.0
      %2139 = vmatpush1.msra.mxu0 0.0
      %2140 = vmatprep.subr.mxu0 0.0
      %2141 = vmatpush1.msra.mxu0 0.0
      %2142 = vmatprep.subr.mxu0 0.0
      %2143 = vmatpush1.msra.mxu0 0.0
      %2144 = vmatprep.subr.mxu0 0.0
      %2145 = vmatpush1.msra.mxu0 0.0
      %2146 = vmatprep.subr.mxu0 0.0
      %2147 = vmatpush1.msra.mxu0 0.0
      %2148 = vmatprep.subr.mxu0 0.0
      %2149 = vmatpush1.msra.mxu0 0.0
      %2150 = vmatprep.subr.mxu0 0.0
      %2151 = vmatpush1.msra.mxu0 0.0
      %2152 = vmatprep.subr.mxu0 0.0
      %2153 = vmatpush1.msra.mxu0 0.0
      %2154 = vmatprep.subr.mxu0 0.0
      %2155 = vmatpush1.msra.mxu0 0.0
      %2156 = vmatprep.subr.mxu0 0.0
      %2157 = vmatpush1.msra.mxu0 0.0
      %2158 = vmatprep.subr.mxu0 0.0
      %2159 = vmatpush1.msra.mxu0 0.0
      %2160 = vmatprep.subr.mxu0 0.0
      %2161 = vmatpush1.msra.mxu0 0.0
      %2162 = vmatprep.subr.mxu0 0.0
      %2163 = vmatpush1.msra.mxu0 0.0
      %2164 = vmatprep.subr.mxu0 0.0
      %2165 = vmatpush1.msra.mxu0 0.0
      %2166 = vmatprep.subr.mxu0 0.0
      %2167 = vmatpush1.msra.mxu0 0.0
      %2168 = vmatprep.subr.mxu0 0.0
      %2169 = vmatpush1.msra.mxu0 0.0
      %2170 = vmatprep.subr.mxu0 0.0
      %2171 = vmatpush1.msra.mxu0 0.0
      %2172 = vmatprep.subr.mxu0 0.0
      %2173 = vmatpush1.msra.mxu0 0.0
      %2174 = vmatprep.subr.mxu0 0.0
      %2175 = vmatpush1.msra.mxu0 0.0
      %2176 = vmatprep.subr.mxu0 0.0
      %2177 = vmatpush1.msra.mxu0 0.0
      %2178 = vmatprep.subr.mxu0 0.0
      %2179 = vmatpush1.msra.mxu0 0.0
      %2180 = vmatprep.subr.mxu0 0.0
      %2181 = vmatpush1.msra.mxu0 0.0
      %2182 = vmatprep.subr.mxu0 0.0
      %2183 = vmatpush1.msra.mxu0 0.0
      %2184 = vmatprep.subr.mxu0 0.0
      %2185 = vmatpush1.msra.mxu0 0.0
      %2186 = vmatprep.subr.mxu0 0.0
      %2187 = vmatpush1.msra.mxu0 0.0
      %2188 = vmatprep.mubr.f32.mxu0 0.0
      %2189 = vmatmul.mubr.f32.gmra.mrb[0].mxu0 %v2116
      %v2190 = vpop.f32.mrb[0].mxu0
      %v2191 = vadd.f32 0.0, %v2190
      %v2192 = vpop.f32.mrb[0].mxu0
      %v2193 = vadd.f32 0.0, %v2192
      %2194 = vmatprep.mubr.f32.mxu0 0.0
      %2195 = vmatmul.mubr.f32.gmra.mrb[0].mxu0 %v2119
      %v2196 = vpop.f32.mrb[0].mxu0
      %v2197 = vadd.f32 0.0, %v2196
      %v2198 = vpop.f32.mrb[0].mxu0
      %v2199 = vadd.f32 0.0, %v2198
      %2200 = vmatprep.mubr.f32.mxu0 0.0
      %2201 = vmatmul.mubr.f32.gmra.mrb[0].mxu0 %v2122
      %v2202 = vpop.f32.mrb[0].mxu0
      %v2203 = vadd.f32 0.0, %v2202
      %v2204 = vpop.f32.mrb[0].mxu0
      %v2205 = vadd.f32 0.0, %v2204
      %2206 = vdwg.mxu0
      %v2207 = vmax.f32 %v2095, %v2191
      %v2208 = vmax.f32 %v2097, %v2193
      %v2209 = vmax.f32 %v2101, %v2197
      %v2210 = vmax.f32 %v2103, %v2199
      %v2211 = vmax.f32 %v2107, %v2203
      %v2212 = vmax.f32 %v2109, %v2205
      %v2213 = vld [vmem:[%s8] sm:$0xff]
      %v2214 = vld [vmem:[%s8 + $0x8] sm:$0xff]
      %v2215 = vld [vmem:[%s8 + $0x10] sm:$0xff]
      %v2216 = vld [vmem:[%s8 + $0x18] sm:$0xff]
      %v2217 = vld [vmem:[%s8 + $0x20] sm:$0xff]
      %v2218 = vld [vmem:[%s8 + $0x28] sm:$0xff]
      %v2219 = vld [vmem:[%s8 + $0x30] sm:$0xff]
      %v2220 = vld [vmem:[%s8 + $0x38] sm:$0xff]
      %v2221 = vld [vmem:[%s8 + $0x40] sm:$0xff]
      %v2222 = vld [vmem:[%s8 + $0x48] sm:$0xff]
      %v2223 = vld [vmem:[%s8 + $0x50] sm:$0xff]
      %v2224 = vld [vmem:[%s8 + $0x58] sm:$0xff]
      %v2225 = vld [vmem:[%s8 + $0x60] sm:$0xff]
      %v2226 = vld [vmem:[%s8 + $0x68] sm:$0xff]
      %v2227 = vld [vmem:[%s8 + $0x70] sm:$0xff]
      %v2228 = vld [vmem:[%s8 + $0x78] sm:$0xff]
      %v2229 = vld [vmem:[%s8 + $0x80] sm:$0xff]
      %v2230 = vld [vmem:[%s8 + $0x88] sm:$0xff]
      %vm2231 = vcmask 130048
      %v2233 = vsel %vm2231, %v2208, 0
      %v2236 = vsel %vm2231, %v2210, 0
      %v2239 = vsel %vm2231, %v2212, 0
      %2241 = vmatprep.subr.mxu0 0.0
      %2242 = vmatpush1.msra.mxu0 %v2213
      %2243 = vmatprep.subr.mxu0 0.0
      %2244 = vmatpush1.msra.mxu0 %v2214
      %2245 = vmatprep.subr.mxu0 0.0
      %2246 = vmatpush1.msra.mxu0 %v2215
      %2247 = vmatprep.subr.mxu0 0.0
      %2248 = vmatpush1.msra.mxu0 %v2216
      %2249 = vmatprep.subr.mxu0 0.0
      %2250 = vmatpush1.msra.mxu0 %v2217
      %2251 = vmatprep.subr.mxu0 0.0
      %2252 = vmatpush1.msra.mxu0 %v2218
      %2253 = vmatprep.subr.mxu0 0.0
      %2254 = vmatpush1.msra.mxu0 %v2219
      %2255 = vmatprep.subr.mxu0 0.0
      %2256 = vmatpush1.msra.mxu0 %v2220
      %2257 = vmatprep.subr.mxu0 0.0
      %2258 = vmatpush1.msra.mxu0 %v2221
      %2259 = vmatprep.subr.mxu0 0.0
      %2260 = vmatpush1.msra.mxu0 %v2222
      %2261 = vmatprep.subr.mxu0 0.0
      %2262 = vmatpush1.msra.mxu0 %v2223
      %2263 = vmatprep.subr.mxu0 0.0
      %2264 = vmatpush1.msra.mxu0 %v2224
      %2265 = vmatprep.subr.mxu0 0.0
      %2266 = vmatpush1.msra.mxu0 %v2225
      %2267 = vmatprep.subr.mxu0 0.0
      %2268 = vmatpush1.msra.mxu0 %v2226
      %2269 = vmatprep.subr.mxu0 0.0
      %2270 = vmatpush1.msra.mxu0 %v2227
      %2271 = vmatprep.subr.mxu0 0.0
      %2272 = vmatpush1.msra.mxu0 %v2228
      %2273 = vmatprep.subr.mxu0 0.0
      %2274 = vmatpush1.msra.mxu0 %v2229
      %2275 = vmatprep.subr.mxu0 0.0
      %2276 = vmatpush1.msra.mxu0 %v2230
      %2277 = vmatprep.subr.mxu0 0.0
      %2278 = vmatpush1.msra.mxu0 0.0
      %2279 = vmatprep.subr.mxu0 0.0
      %2280 = vmatpush1.msra.mxu0 0.0
      %2281 = vmatprep.subr.mxu0 0.0
      %2282 = vmatpush1.msra.mxu0 0.0
      %2283 = vmatprep.subr.mxu0 0.0
      %2284 = vmatpush1.msra.mxu0 0.0
      %2285 = vmatprep.subr.mxu0 0.0
      %2286 = vmatpush1.msra.mxu0 0.0
      %2287 = vmatprep.subr.mxu0 0.0
      %2288 = vmatpush1.msra.mxu0 0.0
      %2289 = vmatprep.subr.mxu0 0.0
      %2290 = vmatpush1.msra.mxu0 0.0
      %2291 = vmatprep.subr.mxu0 0.0
      %2292 = vmatpush1.msra.mxu0 0.0
      %2293 = vmatprep.subr.mxu0 0.0
      %2294 = vmatpush1.msra.mxu0 0.0
      %2295 = vmatprep.subr.mxu0 0.0
      %2296 = vmatpush1.msra.mxu0 0.0
      %2297 = vmatprep.subr.mxu0 0.0
      %2298 = vmatpush1.msra.mxu0 0.0
      %2299 = vmatprep.subr.mxu0 0.0
      %2300 = vmatpush1.msra.mxu0 0.0
      %2301 = vmatprep.subr.mxu0 0.0
      %2302 = vmatpush1.msra.mxu0 0.0
      %2303 = vmatprep.subr.mxu0 0.0
      %2304 = vmatpush1.msra.mxu0 0.0
      %2305 = vmatprep.mubr.f32.mxu0 %v2233
      %2306 = vmatmul.mubr.f32.gmra.mrb[0].mxu0 %v2207
      %v2307 = vpop.f32.mrb[0].mxu0
      %v2308 = vadd.f32 0.0, %v2307
      %v2309 = vpop.f32.mrb[0].mxu0
      %2310 = vmatprep.mubr.f32.mxu0 %v2236
      %2311 = vmatmul.mubr.f32.gmra.mrb[0].mxu0 %v2209
      %v2312 = vpop.f32.mrb[0].mxu0
      %v2313 = vadd.f32 0.0, %v2312
      %v2314 = vpop.f32.mrb[0].mxu0
      %2315 = vmatprep.mubr.f32.mxu0 %v2239
      %2316 = vmatmul.mubr.f32.gmra.mrb[0].mxu0 %v2211
      %v2317 = vpop.f32.mrb[0].mxu0
      %v2318 = vadd.f32 0.0, %v2317
      %v2319 = vpop.f32.mrb[0].mxu0
      %2320 = vdwg.mxu0
      %s2321 = scalar_lea.vmem %s8, 144
      %v2322 = vld [vmem:[%s2321] sm:$0xff]
      %v2323 = vld [vmem:[%s2321 + $0x8] sm:$0xff]
      %v2324 = vld [vmem:[%s2321 + $0x10] sm:$0xff]
      %v2325 = vld [vmem:[%s2321 + $0x18] sm:$0xff]
      %v2326 = vld [vmem:[%s2321 + $0x20] sm:$0xff]
      %v2327 = vld [vmem:[%s2321 + $0x28] sm:$0xff]
      %v2328 = vld [vmem:[%s2321 + $0x30] sm:$0xff]
      %v2329 = vld [vmem:[%s2321 + $0x38] sm:$0xff]
      %v2330 = vld [vmem:[%s2321 + $0x40] sm:$0xff]
      %v2331 = vld [vmem:[%s2321 + $0x48] sm:$0xff]
      %v2332 = vld [vmem:[%s2321 + $0x50] sm:$0xff]
      %v2333 = vld [vmem:[%s2321 + $0x58] sm:$0xff]
      %v2334 = vld [vmem:[%s2321 + $0x60] sm:$0xff]
      %v2335 = vld [vmem:[%s2321 + $0x68] sm:$0xff]
      %v2336 = vld [vmem:[%s2321 + $0x70] sm:$0xff]
      %v2337 = vld [vmem:[%s2321 + $0x78] sm:$0xff]
      %v2338 = vld [vmem:[%s2321 + $0x80] sm:$0xff]
      %v2339 = vld [vmem:[%s2321 + $0x88] sm:$0xff]
      %2340 = vmatprep.subr.mxu0 0.0
      %2341 = vmatpush1.msra.mxu0 %v2322
      %2342 = vmatprep.subr.mxu0 0.0
      %2343 = vmatpush1.msra.mxu0 %v2323
      %2344 = vmatprep.subr.mxu0 0.0
      %2345 = vmatpush1.msra.mxu0 %v2324
      %2346 = vmatprep.subr.mxu0 0.0
      %2347 = vmatpush1.msra.mxu0 %v2325
      %2348 = vmatprep.subr.mxu0 0.0
      %2349 = vmatpush1.msra.mxu0 %v2326
      %2350 = vmatprep.subr.mxu0 0.0
      %2351 = vmatpush1.msra.mxu0 %v2327
      %2352 = vmatprep.subr.mxu0 0.0
      %2353 = vmatpush1.msra.mxu0 %v2328
      %2354 = vmatprep.subr.mxu0 0.0
      %2355 = vmatpush1.msra.mxu0 %v2329
      %2356 = vmatprep.subr.mxu0 0.0
      %2357 = vmatpush1.msra.mxu0 %v2330
      %2358 = vmatprep.subr.mxu0 0.0
      %2359 = vmatpush1.msra.mxu0 %v2331
      %2360 = vmatprep.subr.mxu0 0.0
      %2361 = vmatpush1.msra.mxu0 %v2332
      %2362 = vmatprep.subr.mxu0 0.0
      %2363 = vmatpush1.msra.mxu0 %v2333
      %2364 = vmatprep.subr.mxu0 0.0
      %2365 = vmatpush1.msra.mxu0 %v2334
      %2366 = vmatprep.subr.mxu0 0.0
      %2367 = vmatpush1.msra.mxu0 %v2335
      %2368 = vmatprep.subr.mxu0 0.0
      %2369 = vmatpush1.msra.mxu0 %v2336
      %2370 = vmatprep.subr.mxu0 0.0
      %2371 = vmatpush1.msra.mxu0 %v2337
      %2372 = vmatprep.subr.mxu0 0.0
      %2373 = vmatpush1.msra.mxu0 %v2338
      %2374 = vmatprep.subr.mxu0 0.0
      %2375 = vmatpush1.msra.mxu0 %v2339
      %2376 = vmatprep.subr.mxu0 0.0
      %2377 = vmatpush1.msra.mxu0 0.0
      %2378 = vmatprep.subr.mxu0 0.0
      %2379 = vmatpush1.msra.mxu0 0.0
      %2380 = vmatprep.subr.mxu0 0.0
      %2381 = vmatpush1.msra.mxu0 0.0
      %2382 = vmatprep.subr.mxu0 0.0
      %2383 = vmatpush1.msra.mxu0 0.0
      %2384 = vmatprep.subr.mxu0 0.0
      %2385 = vmatpush1.msra.mxu0 0.0
      %2386 = vmatprep.subr.mxu0 0.0
      %2387 = vmatpush1.msra.mxu0 0.0
      %2388 = vmatprep.subr.mxu0 0.0
      %2389 = vmatpush1.msra.mxu0 0.0
      %2390 = vmatprep.subr.mxu0 0.0
      %2391 = vmatpush1.msra.mxu0 0.0
      %2392 = vmatprep.subr.mxu0 0.0
      %2393 = vmatpush1.msra.mxu0 0.0
      %2394 = vmatprep.subr.mxu0 0.0
      %2395 = vmatpush1.msra.mxu0 0.0
      %2396 = vmatprep.subr.mxu0 0.0
      %2397 = vmatpush1.msra.mxu0 0.0
      %2398 = vmatprep.subr.mxu0 0.0
      %2399 = vmatpush1.msra.mxu0 0.0
      %2400 = vmatprep.subr.mxu0 0.0
      %2401 = vmatpush1.msra.mxu0 0.0
      %2402 = vmatprep.subr.mxu0 0.0
      %2403 = vmatpush1.msra.mxu0 0.0
      %2404 = vmatprep.mubr.f32.mxu0 %v2233
      %2405 = vmatmul.mubr.f32.gmra.mrb[0].mxu0 %v2207
      %v2406 = vpop.f32.mrb[0].mxu0
      %v2407 = vadd.f32 0.0, %v2406
      %v2408 = vpop.f32.mrb[0].mxu0
      %2409 = vmatprep.mubr.f32.mxu0 %v2236
      %2410 = vmatmul.mubr.f32.gmra.mrb[0].mxu0 %v2209
      %v2411 = vpop.f32.mrb[0].mxu0
      %v2412 = vadd.f32 0.0, %v2411
      %v2413 = vpop.f32.mrb[0].mxu0
      %2414 = vmatprep.mubr.f32.mxu0 %v2239
      %2415 = vmatmul.mubr.f32.gmra.mrb[0].mxu0 %v2211
      %v2416 = vpop.f32.mrb[0].mxu0
      %v2417 = vadd.f32 0.0, %v2416
      %v2418 = vpop.f32.mrb[0].mxu0
      %2419 = vdwg.mxu0
      %v2420 = vmax.f32 %v2308, %v2407
      %v2421 = vmax.f32 %v2313, %v2412
      %v2422 = vmax.f32 %v2318, %v2417
      %v2423 = vld [vmem:[%s9] sm:$0xff]
      %vm2424 = vcmask 195584
      %v2426 = vsel %vm2424, %v2423, 0
      %2428 = vmatprep.subr.mxu0 0.0
      %2429 = vmatpush1.msra.mxu0 %v2420
      %2430 = vmatprep.subr.mxu0 0.0
      %2431 = vmatpush1.msra.mxu0 %v2421
      %2432 = vmatprep.subr.mxu0 0.0
      %2433 = vmatpush1.msra.mxu0 %v2422
      %2434 = vmatprep.subr.mxu0 0.0
      %2435 = vmatpush1.msra.mxu0 0.0
      %2436 = vmatprep.subr.mxu0 0.0
      %2437 = vmatpush1.msra.mxu0 0.0
      %2438 = vmatprep.subr.mxu0 0.0
      %2439 = vmatpush1.msra.mxu0 0.0
      %2440 = vmatprep.subr.mxu0 0.0
      %2441 = vmatpush1.msra.mxu0 0.0
      %2442 = vmatprep.subr.mxu0 0.0
      %2443 = vmatpush1.msra.mxu0 0.0
      %2444 = vmatprep.subr.mxu0 0.0
      %2445 = vmatpush1.msra.mxu0 0.0
      %2446 = vmatprep.subr.mxu0 0.0
      %2447 = vmatpush1.msra.mxu0 0.0
      %2448 = vmatprep.subr.mxu0 0.0
      %2449 = vmatpush1.msra.mxu0 0.0
      %2450 = vmatprep.subr.mxu0 0.0
      %2451 = vmatpush1.msra.mxu0 0.0
      %2452 = vmatprep.subr.mxu0 0.0
      %2453 = vmatpush1.msra.mxu0 0.0
      %2454 = vmatprep.subr.mxu0 0.0
      %2455 = vmatpush1.msra.mxu0 0.0
      %2456 = vmatprep.subr.mxu0 0.0
      %2457 = vmatpush1.msra.mxu0 0.0
      %2458 = vmatprep.subr.mxu0 0.0
      %2459 = vmatpush1.msra.mxu0 0.0
      %2460 = vmatprep.subr.mxu0 0.0
      %2461 = vmatpush1.msra.mxu0 0.0
      %2462 = vmatprep.subr.mxu0 0.0
      %2463 = vmatpush1.msra.mxu0 0.0
      %2464 = vmatprep.subr.mxu0 0.0
      %2465 = vmatpush1.msra.mxu0 0.0
      %2466 = vmatprep.subr.mxu0 0.0
      %2467 = vmatpush1.msra.mxu0 0.0
      %2468 = vmatprep.subr.mxu0 0.0
      %2469 = vmatpush1.msra.mxu0 0.0
      %2470 = vmatprep.subr.mxu0 0.0
      %2471 = vmatpush1.msra.mxu0 0.0
      %2472 = vmatprep.subr.mxu0 0.0
      %2473 = vmatpush1.msra.mxu0 0.0
      %2474 = vmatprep.subr.mxu0 0.0
      %2475 = vmatpush1.msra.mxu0 0.0
      %2476 = vmatprep.subr.mxu0 0.0
      %2477 = vmatpush1.msra.mxu0 0.0
      %2478 = vmatprep.subr.mxu0 0.0
      %2479 = vmatpush1.msra.mxu0 0.0
      %2480 = vmatprep.subr.mxu0 0.0
      %2481 = vmatpush1.msra.mxu0 0.0
      %2482 = vmatprep.subr.mxu0 0.0
      %2483 = vmatpush1.msra.mxu0 0.0
      %2484 = vmatprep.subr.mxu0 0.0
      %2485 = vmatpush1.msra.mxu0 0.0
      %2486 = vmatprep.subr.mxu0 0.0
      %2487 = vmatpush1.msra.mxu0 0.0
      %2488 = vmatprep.subr.mxu0 0.0
      %2489 = vmatpush1.msra.mxu0 0.0
      %2490 = vmatprep.subr.mxu0 0.0
      %2491 = vmatpush1.msra.mxu0 0.0
      %2492 = vmatprep.mubr.f32.mxu0 0.0
      %2493 = vmatmul.mubr.f32.gmra.mrb[0].mxu0 %v2426
      %v2494 = vpop.f32.mrb[0].mxu0
      %v2495 = vadd.f32 0.0, %v2494
      %v2496 = vpop.f32.mrb[0].mxu0
      %2497 = vdwg.mxu0
      %v2498 = vld [vmem:[%s10] sm:$0xff]
      %v2499 = vld [vmem:[%s10 + $0x8] sm:$0xff]
      %v2500 = vld [vmem:[%s10 + $0x10] sm:$0xff]
      %v2501 = vld [vmem:[%s10 + $0x18] sm:$0xff]
      %v2502 = vld [vmem:[%s10 + $0x20] sm:$0xff]
      %v2503 = vld [vmem:[%s10 + $0x28] sm:$0xff]
      %v2504 = vld [vmem:[%s10 + $0x30] sm:$0xff]
      %v2505 = vld [vmem:[%s10 + $0x38] sm:$0xff]
      %v2506 = vld [vmem:[%s10 + $0x40] sm:$0xff]
      %v2507 = vld [vmem:[%s10 + $0x48] sm:$0xff]
      %v2508 = vld [vmem:[%s10 + $0x50] sm:$0xff]
      %v2509 = vld [vmem:[%s10 + $0x58] sm:$0xff]
      %v2510 = vld [vmem:[%s10 + $0x60] sm:$0xff]
      %v2511 = vld [vmem:[%s10 + $0x68] sm:$0xff]
      %v2512 = vld [vmem:[%s10 + $0x70] sm:$0xff]
      %v2513 = vld [vmem:[%s10 + $0x78] sm:$0xff]
      %v2514 = vld [vmem:[%s10 + $0x80] sm:$0xff]
      %v2515 = vld [vmem:[%s10 + $0x88] sm:$0xff]
      %s2516 = scalar_lea.vmem %s9, 8
      %v2517 = vld [vmem:[%s2516] sm:$0xff]
      %v2519 = vsel %vm2424, %v2517, 0
      %2521 = vmatprep.subr.mxu0 0.0
      %2522 = vmatpush1.msra.mxu0 %v2420
      %2523 = vmatprep.subr.mxu0 0.0
      %2524 = vmatpush1.msra.mxu0 %v2421
      %2525 = vmatprep.subr.mxu0 0.0
      %2526 = vmatpush1.msra.mxu0 %v2422
      %2527 = vmatprep.subr.mxu0 0.0
      %2528 = vmatpush1.msra.mxu0 0.0
      %2529 = vmatprep.subr.mxu0 0.0
      %2530 = vmatpush1.msra.mxu0 0.0
      %2531 = vmatprep.subr.mxu0 0.0
      %2532 = vmatpush1.msra.mxu0 0.0
      %2533 = vmatprep.subr.mxu0 0.0
      %2534 = vmatpush1.msra.mxu0 0.0
      %2535 = vmatprep.subr.mxu0 0.0
      %2536 = vmatpush1.msra.mxu0 0.0
      %2537 = vmatprep.subr.mxu0 0.0
      %2538 = vmatpush1.msra.mxu0 0.0
      %2539 = vmatprep.subr.mxu0 0.0
      %2540 = vmatpush1.msra.mxu0 0.0
      %2541 = vmatprep.subr.mxu0 0.0
      %2542 = vmatpush1.msra.mxu0 0.0
      %2543 = vmatprep.subr.mxu0 0.0
      %2544 = vmatpush1.msra.mxu0 0.0
      %2545 = vmatprep.subr.mxu0 0.0
      %2546 = vmatpush1.msra.mxu0 0.0
      %2547 = vmatprep.subr.mxu0 0.0
      %2548 = vmatpush1.msra.mxu0 0.0
      %2549 = vmatprep.subr.mxu0 0.0
      %2550 = vmatpush1.msra.mxu0 0.0
      %2551 = vmatprep.subr.mxu0 0.0
      %2552 = vmatpush1.msra.mxu0 0.0
      %2553 = vmatprep.subr.mxu0 0.0
      %2554 = vmatpush1.msra.mxu0 0.0
      %2555 = vmatprep.subr.mxu0 0.0
      %2556 = vmatpush1.msra.mxu0 0.0
      %2557 = vmatprep.subr.mxu0 0.0
      %2558 = vmatpush1.msra.mxu0 0.0
      %2559 = vmatprep.subr.mxu0 0.0
      %2560 = vmatpush1.msra.mxu0 0.0
      %2561 = vmatprep.subr.mxu0 0.0
      %2562 = vmatpush1.msra.mxu0 0.0
      %2563 = vmatprep.subr.mxu0 0.0
      %2564 = vmatpush1.msra.mxu0 0.0
      %2565 = vmatprep.subr.mxu0 0.0
      %2566 = vmatpush1.msra.mxu0 0.0
      %2567 = vmatprep.subr.mxu0 0.0
      %2568 = vmatpush1.msra.mxu0 0.0
      %2569 = vmatprep.subr.mxu0 0.0
      %2570 = vmatpush1.msra.mxu0 0.0
      %2571 = vmatprep.subr.mxu0 0.0
      %2572 = vmatpush1.msra.mxu0 0.0
      %2573 = vmatprep.subr.mxu0 0.0
      %2574 = vmatpush1.msra.mxu0 0.0
      %2575 = vmatprep.subr.mxu0 0.0
      %2576 = vmatpush1.msra.mxu0 0.0
      %2577 = vmatprep.subr.mxu0 0.0
      %2578 = vmatpush1.msra.mxu0 0.0
      %2579 = vmatprep.subr.mxu0 0.0
      %2580 = vmatpush1.msra.mxu0 0.0
      %2581 = vmatprep.subr.mxu0 0.0
      %2582 = vmatpush1.msra.mxu0 0.0
      %2583 = vmatprep.subr.mxu0 0.0
      %2584 = vmatpush1.msra.mxu0 0.0
      %2585 = vmatprep.mubr.f32.mxu0 0.0
      %2586 = vmatmul.mubr.f32.gmra.mrb[0].mxu0 %v2519
      %v2587 = vpop.f32.mrb[0].mxu0
      %v2588 = vadd.f32 0.0, %v2587
      %v2589 = vpop.f32.mrb[0].mxu0
      %2590 = vdwg.mxu0
      %s2591 = scalar_lea.vmem %s10, 144
      %v2592 = vld [vmem:[%s2591] sm:$0xff]
      %v2593 = vld [vmem:[%s2591 + $0x8] sm:$0xff]
      %v2594 = vld [vmem:[%s2591 + $0x10] sm:$0xff]
      %v2595 = vld [vmem:[%s2591 + $0x18] sm:$0xff]
      %v2596 = vld [vmem:[%s2591 + $0x20] sm:$0xff]
      %v2597 = vld [vmem:[%s2591 + $0x28] sm:$0xff]
      %v2598 = vld [vmem:[%s2591 + $0x30] sm:$0xff]
      %v2599 = vld [vmem:[%s2591 + $0x38] sm:$0xff]
      %v2600 = vld [vmem:[%s2591 + $0x40] sm:$0xff]
      %v2601 = vld [vmem:[%s2591 + $0x48] sm:$0xff]
      %v2602 = vld [vmem:[%s2591 + $0x50] sm:$0xff]
      %v2603 = vld [vmem:[%s2591 + $0x58] sm:$0xff]
      %v2604 = vld [vmem:[%s2591 + $0x60] sm:$0xff]
      %v2605 = vld [vmem:[%s2591 + $0x68] sm:$0xff]
      %v2606 = vld [vmem:[%s2591 + $0x70] sm:$0xff]
      %v2607 = vld [vmem:[%s2591 + $0x78] sm:$0xff]
      %v2608 = vld [vmem:[%s2591 + $0x80] sm:$0xff]
      %v2609 = vld [vmem:[%s2591 + $0x88] sm:$0xff]
      %vm2610 = vcmask 588800
      %v2612 = vsel %vm2610, %v2588, 0
      %2614 = vmatprep.subr.mxu0 %v2593
      %2615 = vmatpush1.msra.mxu0 %v2592
      %2616 = vmatprep.subr.mxu0 %v2595
      %2617 = vmatpush1.msra.mxu0 %v2594
      %2618 = vmatprep.subr.mxu0 %v2597
      %2619 = vmatpush1.msra.mxu0 %v2596
      %2620 = vmatprep.subr.mxu0 %v2599
      %2621 = vmatpush1.msra.mxu0 %v2598
      %2622 = vmatprep.subr.mxu0 %v2601
      %2623 = vmatpush1.msra.mxu0 %v2600
      %2624 = vmatprep.subr.mxu0 %v2603
      %2625 = vmatpush1.msra.mxu0 %v2602
      %2626 = vmatprep.subr.mxu0 %v2605
      %2627 = vmatpush1.msra.mxu0 %v2604
      %2628 = vmatprep.subr.mxu0 %v2607
      %2629 = vmatpush1.msra.mxu0 %v2606
      %2630 = vmatprep.subr.mxu0 %v2609
      %2631 = vmatpush1.msra.mxu0 %v2608
      %2632 = vmatprep.subr.mxu0 0.0
      %2633 = vmatpush1.msra.mxu0 0.0
      %2634 = vmatprep.subr.mxu0 0.0
      %2635 = vmatpush1.msra.mxu0 0.0
      %2636 = vmatprep.subr.mxu0 0.0
      %2637 = vmatpush1.msra.mxu0 0.0
      %2638 = vmatprep.subr.mxu0 0.0
      %2639 = vmatpush1.msra.mxu0 0.0
      %2640 = vmatprep.subr.mxu0 0.0
      %2641 = vmatpush1.msra.mxu0 0.0
      %2642 = vmatprep.subr.mxu0 0.0
      %2643 = vmatpush1.msra.mxu0 0.0
      %2644 = vmatprep.subr.mxu0 0.0
      %2645 = vmatpush1.msra.mxu0 0.0
      %2646 = vmatprep.subr.mxu0 0.0
      %2647 = vmatpush1.msra.mxu0 0.0
      %2648 = vmatprep.subr.mxu0 0.0
      %2649 = vmatpush1.msra.mxu0 0.0
      %2650 = vmatprep.subr.mxu0 0.0
      %2651 = vmatpush1.msra.mxu0 0.0
      %2652 = vmatprep.subr.mxu0 0.0
      %2653 = vmatpush1.msra.mxu0 0.0
      %2654 = vmatprep.subr.mxu0 0.0
      %2655 = vmatpush1.msra.mxu0 0.0
      %2656 = vmatprep.subr.mxu0 0.0
      %2657 = vmatpush1.msra.mxu0 0.0
      %2658 = vmatprep.subr.mxu0 0.0
      %2659 = vmatpush1.msra.mxu0 0.0
      %2660 = vmatprep.subr.mxu0 0.0
      %2661 = vmatpush1.msra.mxu0 0.0
      %2662 = vmatprep.subr.mxu0 0.0
      %2663 = vmatpush1.msra.mxu0 0.0
      %2664 = vmatprep.subr.mxu0 0.0
      %2665 = vmatpush1.msra.mxu0 0.0
      %2666 = vmatprep.subr.mxu0 0.0
      %2667 = vmatpush1.msra.mxu0 0.0
      %2668 = vmatprep.subr.mxu0 0.0
      %2669 = vmatpush1.msra.mxu0 0.0
      %2670 = vmatprep.subr.mxu0 0.0
      %2671 = vmatpush1.msra.mxu0 0.0
      %2672 = vmatprep.subr.mxu0 0.0
      %2673 = vmatpush1.msra.mxu0 0.0
      %2674 = vmatprep.subr.mxu0 0.0
      %2675 = vmatpush1.msra.mxu0 0.0
      %2676 = vmatprep.subr.mxu0 0.0
      %2677 = vmatpush1.msra.mxu0 0.0
      %2678 = vmatprep.mubr.f32.mxu0 0.0
      %2679 = vmatmul.mubr.f32.gmra.mrb[0].mxu0 %v2612
      %v2680 = vpop.f32.mrb[0].mxu0
      %v2681 = vadd.f32 0.0, %v2680
      %v2682 = vpop.f32.mrb[0].mxu0
      %v2683 = vadd.f32 0.0, %v2682
      %2684 = vdwg.mxu0
      %v2686 = vsel %vm2610, %v2495, 0
      %2688 = vmatprep.subr.mxu0 %v2499
      %2689 = vmatpush1.msra.mxu0 %v2498
      %2690 = vmatprep.subr.mxu0 %v2501
      %2691 = vmatpush1.msra.mxu0 %v2500
      %2692 = vmatprep.subr.mxu0 %v2503
      %2693 = vmatpush1.msra.mxu0 %v2502
      %2694 = vmatprep.subr.mxu0 %v2505
      %2695 = vmatpush1.msra.mxu0 %v2504
      %2696 = vmatprep.subr.mxu0 %v2507
      %2697 = vmatpush1.msra.mxu0 %v2506
      %2698 = vmatprep.subr.mxu0 %v2509
      %2699 = vmatpush1.msra.mxu0 %v2508
      %2700 = vmatprep.subr.mxu0 %v2511
      %2701 = vmatpush1.msra.mxu0 %v2510
      %2702 = vmatprep.subr.mxu0 %v2513
      %2703 = vmatpush1.msra.mxu0 %v2512
      %2704 = vmatprep.subr.mxu0 %v2515
      %2705 = vmatpush1.msra.mxu0 %v2514
      %2706 = vmatprep.subr.mxu0 0.0
      %2707 = vmatpush1.msra.mxu0 0.0
      %2708 = vmatprep.subr.mxu0 0.0
      %2709 = vmatpush1.msra.mxu0 0.0
      %2710 = vmatprep.subr.mxu0 0.0
      %2711 = vmatpush1.msra.mxu0 0.0
      %2712 = vmatprep.subr.mxu0 0.0
      %2713 = vmatpush1.msra.mxu0 0.0
      %2714 = vmatprep.subr.mxu0 0.0
      %2715 = vmatpush1.msra.mxu0 0.0
      %2716 = vmatprep.subr.mxu0 0.0
      %2717 = vmatpush1.msra.mxu0 0.0
      %2718 = vmatprep.subr.mxu0 0.0
      %2719 = vmatpush1.msra.mxu0 0.0
      %2720 = vmatprep.subr.mxu0 0.0
      %2721 = vmatpush1.msra.mxu0 0.0
      %2722 = vmatprep.subr.mxu0 0.0
      %2723 = vmatpush1.msra.mxu0 0.0
      %2724 = vmatprep.subr.mxu0 0.0
      %2725 = vmatpush1.msra.mxu0 0.0
      %2726 = vmatprep.subr.mxu0 0.0
      %2727 = vmatpush1.msra.mxu0 0.0
      %2728 = vmatprep.subr.mxu0 0.0
      %2729 = vmatpush1.msra.mxu0 0.0
      %2730 = vmatprep.subr.mxu0 0.0
      %2731 = vmatpush1.msra.mxu0 0.0
      %2732 = vmatprep.subr.mxu0 0.0
      %2733 = vmatpush1.msra.mxu0 0.0
      %2734 = vmatprep.subr.mxu0 0.0
      %2735 = vmatpush1.msra.mxu0 0.0
      %2736 = vmatprep.subr.mxu0 0.0
      %2737 = vmatpush1.msra.mxu0 0.0
      %2738 = vmatprep.subr.mxu0 0.0
      %2739 = vmatpush1.msra.mxu0 0.0
      %2740 = vmatprep.subr.mxu0 0.0
      %2741 = vmatpush1.msra.mxu0 0.0
      %2742 = vmatprep.subr.mxu0 0.0
      %2743 = vmatpush1.msra.mxu0 0.0
      %2744 = vmatprep.subr.mxu0 0.0
      %2745 = vmatpush1.msra.mxu0 0.0
      %2746 = vmatprep.subr.mxu0 0.0
      %2747 = vmatpush1.msra.mxu0 0.0
      %2748 = vmatprep.subr.mxu0 0.0
      %2749 = vmatpush1.msra.mxu0 0.0
      %2750 = vmatprep.subr.mxu0 0.0
      %2751 = vmatpush1.msra.mxu0 0.0
      %2752 = vmatprep.mubr.f32.mxu0 0.0
      %2753 = vmatmul.mubr.f32.gmra.mrb[0].mxu0 %v2686
      %v2754 = vpop.f32.mrb[0].mxu0
      %v2755 = vadd.f32 %v2681, %v2754
      %v2756 = vpop.f32.mrb[0].mxu0
      %v2757 = vadd.f32 %v2683, %v2756
      %2758 = vdwg.mxu0
      %s2759 = scalar_lea.vmem %s9, 16
      %v2760 = vld [vmem:[%s2759] sm:$0xff]
      %v2762 = vsel %vm2424, %v2760, 0
      %2764 = vmatprep.subr.mxu0 0.0
      %2765 = vmatpush1.msra.mxu0 %v2420
      %2766 = vmatprep.subr.mxu0 0.0
      %2767 = vmatpush1.msra.mxu0 %v2421
      %2768 = vmatprep.subr.mxu0 0.0
      %2769 = vmatpush1.msra.mxu0 %v2422
      %2770 = vmatprep.subr.mxu0 0.0
      %2771 = vmatpush1.msra.mxu0 0.0
      %2772 = vmatprep.subr.mxu0 0.0
      %2773 = vmatpush1.msra.mxu0 0.0
      %2774 = vmatprep.subr.mxu0 0.0
      %2775 = vmatpush1.msra.mxu0 0.0
      %2776 = vmatprep.subr.mxu0 0.0
      %2777 = vmatpush1.msra.mxu0 0.0
      %2778 = vmatprep.subr.mxu0 0.0
      %2779 = vmatpush1.msra.mxu0 0.0
      %2780 = vmatprep.subr.mxu0 0.0
      %2781 = vmatpush1.msra.mxu0 0.0
      %2782 = vmatprep.subr.mxu0 0.0
      %2783 = vmatpush1.msra.mxu0 0.0
      %2784 = vmatprep.subr.mxu0 0.0
      %2785 = vmatpush1.msra.mxu0 0.0
      %2786 = vmatprep.subr.mxu0 0.0
      %2787 = vmatpush1.msra.mxu0 0.0
      %2788 = vmatprep.subr.mxu0 0.0
      %2789 = vmatpush1.msra.mxu0 0.0
      %2790 = vmatprep.subr.mxu0 0.0
      %2791 = vmatpush1.msra.mxu0 0.0
      %2792 = vmatprep.subr.mxu0 0.0
      %2793 = vmatpush1.msra.mxu0 0.0
      %2794 = vmatprep.subr.mxu0 0.0
      %2795 = vmatpush1.msra.mxu0 0.0
      %2796 = vmatprep.subr.mxu0 0.0
      %2797 = vmatpush1.msra.mxu0 0.0
      %2798 = vmatprep.subr.mxu0 0.0
      %2799 = vmatpush1.msra.mxu0 0.0
      %2800 = vmatprep.subr.mxu0 0.0
      %2801 = vmatpush1.msra.mxu0 0.0
      %2802 = vmatprep.subr.mxu0 0.0
      %2803 = vmatpush1.msra.mxu0 0.0
      %2804 = vmatprep.subr.mxu0 0.0
      %2805 = vmatpush1.msra.mxu0 0.0
      %2806 = vmatprep.subr.mxu0 0.0
      %2807 = vmatpush1.msra.mxu0 0.0
      %2808 = vmatprep.subr.mxu0 0.0
      %2809 = vmatpush1.msra.mxu0 0.0
      %2810 = vmatprep.subr.mxu0 0.0
      %2811 = vmatpush1.msra.mxu0 0.0
      %2812 = vmatprep.subr.mxu0 0.0
      %2813 = vmatpush1.msra.mxu0 0.0
      %2814 = vmatprep.subr.mxu0 0.0
      %2815 = vmatpush1.msra.mxu0 0.0
      %2816 = vmatprep.subr.mxu0 0.0
      %2817 = vmatpush1.msra.mxu0 0.0
      %2818 = vmatprep.subr.mxu0 0.0
      %2819 = vmatpush1.msra.mxu0 0.0
      %2820 = vmatprep.subr.mxu0 0.0
      %2821 = vmatpush1.msra.mxu0 0.0
      %2822 = vmatprep.subr.mxu0 0.0
      %2823 = vmatpush1.msra.mxu0 0.0
      %2824 = vmatprep.subr.mxu0 0.0
      %2825 = vmatpush1.msra.mxu0 0.0
      %2826 = vmatprep.subr.mxu0 0.0
      %2827 = vmatpush1.msra.mxu0 0.0
      %2828 = vmatprep.mubr.f32.mxu0 0.0
      %2829 = vmatmul.mubr.f32.gmra.mrb[0].mxu0 %v2762
      %v2830 = vpop.f32.mrb[0].mxu0
      %v2831 = vadd.f32 0.0, %v2830
      %v2832 = vpop.f32.mrb[0].mxu0
      %2833 = vdwg.mxu0
      %s2834 = scalar_lea.vmem %s10, 288
      %v2835 = vld [vmem:[%s2834] sm:$0xff]
      %v2836 = vld [vmem:[%s2834 + $0x8] sm:$0xff]
      %v2837 = vld [vmem:[%s2834 + $0x10] sm:$0xff]
      %v2838 = vld [vmem:[%s2834 + $0x18] sm:$0xff]
      %v2839 = vld [vmem:[%s2834 + $0x20] sm:$0xff]
      %v2840 = vld [vmem:[%s2834 + $0x28] sm:$0xff]
      %v2841 = vld [vmem:[%s2834 + $0x30] sm:$0xff]
      %v2842 = vld [vmem:[%s2834 + $0x38] sm:$0xff]
      %v2843 = vld [vmem:[%s2834 + $0x40] sm:$0xff]
      %v2844 = vld [vmem:[%s2834 + $0x48] sm:$0xff]
      %v2845 = vld [vmem:[%s2834 + $0x50] sm:$0xff]
      %v2846 = vld [vmem:[%s2834 + $0x58] sm:$0xff]
      %v2847 = vld [vmem:[%s2834 + $0x60] sm:$0xff]
      %v2848 = vld [vmem:[%s2834 + $0x68] sm:$0xff]
      %v2849 = vld [vmem:[%s2834 + $0x70] sm:$0xff]
      %v2850 = vld [vmem:[%s2834 + $0x78] sm:$0xff]
      %v2851 = vld [vmem:[%s2834 + $0x80] sm:$0xff]
      %v2852 = vld [vmem:[%s2834 + $0x88] sm:$0xff]
      %v2854 = vsel %vm2610, %v2831, 0
      %2856 = vmatprep.subr.mxu0 %v2836
      %2857 = vmatpush1.msra.mxu0 %v2835
      %2858 = vmatprep.subr.mxu0 %v2838
      %2859 = vmatpush1.msra.mxu0 %v2837
      %2860 = vmatprep.subr.mxu0 %v2840
      %2861 = vmatpush1.msra.mxu0 %v2839
      %2862 = vmatprep.subr.mxu0 %v2842
      %2863 = vmatpush1.msra.mxu0 %v2841
      %2864 = vmatprep.subr.mxu0 %v2844
      %2865 = vmatpush1.msra.mxu0 %v2843
      %2866 = vmatprep.subr.mxu0 %v2846
      %2867 = vmatpush1.msra.mxu0 %v2845
      %2868 = vmatprep.subr.mxu0 %v2848
      %2869 = vmatpush1.msra.mxu0 %v2847
      %2870 = vmatprep.subr.mxu0 %v2850
      %2871 = vmatpush1.msra.mxu0 %v2849
      %2872 = vmatprep.subr.mxu0 %v2852
      %2873 = vmatpush1.msra.mxu0 %v2851
      %2874 = vmatprep.subr.mxu0 0.0
      %2875 = vmatpush1.msra.mxu0 0.0
      %2876 = vmatprep.subr.mxu0 0.0
      %2877 = vmatpush1.msra.mxu0 0.0
      %2878 = vmatprep.subr.mxu0 0.0
      %2879 = vmatpush1.msra.mxu0 0.0
      %2880 = vmatprep.subr.mxu0 0.0
      %2881 = vmatpush1.msra.mxu0 0.0
      %2882 = vmatprep.subr.mxu0 0.0
      %2883 = vmatpush1.msra.mxu0 0.0
      %2884 = vmatprep.subr.mxu0 0.0
      %2885 = vmatpush1.msra.mxu0 0.0
      %2886 = vmatprep.subr.mxu0 0.0
      %2887 = vmatpush1.msra.mxu0 0.0
      %2888 = vmatprep.subr.mxu0 0.0
      %2889 = vmatpush1.msra.mxu0 0.0
      %2890 = vmatprep.subr.mxu0 0.0
      %2891 = vmatpush1.msra.mxu0 0.0
      %2892 = vmatprep.subr.mxu0 0.0
      %2893 = vmatpush1.msra.mxu0 0.0
      %2894 = vmatprep.subr.mxu0 0.0
      %2895 = vmatpush1.msra.mxu0 0.0
      %2896 = vmatprep.subr.mxu0 0.0
      %2897 = vmatpush1.msra.mxu0 0.0
      %2898 = vmatprep.subr.mxu0 0.0
      %2899 = vmatpush1.msra.mxu0 0.0
      %2900 = vmatprep.subr.mxu0 0.0
      %2901 = vmatpush1.msra.mxu0 0.0
      %2902 = vmatprep.subr.mxu0 0.0
      %2903 = vmatpush1.msra.mxu0 0.0
      %2904 = vmatprep.subr.mxu0 0.0
      %2905 = vmatpush1.msra.mxu0 0.0
      %2906 = vmatprep.subr.mxu0 0.0
      %2907 = vmatpush1.msra.mxu0 0.0
      %2908 = vmatprep.subr.mxu0 0.0
      %2909 = vmatpush1.msra.mxu0 0.0
      %2910 = vmatprep.subr.mxu0 0.0
      %2911 = vmatpush1.msra.mxu0 0.0
      %2912 = vmatprep.subr.mxu0 0.0
      %2913 = vmatpush1.msra.mxu0 0.0
      %2914 = vmatprep.subr.mxu0 0.0
      %2915 = vmatpush1.msra.mxu0 0.0
      %2916 = vmatprep.subr.mxu0 0.0
      %2917 = vmatpush1.msra.mxu0 0.0
      %2918 = vmatprep.subr.mxu0 0.0
      %2919 = vmatpush1.msra.mxu0 0.0
      %2920 = vmatprep.mubr.f32.mxu0 0.0
      %2921 = vmatmul.mubr.f32.gmra.mrb[0].mxu0 %v2854
      %v2922 = vpop.f32.mrb[0].mxu0
      %v2923 = vadd.f32 0.0, %v2922
      %v2924 = vpop.f32.mrb[0].mxu0
      %v2925 = vadd.f32 0.0, %v2924
      %2926 = vdwg.mxu0
      %v2927 = vadd.f32 %v2755, %v2923
      %v2928 = vadd.f32 %v2757, %v2925
      %v2929 = vld [vmem:[%s11] sm:$0x3]
      %v2931 = vlaneseq
      %v2932 = vshrl.u32 %v2931, 7
      %v2933 = vsub.s32 0, %v2932
      %v2934 = vrot.slane %v2929, %v2933
      %v2935 = vlaneseq
      %v2936 = vshrl.u32 %v2935, 7
      %v2937 = vsub.s32 1, %v2936
      %v2938 = vrot.slane %v2929, %v2937
      %v2941 = vadd.f32 %v2927, %v2934
      %v2942 = vadd.f32 %v2928, %v2938
      %v2943 = vmax.f32 %v2941, 0.0
      %v2944 = vmax.f32 %v2942, 0.0
      %v2945 = vld [vmem:[%s12] sm:$0xff]
      %v2946 = vld [vmem:[%s12 + $0x8] sm:$0xff]
      %v2947 = vld [vmem:[%s12 + $0x10] sm:$0xff]
      %v2948 = vld [vmem:[%s12 + $0x18] sm:$0xff]
      %v2949 = vld [vmem:[%s12 + $0x20] sm:$0xff]
      %v2950 = vld [vmem:[%s12 + $0x28] sm:$0xff]
      %v2951 = vld [vmem:[%s12 + $0x30] sm:$0xff]
      %v2952 = vld [vmem:[%s12 + $0x38] sm:$0xff]
      %v2953 = vld [vmem:[%s12 + $0x40] sm:$0xff]
      %v2954 = vld [vmem:[%s12 + $0x48] sm:$0xff]
      %v2955 = vld [vmem:[%s12 + $0x50] sm:$0xff]
      %v2956 = vld [vmem:[%s12 + $0x58] sm:$0xff]
      %v2957 = vld [vmem:[%s12 + $0x60] sm:$0xff]
      %v2958 = vld [vmem:[%s12 + $0x68] sm:$0xff]
      %v2959 = vld [vmem:[%s12 + $0x70] sm:$0xff]
      %v2960 = vld [vmem:[%s12 + $0x78] sm:$0xff]
      %v2961 = vld [vmem:[%s12 + $0x80] sm:$0xff]
      %v2962 = vld [vmem:[%s12 + $0x88] sm:$0xff]
      %v2963 = vld [vmem:[%s12 + $0x90] sm:$0xff]
      %v2964 = vld [vmem:[%s12 + $0x98] sm:$0xff]
      %v2965 = vld [vmem:[%s12 + $0xa0] sm:$0xff]
      %v2966 = vld [vmem:[%s12 + $0xa8] sm:$0xff]
      %v2967 = vld [vmem:[%s12 + $0xb0] sm:$0xff]
      %v2968 = vld [vmem:[%s12 + $0xb8] sm:$0xff]
      %v2969 = vld [vmem:[%s12 + $0xc0] sm:$0xff]
      %v2970 = vld [vmem:[%s13] sm:$0x1]
      %v2972 = vlaneseq
      %v2973 = vshrl.u32 %v2972, 7
      %v2974 = vsub.s32 0, %v2973
      %v2975 = vrot.slane %v2970, %v2974
      %v2978 = vsel %vm2610, %v2944, 0
      %2980 = vmatprep.subr.mxu0 0.0
      %2981 = vmatpush1.msra.mxu0 %v2945
      %2982 = vmatprep.subr.mxu0 0.0
      %2983 = vmatpush1.msra.mxu0 %v2946
      %2984 = vmatprep.subr.mxu0 0.0
      %2985 = vmatpush1.msra.mxu0 %v2947
      %2986 = vmatprep.subr.mxu0 0.0
      %2987 = vmatpush1.msra.mxu0 %v2948
      %2988 = vmatprep.subr.mxu0 0.0
      %2989 = vmatpush1.msra.mxu0 %v2949
      %2990 = vmatprep.subr.mxu0 0.0
      %2991 = vmatpush1.msra.mxu0 %v2950
      %2992 = vmatprep.subr.mxu0 0.0
      %2993 = vmatpush1.msra.mxu0 %v2951
      %2994 = vmatprep.subr.mxu0 0.0
      %2995 = vmatpush1.msra.mxu0 %v2952
      %2996 = vmatprep.subr.mxu0 0.0
      %2997 = vmatpush1.msra.mxu0 %v2953
      %2998 = vmatprep.subr.mxu0 0.0
      %2999 = vmatpush1.msra.mxu0 %v2954
      %3000 = vmatprep.subr.mxu0 0.0
      %3001 = vmatpush1.msra.mxu0 %v2955
      %3002 = vmatprep.subr.mxu0 0.0
      %3003 = vmatpush1.msra.mxu0 %v2956
      %3004 = vmatprep.subr.mxu0 0.0
      %3005 = vmatpush1.msra.mxu0 %v2957
      %3006 = vmatprep.subr.mxu0 0.0
      %3007 = vmatpush1.msra.mxu0 %v2958
      %3008 = vmatprep.subr.mxu0 0.0
      %3009 = vmatpush1.msra.mxu0 %v2959
      %3010 = vmatprep.subr.mxu0 0.0
      %3011 = vmatpush1.msra.mxu0 %v2960
      %3012 = vmatprep.subr.mxu0 0.0
      %3013 = vmatpush1.msra.mxu0 %v2961
      %3014 = vmatprep.subr.mxu0 0.0
      %3015 = vmatpush1.msra.mxu0 %v2962
      %3016 = vmatprep.subr.mxu0 0.0
      %3017 = vmatpush1.msra.mxu0 %v2963
      %3018 = vmatprep.subr.mxu0 0.0
      %3019 = vmatpush1.msra.mxu0 %v2964
      %3020 = vmatprep.subr.mxu0 0.0
      %3021 = vmatpush1.msra.mxu0 %v2965
      %3022 = vmatprep.subr.mxu0 0.0
      %3023 = vmatpush1.msra.mxu0 %v2966
      %3024 = vmatprep.subr.mxu0 0.0
      %3025 = vmatpush1.msra.mxu0 %v2967
      %3026 = vmatprep.subr.mxu0 0.0
      %3027 = vmatpush1.msra.mxu0 %v2968
      %3028 = vmatprep.subr.mxu0 0.0
      %3029 = vmatpush1.msra.mxu0 %v2969
      %3030 = vmatprep.subr.mxu0 0.0
      %3031 = vmatpush1.msra.mxu0 0.0
      %3032 = vmatprep.subr.mxu0 0.0
      %3033 = vmatpush1.msra.mxu0 0.0
      %3034 = vmatprep.subr.mxu0 0.0
      %3035 = vmatpush1.msra.mxu0 0.0
      %3036 = vmatprep.subr.mxu0 0.0
      %3037 = vmatpush1.msra.mxu0 0.0
      %3038 = vmatprep.subr.mxu0 0.0
      %3039 = vmatpush1.msra.mxu0 0.0
      %3040 = vmatprep.subr.mxu0 0.0
      %3041 = vmatpush1.msra.mxu0 0.0
      %3042 = vmatprep.subr.mxu0 0.0
      %3043 = vmatpush1.msra.mxu0 0.0
      %3044 = vmatprep.mubr.f32.mxu0 %v2978
      %3045 = vmatmul.mubr.f32.gmra.mrb[0].mxu0 %v2943
      %v3046 = vpop.f32.mrb[0].mxu0
      %v3047 = vadd.f32 %v2975, %v3046
      %v3048 = vpop.f32.mrb[0].mxu0
      %3049 = vdwg.mxu0
      %v3050 = vmax.f32 %v3047, 0.0
      %v3051 = vld [vmem:[%s14] sm:$0xff]
      %v3052 = vld [vmem:[%s14 + $0x8] sm:$0xff]
      %v3053 = vld [vmem:[%s14 + $0x10] sm:$0xff]
      %v3054 = vld [vmem:[%s14 + $0x18] sm:$0xff]
      %v3055 = vld [vmem:[%s14 + $0x20] sm:$0xff]
      %v3056 = vld [vmem:[%s14 + $0x28] sm:$0xff]
      %v3057 = vld [vmem:[%s14 + $0x30] sm:$0xff]
      %v3058 = vld [vmem:[%s14 + $0x38] sm:$0xff]
      %v3059 = vld [vmem:[%s14 + $0x40] sm:$0xff]
      %v3060 = vld [vmem:[%s14 + $0x48] sm:$0xff]
      %v3061 = vld [vmem:[%s14 + $0x50] sm:$0xff]
      %v3062 = vld [vmem:[%s14 + $0x58] sm:$0xff]
      %v3063 = vld [vmem:[%s14 + $0x60] sm:$0xf]
      %v3064 = vld [vmem:[%s15] sm:$0x1]
      %v3066 = vlaneseq
      %v3067 = vshrl.u32 %v3066, 7
      %v3068 = vsub.s32 0, %v3067
      %v3069 = vrot.slane %v3064, %v3068
      %vm3071 = vcmask 818176
      %v3073 = vsel %vm3071, %v3050, 0
      %v3076 = vsel %vm1411, %v3063, 0
      %3078 = vmatprep.subr.mxu0 0.0
      %3079 = vmatpush1.msra.mxu0 %v3051
      %3080 = vmatprep.subr.mxu0 0.0
      %3081 = vmatpush1.msra.mxu0 %v3052
      %3082 = vmatprep.subr.mxu0 0.0
      %3083 = vmatpush1.msra.mxu0 %v3053
      %3084 = vmatprep.subr.mxu0 0.0
      %3085 = vmatpush1.msra.mxu0 %v3054
      %3086 = vmatprep.subr.mxu0 0.0
      %3087 = vmatpush1.msra.mxu0 %v3055
      %3088 = vmatprep.subr.mxu0 0.0
      %3089 = vmatpush1.msra.mxu0 %v3056
      %3090 = vmatprep.subr.mxu0 0.0
      %3091 = vmatpush1.msra.mxu0 %v3057
      %3092 = vmatprep.subr.mxu0 0.0
      %3093 = vmatpush1.msra.mxu0 %v3058
      %3094 = vmatprep.subr.mxu0 0.0
      %3095 = vmatpush1.msra.mxu0 %v3059
      %3096 = vmatprep.subr.mxu0 0.0
      %3097 = vmatpush1.msra.mxu0 %v3060
      %3098 = vmatprep.subr.mxu0 0.0
      %3099 = vmatpush1.msra.mxu0 %v3061
      %3100 = vmatprep.subr.mxu0 0.0
      %3101 = vmatpush1.msra.mxu0 %v3062
      %3102 = vmatprep.subr.mxu0 0.0
      %3103 = vmatpush1.msra.mxu0 %v3076
      %3104 = vmatprep.subr.mxu0 0.0
      %3105 = vmatpush1.msra.mxu0 0.0
      %3106 = vmatprep.subr.mxu0 0.0
      %3107 = vmatpush1.msra.mxu0 0.0
      %3108 = vmatprep.subr.mxu0 0.0
      %3109 = vmatpush1.msra.mxu0 0.0
      %3110 = vmatprep.subr.mxu0 0.0
      %3111 = vmatpush1.msra.mxu0 0.0
      %3112 = vmatprep.subr.mxu0 0.0
      %3113 = vmatpush1.msra.mxu0 0.0
      %3114 = vmatprep.subr.mxu0 0.0
      %3115 = vmatpush1.msra.mxu0 0.0
      %3116 = vmatprep.subr.mxu0 0.0
      %3117 = vmatpush1.msra.mxu0 0.0
      %3118 = vmatprep.subr.mxu0 0.0
      %3119 = vmatpush1.msra.mxu0 0.0
      %3120 = vmatprep.subr.mxu0 0.0
      %3121 = vmatpush1.msra.mxu0 0.0
      %3122 = vmatprep.subr.mxu0 0.0
      %3123 = vmatpush1.msra.mxu0 0.0
      %3124 = vmatprep.subr.mxu0 0.0
      %3125 = vmatpush1.msra.mxu0 0.0
      %3126 = vmatprep.subr.mxu0 0.0
      %3127 = vmatpush1.msra.mxu0 0.0
      %3128 = vmatprep.subr.mxu0 0.0
      %3129 = vmatpush1.msra.mxu0 0.0
      %3130 = vmatprep.subr.mxu0 0.0
      %3131 = vmatpush1.msra.mxu0 0.0
      %3132 = vmatprep.subr.mxu0 0.0
      %3133 = vmatpush1.msra.mxu0 0.0
      %3134 = vmatprep.subr.mxu0 0.0
      %3135 = vmatpush1.msra.mxu0 0.0
      %3136 = vmatprep.subr.mxu0 0.0
      %3137 = vmatpush1.msra.mxu0 0.0
      %3138 = vmatprep.subr.mxu0 0.0
      %3139 = vmatpush1.msra.mxu0 0.0
      %3140 = vmatprep.subr.mxu0 0.0
      %3141 = vmatpush1.msra.mxu0 0.0
      %3142 = vmatprep.mubr.f32.mxu0 0.0
      %3143 = vmatmul.mubr.f32.gmra.mrb[0].mxu0 %v3073
      %v3144 = vpop.f32.mrb[0].mxu0
      %v3145 = vadd.f32 %v3069, %v3144
      %v3146 = vpop.f32.mrb[0].mxu0
      %3147 = vdwg.mxu0
      %3148 = vst [vmem:[%s521] sm:$0xff] %v3145
      %p3149 = scmp.lt.s32.totalorder %s27, 1
      %s3150 = scalar_select %p3149, %s27, 1
      %s3151 = smul.addr %s3150, 8
      %s3152 = scalar_lea.vmem %s16, %s3151
      // Predicated region
      $region85: #{_lambda_.1} parent=83 // pred_check
        %p3153 = pneg %p386
      $region86: #{_lambda_.1} parent=83 // pred_check_branch
        %3155 = sbr.rel (%p3153) target = $region88
      $region87: #{_lambda_.1} parent=83 // pred_region
        _
      $region88: #{_lambda_.1} parent=83 // pred_fallthru
        _
    $region84: #{_lambda_.1} parent=5 // pred_fallthru
      _
    %p3156 = scmp.le.s32.totalorder 2, %s22
    // Predicated region
    $region89: #{_lambda_.1} parent=5 // pred_check
      %p3157 = pneg %p3156
    $region90: #{_lambda_.1} parent=5 // pred_check_branch
      %3159 = sbr.rel (%p3157) target = $region92
    $region91: #{_lambda_.1} parent=5 // pred_region
      %s3160 = ssub.s32 %s22, 2
      // Predicated region
      $region93: #{_lambda_.1} parent=91 // pred_check
        %p3161 = pneg %p392
      $region94: #{_lambda_.1} parent=91 // pred_check_branch
        %3163 = sbr.rel (%p3161) target = $region96
      $region95: #{_lambda_.1} parent=91 // pred_region
        %p3164 = scmp.lt.s32.totalorder %s28, 1
        %s3165 = scalar_select %p3164, %s28, 1
        %s3166 = smul.addr %s3165, 8
        %s3167 = scalar_lea.vmem %s16, %s3166
      $region96: #{_lambda_.1} parent=91 // pred_fallthru
        _
    $region92: #{_lambda_.1} parent=5 // pred_fallthru
      _
  $region6: #{_lambda_.1} parent=0 // loop_footer
    %s26 = sadd.s32 1, %s22
  $region7: #{_lambda_.1} parent=0 // loop_footer_branch
    %21 = sbr.rel target = $region3
  $region8: #{_lambda_.1} parent=0 // loop_exit
    _

</llo_original>
